<compile_context>
chip_gen: v7x
topology: tpu7x:2x2x1
jax: 0.10.0
libtpu: 0.0.40
codegen_flags: <defaults>
</compile_context>

<pallas_src>
import numpy as np
import jax
import jax.numpy as jnp
from jax.experimental import pallas as pl
from jax.experimental.pallas import tpu as pltpu

# ---- small, self-consistent config ------------------------------------------
B = 2              # batch
S = 8              # sequence length
VOCAB = 128
H = 64             # "BERT" hidden size (stands in for 768)
NH = 4             # attention heads
HD = H // NH
FFN = 128          # FFN intermediate
R = 16             # rnn_size (LSTM hidden per direction)
NUM_CLASSES = 2
BS = B * S
NW = NH * BS       # "wide" attention row count (head-tiled keys/values)

_LN_EPS = 1e-12
_PAD_BIAS = -10000.0
_NEG_INF = -1e9


def _layernorm(x, g, b, eps=_LN_EPS):
    mu = jnp.mean(x, axis=-1, keepdims=True)
    var = jnp.mean(jnp.square(x - mu), axis=-1, keepdims=True)
    return (x - mu) * jax.lax.rsqrt(var + eps) * g + b


# ---- compile-time structural constants (passed as tiny kernel inputs) --------
_rw = np.arange(NW)
# head_mask[r, j] = 1  iff  feature column j belongs to the head of wide row r
HEAD_MASK_NP = ((_rw[:, None] // (B * S)) ==
                (np.arange(H)[None, :] // HD)).astype(np.float32)        # [NW, H]
# G[c, g] = 1 iff wide column c belongs to head g   (grouped softmax sums)
G_NP = ((_rw[:, None] // (B * S)) ==
        np.arange(NH)[None, :]).astype(np.float32)                       # [NW, NH]
GT_NP = np.ascontiguousarray(G_NP.T)                                     # [NH, NW]
# bm[q_row, c] = 1 iff the wide column c refers to the same batch as q_row
BM_NP = ((np.arange(BS)[:, None] // S) ==
         ((_rw[None, :] % (B * S)) // S)).astype(np.float32)             # [BS, NW]


# ---------------------------------------------------------------------------
# Fused kernel: embeddings -> encoder layer -> BiLSTM -> linear + CE loss
# ---------------------------------------------------------------------------
def fused_forward_kernel(
        ids_ref, types_ref, mask_ref, amb_ref, labels_ref,
        bm_ref, hm_ref, g_ref, gt_ref,
        word_emb_ref, pos_emb_ref, type_emb_ref, emb_g_ref, emb_b_ref,
        wq_ref, bq_ref, wk_ref, bk_ref, wv_ref, bv_ref, wo_ref, bo_ref,
        ln1_g_ref, ln1_b_ref,
        w1_ref, b1_ref, w2_ref, b2_ref, ln2_g_ref, ln2_b_ref,
        wih_x_ref, wih_a_ref, b_gates_ref, whh_f_ref,
        w_out_ref, b_out_ref,
        logits_ref, loss_ref):
    f32 = jnp.float32
    bf16 = jnp.bfloat16

    # ---- BERT embeddings -----------------------------------------------------
    ids = ids_ref[...]                                            # [BS, 1] int32
    vocab_iota = jax.lax.broadcasted_iota(jnp.int32, (BS, VOCAB), 1)
    word_oh = (vocab_iota == ids).astype(bf16)                    # [BS, VOCAB]
    x = jnp.dot(word_oh, word_emb_ref[...], preferred_element_type=f32)

    # position embeddings: rows are (b, s) b-major -> just tile the [S, H] table
    x = x + jnp.concatenate([pos_emb_ref[...]] * B, axis=0)

    # token_type blend (assumes token_type_ids in {0, 1})
    t_ids = types_ref[...].astype(f32)                            # [BS, 1]
    x = x + type_emb_ref[0:1, :] * (1.0 - t_ids) + type_emb_ref[1:2, :] * t_ids

    x = _layernorm(x, emb_g_ref[...], emb_b_ref[...])             # [BS, H] f32

    # ---- fused block-diagonal multi-head self-attention ----------------------
    # Q compact [BS, H]; K/V tiled over heads to [NW, H] and head-masked so a
    # single score matmul and a single context matmul cover all heads/batches.
    xb = x.astype(bf16)
    q = jnp.dot(xb, wq_ref[...], preferred_element_type=f32) + bq_ref[...]
    k = jnp.dot(xb, wk_ref[...], preferred_element_type=f32) + bk_ref[...]
    v = jnp.dot(xb, wv_ref[...], preferred_element_type=f32) + bv_ref[...]

    hm = hm_ref[...]                                              # [NW, H]
    k_wide = jnp.concatenate([k] * NH, axis=0) * hm               # [NW, H]
    v_wide = jnp.concatenate([v] * NH, axis=0) * hm               # [NW, H]

    # scores[(b,q), (h,b',k)] ; 1/sqrt(HD) is already folded into wq/bq at init
    s = jax.lax.dot_general(q, k_wide, (((1,), (1,)), ((), ())),
                            preferred_element_type=f32)           # [BS, NW]

    bm = bm_ref[...]                                              # [BS, NW]
    mask_tiled = jnp.concatenate([mask_ref[...]] * NH, axis=1)    # [1, NW]
    bias = bm * ((mask_tiled - 1.0) * (-_PAD_BIAS) * (-1.0)) \
        if False else bm * ((mask_tiled - 1.0) * 10000.0) + (1.0 - bm) * _NEG_INF
    s = s + bias

    # grouped (per-head) softmax; per-row max is a valid shared shift.
    m = jnp.max(s, axis=-1, keepdims=True)
    e = jnp.exp(s - m)
    denom = jnp.dot(e, g_ref[...], preferred_element_type=f32)    # [BS, NH]
    inv = 1.0 / jnp.maximum(denom, 1e-30)                         # NaN-safe, exact
    p = e * jnp.dot(inv, gt_ref[...], preferred_element_type=f32) # [BS, NW]

    ctx = jnp.dot(p, v_wide, preferred_element_type=f32)          # [BS, H], heads
    attn = jnp.dot(ctx.astype(bf16), wo_ref[...],                 # already concat
                   preferred_element_type=f32) + bo_ref[...]
    x = _layernorm(x + attn, ln1_g_ref[...], ln1_b_ref[...])

    # ---- FFN ------------------------------------------------------------------
    h1 = jnp.dot(x.astype(bf16), w1_ref[...],
                 preferred_element_type=f32) + b1_ref[...]
    h1 = jax.nn.gelu(h1, approximate=True)
    h2 = jnp.dot(h1.astype(bf16), w2_ref[...],
                 preferred_element_type=f32) + b2_ref[...]
    hidden = _layernorm(x + h2, ln2_g_ref[...], ln2_b_ref[...])   # [BS, H]

    # ---- BiLSTM: input projection hoisted out of the recurrence ---------------
    amb = amb_ref[...]                                            # [BS, 1]
    gates_x = (jnp.dot(hidden.astype(bf16), wih_x_ref[...],
                       preferred_element_type=f32)
               + amb * wih_a_ref[...] + b_gates_ref[...])         # [BS, 8R]
    gates_x3 = gates_x.reshape(B, S, 8 * R)                       # [B, S, 8R]

    # Forward recurrence: h @ Whh done on the VPU as R rank-1 broadcast-multiply-
    # adds (no serialized MXU push/pop chain on v5e/v6e's MRF).
    whh = whh_f_ref[...]                                          # [R, 4R] f32
    h_f = jnp.zeros((B, R), f32)
    c_f = jnp.zeros((B, R), f32)
    for t in range(S):                                            # static unroll
        g = gates_x3[:, t, 0:4 * R]                               # [B, 4R]
        if t > 0:                                                 # h_{-1} == 0
            for r in range(R):
                g = g + h_f[:, r:r + 1] * whh[r:r + 1, :]
        i_g = jax.nn.sigmoid(g[:, 0:R])
        f_g = jax.nn.sigmoid(g[:, R:2 * R])
        c_g = jnp.tanh(g[:, 2 * R:3 * R])
        o_g = jax.nn.sigmoid(g[:, 3 * R:4 * R])
        c_f = f_g * c_f + i_g * c_g
        h_f = o_g * jnp.tanh(c_f)

    # Backward direction: the model only reads rnn_output[:, -1, :], which for the
    # reverse cell is its FIRST step (position S-1 with h0 = c0 = 0), so
    # Whh_reverse never contributes.  (Do NOT reuse this if pooling changes.)
    g_b = gates_x3[:, S - 1, 4 * R:8 * R]                         # [B, 4R]
    c_b = jax.nn.sigmoid(g_b[:, 0:R]) * jnp.tanh(g_b[:, 2 * R:3 * R])
    h_b = jax.nn.sigmoid(g_b[:, 3 * R:4 * R]) * jnp.tanh(c_b)

    last = jnp.concatenate([h_f, h_b], axis=-1)                   # [B, 2R]

    # ---- output Linear + CrossEntropyLoss (mean reduction) --------------------
    logits = jnp.dot(last, w_out_ref[...],
                     preferred_element_type=f32) + b_out_ref[...]  # [B, C]
    logits_ref[...] = logits

    mlg = jnp.max(logits, axis=-1, keepdims=True)
    lse = mlg + jnp.log(jnp.sum(jnp.exp(logits - mlg), axis=-1, keepdims=True))
    lab = labels_ref[...].astype(f32)                              # [B,1] in {0,1}
    picked = logits[:, 0:1] * (1.0 - lab) + logits[:, 1:2] * lab   # NUM_CLASSES==2
    loss_ref[...] = jnp.sum(lse - picked, axis=0, keepdims=True) * (1.0 / B)


# ---------------------------------------------------------------------------
# Parameters (deterministic, MXU weights pre-cast to bf16) and forward wrapper
# ---------------------------------------------------------------------------
def init_params(key):
    ks = jax.random.split(key, 16)

    def n(i, shape, scale=0.02):
        return (scale * jax.random.normal(ks[i], shape)).astype(jnp.float32)

    ones = lambda s: jnp.ones(s, jnp.float32)
    zeros = lambda s: jnp.zeros(s, jnp.float32)
    bf = lambda a: a.astype(jnp.bfloat16)
    att_scale = 1.0 / (HD ** 0.5)

    return {
        # "BERT" embeddings + single encoder layer (stand-in for bert-base)
        'word_emb': bf(n(0, (VOCAB, H))),
        'pos_emb': n(1, (S, H)),
        'type_emb': n(2, (2, H)),
        'emb_ln_g': ones((1, H)), 'emb_ln_b': zeros((1, H)),
        # 1/sqrt(HD) folded into the Q projection (a nonzero bq must be pre-scaled too)
        'wq': bf(n(3, (H, H)) * att_scale), 'bq': zeros((1, H)),
        'wk': bf(n(4, (H, H))), 'bk': zeros((1, H)),
        'wv': bf(n(5, (H, H))), 'bv': zeros((1, H)),
        'wo': bf(n(6, (H, H))), 'bo': zeros((1, H)),
        'ln1_g': ones((1, H)), 'ln1_b': zeros((1, H)),
        'w1': bf(n(7, (H, FFN))), 'b1': zeros((1, FFN)),
        'w2': bf(n(8, (FFN, H))), 'b2': zeros((1, H)),
        'ln2_g': ones((1, H)), 'ln2_b': zeros((1, H)),
        # BiLSTM.  wih_x[:, 0:4R] = forward gates (PyTorch order i,f,g,o) from the
        # H BERT features; wih_x[:, 4R:8R] = backward.  wih_a is the ambiguity
        # feature's input row; b_gates = b_ih + b_hh folded for both directions.
        'wih_x': bf(n(9, (H, 8 * R), 0.1)),
        'wih_a': n(10, (1, 8 * R), 0.1),
        'b_gates': zeros((1, 8 * R)),
        'whh_f': n(11, (R, 4 * R), 0.1),
        'whh_b': n(12, (R, 4 * R), 0.1),  # never reaches rnn_output[:, -1] (h0=0)
        # output layer (stored [in, out] == PyTorch W.T)
        'w_out': n(13, (2 * R, NUM_CLASSES), 0.1),
        'b_out': zeros((1, NUM_CLASSES)),
    }


@jax.jit
def humor_detection_forward(params, input_ids, attention_mask, token_type_ids,
                            ambiguity_scores, labels=None):
    assert input_ids.shape == (B, S)
    ids2 = input_ids.reshape(BS, 1).astype(jnp.int32)
    types2 = token_type_ids.reshape(BS, 1).astype(jnp.int32)
    mask_row = attention_mask.reshape(1, BS).astype(jnp.float32)
    amb2 = ambiguity_scores.reshape(BS, 1).astype(jnp.float32)   # unsqueeze(-1)
    have_labels = labels is not None
    lab2 = (labels if have_labels
            else jnp.zeros((B,), jnp.int32)).reshape(B, 1).astype(jnp.int32)

    bm = jnp.asarray(BM_NP)
    hm = jnp.asarray(HEAD_MASK_NP)
    gm = jnp.asarray(G_NP)
    gt = jnp.asarray(GT_NP)

    args = (ids2, types2, mask_row, amb2, lab2,
            bm, hm, gm, gt,
            params['word_emb'], params['pos_emb'], params['type_emb'],
            params['emb_ln_g'], params['emb_ln_b'],
            params['wq'], params['bq'], params['wk'], params['bk'],
            params['wv'], params['bv'], params['wo'], params['bo'],
            params['ln1_g'], params['ln1_b'],
            params['w1'], params['b1'], params['w2'], params['b2'],
            params['ln2_g'], params['ln2_b'],
            params['wih_x'], params['wih_a'], params['b_gates'], params['whh_f'],
            params['w_out'], params['b_out'])

    # Gridless, single-TensorCore call: all weights/activations (<~0.2 MiB) are
    # VMEM resident; no grid/tiling needed on any TPU generation.
    logits, loss = pl.pallas_call(
        fused_forward_kernel,
        out_shape=(jax.ShapeDtypeStruct((B, NUM_CLASSES), jnp.float32),
                   jax.ShapeDtypeStruct((1, 1), jnp.float32)),
        in_specs=[pl.BlockSpec(memory_space=pltpu.MemorySpace.VMEM)] * len(args),
        out_specs=(pl.BlockSpec(memory_space=pltpu.MemorySpace.VMEM),
                   pl.BlockSpec(memory_space=pltpu.MemorySpace.VMEM)),
    )(*args)

    if have_labels:
        return (loss[0, 0], logits)
    return (logits,)


if __name__ == "__main__":
    params = init_params(jax.random.PRNGKey(42))

    key = jax.random.PRNGKey(0)
    k1, k2, k3 = jax.random.split(key, 3)
    input_ids = jax.random.randint(k1, (B, S), 0, VOCAB, dtype=jnp.int32)
    attention_mask = jnp.ones((B, S), jnp.float32)
    token_type_ids = jnp.zeros((B, S), jnp.int32)
    ambiguity_scores = jax.random.uniform(k2, (B, S), dtype=jnp.float32)
    labels = jax.random.randint(k3, (B,), 0, NUM_CLASSES, dtype=jnp.int32)

    loss, logits = humor_detection_forward(
        params, input_ids, attention_mask, token_type_ids,
        ambiguity_scores, labels)
    jax.block_until_ready((loss, logits))
    assert logits.shape == (B, NUM_CLASSES) and loss.shape == ()
    print("KERNEL_OK")
</pallas_src>

<mosaic_0001>
module attributes {stable_mosaic.version = 11 : i64} {
  func.func @fused_forward_kernel(%arg0: memref<16x1xi32, #tpu.memory_space<vmem>>, %arg1: memref<16x1xi32, #tpu.memory_space<vmem>>, %arg2: memref<1x16xf32, #tpu.memory_space<vmem>>, %arg3: memref<16x1xf32, #tpu.memory_space<vmem>>, %arg4: memref<2x1xi32, #tpu.memory_space<vmem>>, %arg5: memref<16x64xf32, #tpu.memory_space<vmem>>, %arg6: memref<64x64xf32, #tpu.memory_space<vmem>>, %arg7: memref<64x4xf32, #tpu.memory_space<vmem>>, %arg8: memref<4x64xf32, #tpu.memory_space<vmem>>, %arg9: memref<128x64xbf16, #tpu.memory_space<vmem>>, %arg10: memref<8x64xf32, #tpu.memory_space<vmem>>, %arg11: memref<2x64xf32, #tpu.memory_space<vmem>>, %arg12: memref<1x64xf32, #tpu.memory_space<vmem>>, %arg13: memref<1x64xf32, #tpu.memory_space<vmem>>, %arg14: memref<64x64xbf16, #tpu.memory_space<vmem>>, %arg15: memref<1x64xf32, #tpu.memory_space<vmem>>, %arg16: memref<64x64xbf16, #tpu.memory_space<vmem>>, %arg17: memref<1x64xf32, #tpu.memory_space<vmem>>, %arg18: memref<64x64xbf16, #tpu.memory_space<vmem>>, %arg19: memref<1x64xf32, #tpu.memory_space<vmem>>, %arg20: memref<64x64xbf16, #tpu.memory_space<vmem>>, %arg21: memref<1x64xf32, #tpu.memory_space<vmem>>, %arg22: memref<1x64xf32, #tpu.memory_space<vmem>>, %arg23: memref<1x64xf32, #tpu.memory_space<vmem>>, %arg24: memref<64x128xbf16, #tpu.memory_space<vmem>>, %arg25: memref<1x128xf32, #tpu.memory_space<vmem>>, %arg26: memref<128x64xbf16, #tpu.memory_space<vmem>>, %arg27: memref<1x64xf32, #tpu.memory_space<vmem>>, %arg28: memref<1x64xf32, #tpu.memory_space<vmem>>, %arg29: memref<1x64xf32, #tpu.memory_space<vmem>>, %arg30: memref<64x128xbf16, #tpu.memory_space<vmem>>, %arg31: memref<1x128xf32, #tpu.memory_space<vmem>>, %arg32: memref<1x128xf32, #tpu.memory_space<vmem>>, %arg33: memref<16x64xf32, #tpu.memory_space<vmem>>, %arg34: memref<32x2xf32, #tpu.memory_space<vmem>>, %arg35: memref<1x2xf32, #tpu.memory_space<vmem>>, %arg36: memref<2x2xf32, #tpu.memory_space<vmem>>, %arg37: memref<1x1xf32, #tpu.memory_space<vmem>>) attributes {dimension_semantics = [], scalar_prefetch = 0 : i64, scratch_operands = 0 : i64, tpu.core_type = #tpu.core_type<tc>} {
    %c0 = arith.constant 0 : index
    %c0_0 = arith.constant 0 : index
    %0 = vector.load %arg0[%c0, %c0_0] : memref<16x1xi32, #tpu.memory_space<vmem>>, vector<16x1xi32>
    %1 = tpu.iota {dimensions = array<i32: 1>} : vector<16x128xi32>
    %2 = vector.broadcast %0 : vector<16x1xi32> to vector<16x128xi32>
    %3 = arith.cmpi eq, %1, %2 : vector<16x128xi32>
    %4 = arith.extui %3 : vector<16x128xi1> to vector<16x128xi32>
    %5 = arith.sitofp %4 : vector<16x128xi32> to vector<16x128xf32>
    %6 = arith.truncf %5 : vector<16x128xf32> to vector<16x128xbf16>
    %c0_1 = arith.constant 0 : index
    %c0_2 = arith.constant 0 : index
    %7 = vector.load %arg9[%c0_1, %c0_2] : memref<128x64xbf16, #tpu.memory_space<vmem>>, vector<128x64xbf16>
    %cst = arith.constant dense<0.000000e+00> : vector<16x64xf32>
    %8 = tpu.matmul %6, %7, %cst {dimension_numbers = #tpu.dot_dimension_numbers<[1], [0], [0], [1], [0, 0, 1, 1], [], []>} : vector<16x128xbf16>, vector<128x64xbf16>, vector<16x64xf32> -> vector<16x64xf32>
    %c0_3 = arith.constant 0 : index
    %c0_4 = arith.constant 0 : index
    %9 = vector.load %arg10[%c0_3, %c0_4] : memref<8x64xf32, #tpu.memory_space<vmem>>, vector<8x64xf32>
    %10 = tpu.concatenate %9, %9 in 0 : vector<8x64xf32>, vector<8x64xf32> -> vector<16x64xf32>
    %11 = arith.addf %8, %10 : vector<16x64xf32>
    %c0_5 = arith.constant 0 : index
    %c0_6 = arith.constant 0 : index
    %12 = vector.load %arg1[%c0_5, %c0_6] : memref<16x1xi32, #tpu.memory_space<vmem>>, vector<16x1xi32>
    %13 = arith.sitofp %12 : vector<16x1xi32> to vector<16x1xf32>
    %c0_7 = arith.constant 0 : index
    %c0_8 = arith.constant 0 : index
    %14 = vector.load %arg11[%c0_7, %c0_8] : memref<2x64xf32, #tpu.memory_space<vmem>>, vector<1x64xf32>
    %cst_9 = arith.constant 1.000000e+00 : f32
    %15 = vector.broadcast %cst_9 : f32 to vector<16x1xf32>
    %16 = arith.subf %15, %13 : vector<16x1xf32>
    %17 = vector.broadcast %14 : vector<1x64xf32> to vector<16x64xf32>
    %18 = vector.broadcast %16 : vector<16x1xf32> to vector<16x64xf32>
    %19 = arith.mulf %17, %18 : vector<16x64xf32>
    %20 = arith.addf %11, %19 : vector<16x64xf32>
    %c1 = arith.constant 1 : index
    %c0_10 = arith.constant 0 : index
    %21 = vector.load %arg11[%c1, %c0_10] : memref<2x64xf32, #tpu.memory_space<vmem>>, vector<1x64xf32>
    %22 = vector.broadcast %21 : vector<1x64xf32> to vector<16x64xf32>
    %23 = vector.broadcast %13 : vector<16x1xf32> to vector<16x64xf32>
    %24 = arith.mulf %22, %23 : vector<16x64xf32>
    %25 = arith.addf %20, %24 : vector<16x64xf32>
    %c0_11 = arith.constant 0 : index
    %c0_12 = arith.constant 0 : index
    %26 = vector.load %arg12[%c0_11, %c0_12] : memref<1x64xf32, #tpu.memory_space<vmem>>, vector<1x64xf32>
    %c0_13 = arith.constant 0 : index
    %c0_14 = arith.constant 0 : index
    %27 = vector.load %arg13[%c0_13, %c0_14] : memref<1x64xf32, #tpu.memory_space<vmem>>, vector<1x64xf32>
    %cst_15 = arith.constant dense<0.000000e+00> : vector<16xf32>
    %28 = vector.multi_reduction <add>, %25, %cst_15 [1] : vector<16x64xf32> to vector<16xf32>
    %29 = vector.shape_cast %28 : vector<16xf32> to vector<16x1xf32>
    %cst_16 = arith.constant 6.400000e+01 : f32
    %30 = vector.broadcast %cst_16 : f32 to vector<16x1xf32>
    %31 = arith.divf %29, %30 : vector<16x1xf32>
    %32 = vector.broadcast %31 : vector<16x1xf32> to vector<16x64xf32>
    %33 = arith.subf %25, %32 : vector<16x64xf32>
    %34 = arith.mulf %33, %33 : vector<16x64xf32>
    %cst_17 = arith.constant dense<0.000000e+00> : vector<16xf32>
    %35 = vector.multi_reduction <add>, %34, %cst_17 [1] : vector<16x64xf32> to vector<16xf32>
    %36 = vector.shape_cast %35 : vector<16xf32> to vector<16x1xf32>
    %cst_18 = arith.constant 6.400000e+01 : f32
    %37 = vector.broadcast %cst_18 : f32 to vector<16x1xf32>
    %38 = arith.divf %36, %37 : vector<16x1xf32>
    %39 = vector.broadcast %31 : vector<16x1xf32> to vector<16x64xf32>
    %40 = arith.subf %25, %39 : vector<16x64xf32>
    %cst_19 = arith.constant 9.99999996E-13 : f32
    %41 = vector.broadcast %cst_19 : f32 to vector<16x1xf32>
    %42 = arith.addf %38, %41 : vector<16x1xf32>
    %43 = math.rsqrt %42 : vector<16x1xf32>
    %44 = vector.broadcast %43 : vector<16x1xf32> to vector<16x64xf32>
    %45 = arith.mulf %40, %44 : vector<16x64xf32>
    %46 = vector.broadcast %26 : vector<1x64xf32> to vector<16x64xf32>
    %47 = arith.mulf %45, %46 : vector<16x64xf32>
    %48 = vector.broadcast %27 : vector<1x64xf32> to vector<16x64xf32>
    %49 = arith.addf %47, %48 : vector<16x64xf32>
    %50 = arith.truncf %49 : vector<16x64xf32> to vector<16x64xbf16>
    %c0_20 = arith.constant 0 : index
    %c0_21 = arith.constant 0 : index
    %51 = vector.load %arg14[%c0_20, %c0_21] : memref<64x64xbf16, #tpu.memory_space<vmem>>, vector<64x64xbf16>
    %cst_22 = arith.constant dense<0.000000e+00> : vector<16x64xf32>
    %52 = tpu.matmul %50, %51, %cst_22 {dimension_numbers = #tpu.dot_dimension_numbers<[1], [0], [0], [1], [0, 0, 1, 1], [], []>} : vector<16x64xbf16>, vector<64x64xbf16>, vector<16x64xf32> -> vector<16x64xf32>
    %c0_23 = arith.constant 0 : index
    %c0_24 = arith.constant 0 : index
    %53 = vector.load %arg15[%c0_23, %c0_24] : memref<1x64xf32, #tpu.memory_space<vmem>>, vector<1x64xf32>
    %54 = vector.broadcast %53 : vector<1x64xf32> to vector<16x64xf32>
    %55 = arith.addf %52, %54 : vector<16x64xf32>
    %c0_25 = arith.constant 0 : index
    %c0_26 = arith.constant 0 : index
    %56 = vector.load %arg16[%c0_25, %c0_26] : memref<64x64xbf16, #tpu.memory_space<vmem>>, vector<64x64xbf16>
    %cst_27 = arith.constant dense<0.000000e+00> : vector<16x64xf32>
    %57 = tpu.matmul %50, %56, %cst_27 {dimension_numbers = #tpu.dot_dimension_numbers<[1], [0], [0], [1], [0, 0, 1, 1], [], []>} : vector<16x64xbf16>, vector<64x64xbf16>, vector<16x64xf32> -> vector<16x64xf32>
    %c0_28 = arith.constant 0 : index
    %c0_29 = arith.constant 0 : index
    %58 = vector.load %arg17[%c0_28, %c0_29] : memref<1x64xf32, #tpu.memory_space<vmem>>, vector<1x64xf32>
    %59 = vector.broadcast %58 : vector<1x64xf32> to vector<16x64xf32>
    %60 = arith.addf %57, %59 : vector<16x64xf32>
    %c0_30 = arith.constant 0 : index
    %c0_31 = arith.constant 0 : index
    %61 = vector.load %arg18[%c0_30, %c0_31] : memref<64x64xbf16, #tpu.memory_space<vmem>>, vector<64x64xbf16>
    %cst_32 = arith.constant dense<0.000000e+00> : vector<16x64xf32>
    %62 = tpu.matmul %50, %61, %cst_32 {dimension_numbers = #tpu.dot_dimension_numbers<[1], [0], [0], [1], [0, 0, 1, 1], [], []>} : vector<16x64xbf16>, vector<64x64xbf16>, vector<16x64xf32> -> vector<16x64xf32>
    %c0_33 = arith.constant 0 : index
    %c0_34 = arith.constant 0 : index
    %63 = vector.load %arg19[%c0_33, %c0_34] : memref<1x64xf32, #tpu.memory_space<vmem>>, vector<1x64xf32>
    %64 = vector.broadcast %63 : vector<1x64xf32> to vector<16x64xf32>
    %65 = arith.addf %62, %64 : vector<16x64xf32>
    %c0_35 = arith.constant 0 : index
    %c0_36 = arith.constant 0 : index
    %66 = vector.load %arg6[%c0_35, %c0_36] : memref<64x64xf32, #tpu.memory_space<vmem>>, vector<64x64xf32>
    %67 = tpu.concatenate %60, %60, %60, %60 in 0 : vector<16x64xf32>, vector<16x64xf32>, vector<16x64xf32>, vector<16x64xf32> -> vector<64x64xf32>
    %68 = arith.mulf %67, %66 : vector<64x64xf32>
    %69 = tpu.concatenate %65, %65, %65, %65 in 0 : vector<16x64xf32>, vector<16x64xf32>, vector<16x64xf32>, vector<16x64xf32> -> vector<64x64xf32>
    %70 = arith.mulf %69, %66 : vector<64x64xf32>
    %cst_37 = arith.constant dense<0.000000e+00> : vector<16x64xf32>
    %71 = tpu.matmul %55, %68, %cst_37 {dimension_numbers = #tpu.dot_dimension_numbers<[1], [1], [0], [0], [0, 0, 1, 0], [], []>} : vector<16x64xf32>, vector<64x64xf32>, vector<16x64xf32> -> vector<16x64xf32>
    %c0_38 = arith.constant 0 : index
    %c0_39 = arith.constant 0 : index
    %72 = vector.load %arg5[%c0_38, %c0_39] : memref<16x64xf32, #tpu.memory_space<vmem>>, vector<16x64xf32>
    %c0_40 = arith.constant 0 : index
    %c0_41 = arith.constant 0 : index
    %73 = vector.load %arg2[%c0_40, %c0_41] : memref<1x16xf32, #tpu.memory_space<vmem>>, vector<1x16xf32>
    %74 = tpu.concatenate %73, %73, %73, %73 in 1 : vector<1x16xf32>, vector<1x16xf32>, vector<1x16xf32>, vector<1x16xf32> -> vector<1x64xf32>
    %cst_42 = arith.constant 1.000000e+00 : f32
    %75 = vector.broadcast %cst_42 : f32 to vector<1x64xf32>
    %76 = arith.subf %74, %75 : vector<1x64xf32>
    %cst_43 = arith.constant 1.000000e+04 : f32
    %77 = vector.broadcast %cst_43 : f32 to vector<1x64xf32>
    %78 = arith.mulf %76, %77 : vector<1x64xf32>
    %79 = vector.broadcast %78 : vector<1x64xf32> to vector<16x64xf32>
    %80 = arith.mulf %72, %79 : vector<16x64xf32>
    %cst_44 = arith.constant 1.000000e+00 : f32
    %81 = vector.broadcast %cst_44 : f32 to vector<16x64xf32>
    %82 = arith.subf %81, %72 : vector<16x64xf32>
    %cst_45 = arith.constant -1.000000e+09 : f32
    %83 = vector.broadcast %cst_45 : f32 to vector<16x64xf32>
    %84 = arith.mulf %82, %83 : vector<16x64xf32>
    %85 = arith.addf %80, %84 : vector<16x64xf32>
    %86 = arith.addf %71, %85 : vector<16x64xf32>
    %cst_46 = arith.constant dense<0xFF800000> : vector<16xf32>
    %87 = vector.multi_reduction <maximumf>, %86, %cst_46 [1] : vector<16x64xf32> to vector<16xf32>
    %88 = vector.shape_cast %87 : vector<16xf32> to vector<16x1xf32>
    %89 = vector.broadcast %88 : vector<16x1xf32> to vector<16x64xf32>
    %90 = arith.subf %86, %89 : vector<16x64xf32>
    %91 = math.exp %90 : vector<16x64xf32>
    %c0_47 = arith.constant 0 : index
    %c0_48 = arith.constant 0 : index
    %92 = vector.load %arg7[%c0_47, %c0_48] : memref<64x4xf32, #tpu.memory_space<vmem>>, vector<64x4xf32>
    %cst_49 = arith.constant dense<0.000000e+00> : vector<16x4xf32>
    %93 = tpu.matmul %91, %92, %cst_49 {dimension_numbers = #tpu.dot_dimension_numbers<[1], [0], [0], [1], [0, 0, 1, 1], [], []>} : vector<16x64xf32>, vector<64x4xf32>, vector<16x4xf32> -> vector<16x4xf32>
    %cst_50 = arith.constant 1.000000e-30 : f32
    %94 = vector.broadcast %cst_50 : f32 to vector<16x4xf32>
    %95 = arith.maximumf %93, %94 : vector<16x4xf32>
    %cst_51 = arith.constant 1.000000e+00 : f32
    %96 = vector.broadcast %cst_51 : f32 to vector<16x4xf32>
    %97 = arith.divf %96, %95 : vector<16x4xf32>
    %c0_52 = arith.constant 0 : index
    %c0_53 = arith.constant 0 : index
    %98 = vector.load %arg8[%c0_52, %c0_53] : memref<4x64xf32, #tpu.memory_space<vmem>>, vector<4x64xf32>
    %cst_54 = arith.constant dense<0.000000e+00> : vector<16x64xf32>
    %99 = tpu.matmul %97, %98, %cst_54 {dimension_numbers = #tpu.dot_dimension_numbers<[1], [0], [0], [1], [0, 0, 1, 1], [], []>} : vector<16x4xf32>, vector<4x64xf32>, vector<16x64xf32> -> vector<16x64xf32>
    %100 = arith.mulf %91, %99 : vector<16x64xf32>
    %cst_55 = arith.constant dense<0.000000e+00> : vector<16x64xf32>
    %101 = tpu.matmul %100, %70, %cst_55 {dimension_numbers = #tpu.dot_dimension_numbers<[1], [0], [0], [1], [0, 0, 1, 1], [], []>} : vector<16x64xf32>, vector<64x64xf32>, vector<16x64xf32> -> vector<16x64xf32>
    %102 = arith.truncf %101 : vector<16x64xf32> to vector<16x64xbf16>
    %c0_56 = arith.constant 0 : index
    %c0_57 = arith.constant 0 : index
    %103 = vector.load %arg20[%c0_56, %c0_57] : memref<64x64xbf16, #tpu.memory_space<vmem>>, vector<64x64xbf16>
    %cst_58 = arith.constant dense<0.000000e+00> : vector<16x64xf32>
    %104 = tpu.matmul %102, %103, %cst_58 {dimension_numbers = #tpu.dot_dimension_numbers<[1], [0], [0], [1], [0, 0, 1, 1], [], []>} : vector<16x64xbf16>, vector<64x64xbf16>, vector<16x64xf32> -> vector<16x64xf32>
    %c0_59 = arith.constant 0 : index
    %c0_60 = arith.constant 0 : index
    %105 = vector.load %arg21[%c0_59, %c0_60] : memref<1x64xf32, #tpu.memory_space<vmem>>, vector<1x64xf32>
    %106 = vector.broadcast %105 : vector<1x64xf32> to vector<16x64xf32>
    %107 = arith.addf %104, %106 : vector<16x64xf32>
    %108 = arith.addf %49, %107 : vector<16x64xf32>
    %c0_61 = arith.constant 0 : index
    %c0_62 = arith.constant 0 : index
    %109 = vector.load %arg22[%c0_61, %c0_62] : memref<1x64xf32, #tpu.memory_space<vmem>>, vector<1x64xf32>
    %c0_63 = arith.constant 0 : index
    %c0_64 = arith.constant 0 : index
    %110 = vector.load %arg23[%c0_63, %c0_64] : memref<1x64xf32, #tpu.memory_space<vmem>>, vector<1x64xf32>
    %cst_65 = arith.constant dense<0.000000e+00> : vector<16xf32>
    %111 = vector.multi_reduction <add>, %108, %cst_65 [1] : vector<16x64xf32> to vector<16xf32>
    %112 = vector.shape_cast %111 : vector<16xf32> to vector<16x1xf32>
    %cst_66 = arith.constant 6.400000e+01 : f32
    %113 = vector.broadcast %cst_66 : f32 to vector<16x1xf32>
    %114 = arith.divf %112, %113 : vector<16x1xf32>
    %115 = vector.broadcast %114 : vector<16x1xf32> to vector<16x64xf32>
    %116 = arith.subf %108, %115 : vector<16x64xf32>
    %117 = arith.mulf %116, %116 : vector<16x64xf32>
    %cst_67 = arith.constant dense<0.000000e+00> : vector<16xf32>
    %118 = vector.multi_reduction <add>, %117, %cst_67 [1] : vector<16x64xf32> to vector<16xf32>
    %119 = vector.shape_cast %118 : vector<16xf32> to vector<16x1xf32>
    %cst_68 = arith.constant 6.400000e+01 : f32
    %120 = vector.broadcast %cst_68 : f32 to vector<16x1xf32>
    %121 = arith.divf %119, %120 : vector<16x1xf32>
    %122 = vector.broadcast %114 : vector<16x1xf32> to vector<16x64xf32>
    %123 = arith.subf %108, %122 : vector<16x64xf32>
    %cst_69 = arith.constant 9.99999996E-13 : f32
    %124 = vector.broadcast %cst_69 : f32 to vector<16x1xf32>
    %125 = arith.addf %121, %124 : vector<16x1xf32>
    %126 = math.rsqrt %125 : vector<16x1xf32>
    %127 = vector.broadcast %126 : vector<16x1xf32> to vector<16x64xf32>
    %128 = arith.mulf %123, %127 : vector<16x64xf32>
    %129 = vector.broadcast %109 : vector<1x64xf32> to vector<16x64xf32>
    %130 = arith.mulf %128, %129 : vector<16x64xf32>
    %131 = vector.broadcast %110 : vector<1x64xf32> to vector<16x64xf32>
    %132 = arith.addf %130, %131 : vector<16x64xf32>
    %133 = arith.truncf %132 : vector<16x64xf32> to vector<16x64xbf16>
    %c0_70 = arith.constant 0 : index
    %c0_71 = arith.constant 0 : index
    %134 = vector.load %arg24[%c0_70, %c0_71] : memref<64x128xbf16, #tpu.memory_space<vmem>>, vector<64x128xbf16>
    %cst_72 = arith.constant dense<0.000000e+00> : vector<16x128xf32>
    %135 = tpu.matmul %133, %134, %cst_72 {dimension_numbers = #tpu.dot_dimension_numbers<[1], [0], [0], [1], [0, 0, 1, 1], [], []>} : vector<16x64xbf16>, vector<64x128xbf16>, vector<16x128xf32> -> vector<16x128xf32>
    %c0_73 = arith.constant 0 : index
    %c0_74 = arith.constant 0 : index
    %136 = vector.load %arg25[%c0_73, %c0_74] : memref<1x128xf32, #tpu.memory_space<vmem>>, vector<1x128xf32>
    %137 = vector.broadcast %136 : vector<1x128xf32> to vector<16x128xf32>
    %138 = arith.addf %135, %137 : vector<16x128xf32>
    %139 = arith.mulf %138, %138 : vector<16x128xf32>
    %140 = arith.mulf %138, %139 : vector<16x128xf32>
    %cst_75 = arith.constant 4.471500e-02 : f32
    %141 = vector.broadcast %cst_75 : f32 to vector<16x128xf32>
    %142 = arith.mulf %141, %140 : vector<16x128xf32>
    %143 = arith.addf %138, %142 : vector<16x128xf32>
    %cst_76 = arith.constant 0.797884583 : f32
    %144 = vector.broadcast %cst_76 : f32 to vector<16x128xf32>
    %145 = arith.mulf %144, %143 : vector<16x128xf32>
    %146 = math.tanh %145 : vector<16x128xf32>
    %cst_77 = arith.constant 1.000000e+00 : f32
    %147 = vector.broadcast %cst_77 : f32 to vector<16x128xf32>
    %148 = arith.addf %147, %146 : vector<16x128xf32>
    %cst_78 = arith.constant 5.000000e-01 : f32
    %149 = vector.broadcast %cst_78 : f32 to vector<16x128xf32>
    %150 = arith.mulf %149, %148 : vector<16x128xf32>
    %151 = arith.mulf %138, %150 : vector<16x128xf32>
    %152 = arith.truncf %151 : vector<16x128xf32> to vector<16x128xbf16>
    %c0_79 = arith.constant 0 : index
    %c0_80 = arith.constant 0 : index
    %153 = vector.load %arg26[%c0_79, %c0_80] : memref<128x64xbf16, #tpu.memory_space<vmem>>, vector<128x64xbf16>
    %cst_81 = arith.constant dense<0.000000e+00> : vector<16x64xf32>
    %154 = tpu.matmul %152, %153, %cst_81 {dimension_numbers = #tpu.dot_dimension_numbers<[1], [0], [0], [1], [0, 0, 1, 1], [], []>} : vector<16x128xbf16>, vector<128x64xbf16>, vector<16x64xf32> -> vector<16x64xf32>
    %c0_82 = arith.constant 0 : index
    %c0_83 = arith.constant 0 : index
    %155 = vector.load %arg27[%c0_82, %c0_83] : memref<1x64xf32, #tpu.memory_space<vmem>>, vector<1x64xf32>
    %156 = vector.broadcast %155 : vector<1x64xf32> to vector<16x64xf32>
    %157 = arith.addf %154, %156 : vector<16x64xf32>
    %158 = arith.addf %132, %157 : vector<16x64xf32>
    %c0_84 = arith.constant 0 : index
    %c0_85 = arith.constant 0 : index
    %159 = vector.load %arg28[%c0_84, %c0_85] : memref<1x64xf32, #tpu.memory_space<vmem>>, vector<1x64xf32>
    %c0_86 = arith.constant 0 : index
    %c0_87 = arith.constant 0 : index
    %160 = vector.load %arg29[%c0_86, %c0_87] : memref<1x64xf32, #tpu.memory_space<vmem>>, vector<1x64xf32>
    %cst_88 = arith.constant dense<0.000000e+00> : vector<16xf32>
    %161 = vector.multi_reduction <add>, %158, %cst_88 [1] : vector<16x64xf32> to vector<16xf32>
    %162 = vector.shape_cast %161 : vector<16xf32> to vector<16x1xf32>
    %cst_89 = arith.constant 6.400000e+01 : f32
    %163 = vector.broadcast %cst_89 : f32 to vector<16x1xf32>
    %164 = arith.divf %162, %163 : vector<16x1xf32>
    %165 = vector.broadcast %164 : vector<16x1xf32> to vector<16x64xf32>
    %166 = arith.subf %158, %165 : vector<16x64xf32>
    %167 = arith.mulf %166, %166 : vector<16x64xf32>
    %cst_90 = arith.constant dense<0.000000e+00> : vector<16xf32>
    %168 = vector.multi_reduction <add>, %167, %cst_90 [1] : vector<16x64xf32> to vector<16xf32>
    %169 = vector.shape_cast %168 : vector<16xf32> to vector<16x1xf32>
    %cst_91 = arith.constant 6.400000e+01 : f32
    %170 = vector.broadcast %cst_91 : f32 to vector<16x1xf32>
    %171 = arith.divf %169, %170 : vector<16x1xf32>
    %172 = vector.broadcast %164 : vector<16x1xf32> to vector<16x64xf32>
    %173 = arith.subf %158, %172 : vector<16x64xf32>
    %cst_92 = arith.constant 9.99999996E-13 : f32
    %174 = vector.broadcast %cst_92 : f32 to vector<16x1xf32>
    %175 = arith.addf %171, %174 : vector<16x1xf32>
    %176 = math.rsqrt %175 : vector<16x1xf32>
    %177 = vector.broadcast %176 : vector<16x1xf32> to vector<16x64xf32>
    %178 = arith.mulf %173, %177 : vector<16x64xf32>
    %179 = vector.broadcast %159 : vector<1x64xf32> to vector<16x64xf32>
    %180 = arith.mulf %178, %179 : vector<16x64xf32>
    %181 = vector.broadcast %160 : vector<1x64xf32> to vector<16x64xf32>
    %182 = arith.addf %180, %181 : vector<16x64xf32>
    %c0_93 = arith.constant 0 : index
    %c0_94 = arith.constant 0 : index
    %183 = vector.load %arg3[%c0_93, %c0_94] : memref<16x1xf32, #tpu.memory_space<vmem>>, vector<16x1xf32>
    %184 = arith.truncf %182 : vector<16x64xf32> to vector<16x64xbf16>
    %c0_95 = arith.constant 0 : index
    %c0_96 = arith.constant 0 : index
    %185 = vector.load %arg30[%c0_95, %c0_96] : memref<64x128xbf16, #tpu.memory_space<vmem>>, vector<64x128xbf16>
    %cst_97 = arith.constant dense<0.000000e+00> : vector<16x128xf32>
    %186 = tpu.matmul %184, %185, %cst_97 {dimension_numbers = #tpu.dot_dimension_numbers<[1], [0], [0], [1], [0, 0, 1, 1], [], []>} : vector<16x64xbf16>, vector<64x128xbf16>, vector<16x128xf32> -> vector<16x128xf32>
    %c0_98 = arith.constant 0 : index
    %c0_99 = arith.constant 0 : index
    %187 = vector.load %arg31[%c0_98, %c0_99] : memref<1x128xf32, #tpu.memory_space<vmem>>, vector<1x128xf32>
    %188 = vector.broadcast %183 : vector<16x1xf32> to vector<16x128xf32>
    %189 = vector.broadcast %187 : vector<1x128xf32> to vector<16x128xf32>
    %190 = arith.mulf %188, %189 : vector<16x128xf32>
    %191 = arith.addf %186, %190 : vector<16x128xf32>
    %c0_100 = arith.constant 0 : index
    %c0_101 = arith.constant 0 : index
    %192 = vector.load %arg32[%c0_100, %c0_101] : memref<1x128xf32, #tpu.memory_space<vmem>>, vector<1x128xf32>
    %193 = vector.broadcast %192 : vector<1x128xf32> to vector<16x128xf32>
    %194 = arith.addf %191, %193 : vector<16x128xf32>
    %195 = vector.shape_cast %194 : vector<16x128xf32> to vector<2x8x128xf32>
    %c0_102 = arith.constant 0 : index
    %c0_103 = arith.constant 0 : index
    %196 = vector.load %arg33[%c0_102, %c0_103] : memref<16x64xf32, #tpu.memory_space<vmem>>, vector<16x64xf32>
    %cst_104 = arith.constant 0.000000e+00 : f32
    %197 = vector.broadcast %cst_104 : f32 to vector<2x16xf32>
    %198 = vector.extract_strided_slice %195 {offsets = [0, 0, 0], sizes = [2, 1, 64], strides = [1, 1, 1]} : vector<2x8x128xf32> to vector<2x1x64xf32>
    %199 = vector.shape_cast %198 : vector<2x1x64xf32> to vector<2x64xf32>
    %200 = vector.extract_strided_slice %199 {offsets = [0, 0], sizes = [2, 16], strides = [1, 1]} : vector<2x64xf32> to vector<2x16xf32>
    %201 = arith.negf %200 : vector<2x16xf32>
    %202 = math.exp %201 : vector<2x16xf32>
    %cst_105 = arith.constant 1.000000e+00 : f32
    %203 = vector.broadcast %cst_105 : f32 to vector<2x16xf32>
    %204 = arith.addf %203, %202 : vector<2x16xf32>
    %205 = arith.divf %203, %204 : vector<2x16xf32>
    %206 = vector.extract_strided_slice %199 {offsets = [0, 16], sizes = [2, 16], strides = [1, 1]} : vector<2x64xf32> to vector<2x16xf32>
    %207 = arith.negf %206 : vector<2x16xf32>
    %208 = math.exp %207 : vector<2x16xf32>
    %cst_106 = arith.constant 1.000000e+00 : f32
    %209 = vector.broadcast %cst_106 : f32 to vector<2x16xf32>
    %210 = arith.addf %209, %208 : vector<2x16xf32>
    %211 = arith.divf %209, %210 : vector<2x16xf32>
    %212 = vector.extract_strided_slice %199 {offsets = [0, 32], sizes = [2, 16], strides = [1, 1]} : vector<2x64xf32> to vector<2x16xf32>
    %213 = math.tanh %212 : vector<2x16xf32>
    %214 = vector.extract_strided_slice %199 {offsets = [0, 48], sizes = [2, 16], strides = [1, 1]} : vector<2x64xf32> to vector<2x16xf32>
    %215 = arith.negf %214 : vector<2x16xf32>
    %216 = math.exp %215 : vector<2x16xf32>
    %cst_107 = arith.constant 1.000000e+00 : f32
    %217 = vector.broadcast %cst_107 : f32 to vector<2x16xf32>
    %218 = arith.addf %217, %216 : vector<2x16xf32>
    %219 = arith.divf %217, %218 : vector<2x16xf32>
    %220 = arith.mulf %211, %197 : vector<2x16xf32>
    %221 = arith.mulf %205, %213 : vector<2x16xf32>
    %222 = arith.addf %220, %221 : vector<2x16xf32>
    %223 = math.tanh %222 : vector<2x16xf32>
    %224 = arith.mulf %219, %223 : vector<2x16xf32>
    %225 = vector.extract_strided_slice %195 {offsets = [0, 1, 0], sizes = [2, 1, 64], strides = [1, 1, 1]} : vector<2x8x128xf32> to vector<2x1x64xf32>
    %226 = vector.shape_cast %225 : vector<2x1x64xf32> to vector<2x64xf32>
    %227 = vector.extract_strided_slice %224 {offsets = [0, 0], sizes = [2, 1], strides = [1, 1]} : vector<2x16xf32> to vector<2x1xf32>
    %228 = vector.extract_strided_slice %196 {offsets = [0, 0], sizes = [1, 64], strides = [1, 1]} : vector<16x64xf32> to vector<1x64xf32>
    %229 = vector.broadcast %227 : vector<2x1xf32> to vector<2x64xf32>
    %230 = vector.broadcast %228 : vector<1x64xf32> to vector<2x64xf32>
    %231 = arith.mulf %229, %230 : vector<2x64xf32>
    %232 = arith.addf %226, %231 : vector<2x64xf32>
    %233 = vector.extract_strided_slice %224 {offsets = [0, 1], sizes = [2, 1], strides = [1, 1]} : vector<2x16xf32> to vector<2x1xf32>
    %234 = vector.extract_strided_slice %196 {offsets = [1, 0], sizes = [1, 64], strides = [1, 1]} : vector<16x64xf32> to vector<1x64xf32>
    %235 = vector.broadcast %233 : vector<2x1xf32> to vector<2x64xf32>
    %236 = vector.broadcast %234 : vector<1x64xf32> to vector<2x64xf32>
    %237 = arith.mulf %235, %236 : vector<2x64xf32>
    %238 = arith.addf %232, %237 : vector<2x64xf32>
    %239 = vector.extract_strided_slice %224 {offsets = [0, 2], sizes = [2, 1], strides = [1, 1]} : vector<2x16xf32> to vector<2x1xf32>
    %240 = vector.extract_strided_slice %196 {offsets = [2, 0], sizes = [1, 64], strides = [1, 1]} : vector<16x64xf32> to vector<1x64xf32>
    %241 = vector.broadcast %239 : vector<2x1xf32> to vector<2x64xf32>
    %242 = vector.broadcast %240 : vector<1x64xf32> to vector<2x64xf32>
    %243 = arith.mulf %241, %242 : vector<2x64xf32>
    %244 = arith.addf %238, %243 : vector<2x64xf32>
    %245 = vector.extract_strided_slice %224 {offsets = [0, 3], sizes = [2, 1], strides = [1, 1]} : vector<2x16xf32> to vector<2x1xf32>
    %246 = vector.extract_strided_slice %196 {offsets = [3, 0], sizes = [1, 64], strides = [1, 1]} : vector<16x64xf32> to vector<1x64xf32>
    %247 = vector.broadcast %245 : vector<2x1xf32> to vector<2x64xf32>
    %248 = vector.broadcast %246 : vector<1x64xf32> to vector<2x64xf32>
    %249 = arith.mulf %247, %248 : vector<2x64xf32>
    %250 = arith.addf %244, %249 : vector<2x64xf32>
    %251 = vector.extract_strided_slice %224 {offsets = [0, 4], sizes = [2, 1], strides = [1, 1]} : vector<2x16xf32> to vector<2x1xf32>
    %252 = vector.extract_strided_slice %196 {offsets = [4, 0], sizes = [1, 64], strides = [1, 1]} : vector<16x64xf32> to vector<1x64xf32>
    %253 = vector.broadcast %251 : vector<2x1xf32> to vector<2x64xf32>
    %254 = vector.broadcast %252 : vector<1x64xf32> to vector<2x64xf32>
    %255 = arith.mulf %253, %254 : vector<2x64xf32>
    %256 = arith.addf %250, %255 : vector<2x64xf32>
    %257 = vector.extract_strided_slice %224 {offsets = [0, 5], sizes = [2, 1], strides = [1, 1]} : vector<2x16xf32> to vector<2x1xf32>
    %258 = vector.extract_strided_slice %196 {offsets = [5, 0], sizes = [1, 64], strides = [1, 1]} : vector<16x64xf32> to vector<1x64xf32>
    %259 = vector.broadcast %257 : vector<2x1xf32> to vector<2x64xf32>
    %260 = vector.broadcast %258 : vector<1x64xf32> to vector<2x64xf32>
    %261 = arith.mulf %259, %260 : vector<2x64xf32>
    %262 = arith.addf %256, %261 : vector<2x64xf32>
    %263 = vector.extract_strided_slice %224 {offsets = [0, 6], sizes = [2, 1], strides = [1, 1]} : vector<2x16xf32> to vector<2x1xf32>
    %264 = vector.extract_strided_slice %196 {offsets = [6, 0], sizes = [1, 64], strides = [1, 1]} : vector<16x64xf32> to vector<1x64xf32>
    %265 = vector.broadcast %263 : vector<2x1xf32> to vector<2x64xf32>
    %266 = vector.broadcast %264 : vector<1x64xf32> to vector<2x64xf32>
    %267 = arith.mulf %265, %266 : vector<2x64xf32>
    %268 = arith.addf %262, %267 : vector<2x64xf32>
    %269 = vector.extract_strided_slice %224 {offsets = [0, 7], sizes = [2, 1], strides = [1, 1]} : vector<2x16xf32> to vector<2x1xf32>
    %270 = vector.extract_strided_slice %196 {offsets = [7, 0], sizes = [1, 64], strides = [1, 1]} : vector<16x64xf32> to vector<1x64xf32>
    %271 = vector.broadcast %269 : vector<2x1xf32> to vector<2x64xf32>
    %272 = vector.broadcast %270 : vector<1x64xf32> to vector<2x64xf32>
    %273 = arith.mulf %271, %272 : vector<2x64xf32>
    %274 = arith.addf %268, %273 : vector<2x64xf32>
    %275 = vector.extract_strided_slice %224 {offsets = [0, 8], sizes = [2, 1], strides = [1, 1]} : vector<2x16xf32> to vector<2x1xf32>
    %276 = vector.extract_strided_slice %196 {offsets = [8, 0], sizes = [1, 64], strides = [1, 1]} : vector<16x64xf32> to vector<1x64xf32>
    %277 = vector.broadcast %275 : vector<2x1xf32> to vector<2x64xf32>
    %278 = vector.broadcast %276 : vector<1x64xf32> to vector<2x64xf32>
    %279 = arith.mulf %277, %278 : vector<2x64xf32>
    %280 = arith.addf %274, %279 : vector<2x64xf32>
    %281 = vector.extract_strided_slice %224 {offsets = [0, 9], sizes = [2, 1], strides = [1, 1]} : vector<2x16xf32> to vector<2x1xf32>
    %282 = vector.extract_strided_slice %196 {offsets = [9, 0], sizes = [1, 64], strides = [1, 1]} : vector<16x64xf32> to vector<1x64xf32>
    %283 = vector.broadcast %281 : vector<2x1xf32> to vector<2x64xf32>
    %284 = vector.broadcast %282 : vector<1x64xf32> to vector<2x64xf32>
    %285 = arith.mulf %283, %284 : vector<2x64xf32>
    %286 = arith.addf %280, %285 : vector<2x64xf32>
    %287 = vector.extract_strided_slice %224 {offsets = [0, 10], sizes = [2, 1], strides = [1, 1]} : vector<2x16xf32> to vector<2x1xf32>
    %288 = vector.extract_strided_slice %196 {offsets = [10, 0], sizes = [1, 64], strides = [1, 1]} : vector<16x64xf32> to vector<1x64xf32>
    %289 = vector.broadcast %287 : vector<2x1xf32> to vector<2x64xf32>
    %290 = vector.broadcast %288 : vector<1x64xf32> to vector<2x64xf32>
    %291 = arith.mulf %289, %290 : vector<2x64xf32>
    %292 = arith.addf %286, %291 : vector<2x64xf32>
    %293 = vector.extract_strided_slice %224 {offsets = [0, 11], sizes = [2, 1], strides = [1, 1]} : vector<2x16xf32> to vector<2x1xf32>
    %294 = vector.extract_strided_slice %196 {offsets = [11, 0], sizes = [1, 64], strides = [1, 1]} : vector<16x64xf32> to vector<1x64xf32>
    %295 = vector.broadcast %293 : vector<2x1xf32> to vector<2x64xf32>
    %296 = vector.broadcast %294 : vector<1x64xf32> to vector<2x64xf32>
    %297 = arith.mulf %295, %296 : vector<2x64xf32>
    %298 = arith.addf %292, %297 : vector<2x64xf32>
    %299 = vector.extract_strided_slice %224 {offsets = [0, 12], sizes = [2, 1], strides = [1, 1]} : vector<2x16xf32> to vector<2x1xf32>
    %300 = vector.extract_strided_slice %196 {offsets = [12, 0], sizes = [1, 64], strides = [1, 1]} : vector<16x64xf32> to vector<1x64xf32>
    %301 = vector.broadcast %299 : vector<2x1xf32> to vector<2x64xf32>
    %302 = vector.broadcast %300 : vector<1x64xf32> to vector<2x64xf32>
    %303 = arith.mulf %301, %302 : vector<2x64xf32>
    %304 = arith.addf %298, %303 : vector<2x64xf32>
    %305 = vector.extract_strided_slice %224 {offsets = [0, 13], sizes = [2, 1], strides = [1, 1]} : vector<2x16xf32> to vector<2x1xf32>
    %306 = vector.extract_strided_slice %196 {offsets = [13, 0], sizes = [1, 64], strides = [1, 1]} : vector<16x64xf32> to vector<1x64xf32>
    %307 = vector.broadcast %305 : vector<2x1xf32> to vector<2x64xf32>
    %308 = vector.broadcast %306 : vector<1x64xf32> to vector<2x64xf32>
    %309 = arith.mulf %307, %308 : vector<2x64xf32>
    %310 = arith.addf %304, %309 : vector<2x64xf32>
    %311 = vector.extract_strided_slice %224 {offsets = [0, 14], sizes = [2, 1], strides = [1, 1]} : vector<2x16xf32> to vector<2x1xf32>
    %312 = vector.extract_strided_slice %196 {offsets = [14, 0], sizes = [1, 64], strides = [1, 1]} : vector<16x64xf32> to vector<1x64xf32>
    %313 = vector.broadcast %311 : vector<2x1xf32> to vector<2x64xf32>
    %314 = vector.broadcast %312 : vector<1x64xf32> to vector<2x64xf32>
    %315 = arith.mulf %313, %314 : vector<2x64xf32>
    %316 = arith.addf %310, %315 : vector<2x64xf32>
    %317 = vector.extract_strided_slice %224 {offsets = [0, 15], sizes = [2, 1], strides = [1, 1]} : vector<2x16xf32> to vector<2x1xf32>
    %318 = vector.extract_strided_slice %196 {offsets = [15, 0], sizes = [1, 64], strides = [1, 1]} : vector<16x64xf32> to vector<1x64xf32>
    %319 = vector.broadcast %317 : vector<2x1xf32> to vector<2x64xf32>
    %320 = vector.broadcast %318 : vector<1x64xf32> to vector<2x64xf32>
    %321 = arith.mulf %319, %320 : vector<2x64xf32>
    %322 = arith.addf %316, %321 : vector<2x64xf32>
    %323 = vector.extract_strided_slice %322 {offsets = [0, 0], sizes = [2, 16], strides = [1, 1]} : vector<2x64xf32> to vector<2x16xf32>
    %324 = arith.negf %323 : vector<2x16xf32>
    %325 = math.exp %324 : vector<2x16xf32>
    %cst_108 = arith.constant 1.000000e+00 : f32
    %326 = vector.broadcast %cst_108 : f32 to vector<2x16xf32>
    %327 = arith.addf %326, %325 : vector<2x16xf32>
    %328 = arith.divf %326, %327 : vector<2x16xf32>
    %329 = vector.extract_strided_slice %322 {offsets = [0, 16], sizes = [2, 16], strides = [1, 1]} : vector<2x64xf32> to vector<2x16xf32>
    %330 = arith.negf %329 : vector<2x16xf32>
    %331 = math.exp %330 : vector<2x16xf32>
    %cst_109 = arith.constant 1.000000e+00 : f32
    %332 = vector.broadcast %cst_109 : f32 to vector<2x16xf32>
    %333 = arith.addf %332, %331 : vector<2x16xf32>
    %334 = arith.divf %332, %333 : vector<2x16xf32>
    %335 = vector.extract_strided_slice %322 {offsets = [0, 32], sizes = [2, 16], strides = [1, 1]} : vector<2x64xf32> to vector<2x16xf32>
    %336 = math.tanh %335 : vector<2x16xf32>
    %337 = vector.extract_strided_slice %322 {offsets = [0, 48], sizes = [2, 16], strides = [1, 1]} : vector<2x64xf32> to vector<2x16xf32>
    %338 = arith.negf %337 : vector<2x16xf32>
    %339 = math.exp %338 : vector<2x16xf32>
    %cst_110 = arith.constant 1.000000e+00 : f32
    %340 = vector.broadcast %cst_110 : f32 to vector<2x16xf32>
    %341 = arith.addf %340, %339 : vector<2x16xf32>
    %342 = arith.divf %340, %341 : vector<2x16xf32>
    %343 = arith.mulf %334, %222 : vector<2x16xf32>
    %344 = arith.mulf %328, %336 : vector<2x16xf32>
    %345 = arith.addf %343, %344 : vector<2x16xf32>
    %346 = math.tanh %345 : vector<2x16xf32>
    %347 = arith.mulf %342, %346 : vector<2x16xf32>
    %348 = vector.extract_strided_slice %195 {offsets = [0, 2, 0], sizes = [2, 1, 64], strides = [1, 1, 1]} : vector<2x8x128xf32> to vector<2x1x64xf32>
    %349 = vector.shape_cast %348 : vector<2x1x64xf32> to vector<2x64xf32>
    %350 = vector.extract_strided_slice %347 {offsets = [0, 0], sizes = [2, 1], strides = [1, 1]} : vector<2x16xf32> to vector<2x1xf32>
    %351 = vector.extract_strided_slice %196 {offsets = [0, 0], sizes = [1, 64], strides = [1, 1]} : vector<16x64xf32> to vector<1x64xf32>
    %352 = vector.broadcast %350 : vector<2x1xf32> to vector<2x64xf32>
    %353 = vector.broadcast %351 : vector<1x64xf32> to vector<2x64xf32>
    %354 = arith.mulf %352, %353 : vector<2x64xf32>
    %355 = arith.addf %349, %354 : vector<2x64xf32>
    %356 = vector.extract_strided_slice %347 {offsets = [0, 1], sizes = [2, 1], strides = [1, 1]} : vector<2x16xf32> to vector<2x1xf32>
    %357 = vector.extract_strided_slice %196 {offsets = [1, 0], sizes = [1, 64], strides = [1, 1]} : vector<16x64xf32> to vector<1x64xf32>
    %358 = vector.broadcast %356 : vector<2x1xf32> to vector<2x64xf32>
    %359 = vector.broadcast %357 : vector<1x64xf32> to vector<2x64xf32>
    %360 = arith.mulf %358, %359 : vector<2x64xf32>
    %361 = arith.addf %355, %360 : vector<2x64xf32>
    %362 = vector.extract_strided_slice %347 {offsets = [0, 2], sizes = [2, 1], strides = [1, 1]} : vector<2x16xf32> to vector<2x1xf32>
    %363 = vector.extract_strided_slice %196 {offsets = [2, 0], sizes = [1, 64], strides = [1, 1]} : vector<16x64xf32> to vector<1x64xf32>
    %364 = vector.broadcast %362 : vector<2x1xf32> to vector<2x64xf32>
    %365 = vector.broadcast %363 : vector<1x64xf32> to vector<2x64xf32>
    %366 = arith.mulf %364, %365 : vector<2x64xf32>
    %367 = arith.addf %361, %366 : vector<2x64xf32>
    %368 = vector.extract_strided_slice %347 {offsets = [0, 3], sizes = [2, 1], strides = [1, 1]} : vector<2x16xf32> to vector<2x1xf32>
    %369 = vector.extract_strided_slice %196 {offsets = [3, 0], sizes = [1, 64], strides = [1, 1]} : vector<16x64xf32> to vector<1x64xf32>
    %370 = vector.broadcast %368 : vector<2x1xf32> to vector<2x64xf32>
    %371 = vector.broadcast %369 : vector<1x64xf32> to vector<2x64xf32>
    %372 = arith.mulf %370, %371 : vector<2x64xf32>
    %373 = arith.addf %367, %372 : vector<2x64xf32>
    %374 = vector.extract_strided_slice %347 {offsets = [0, 4], sizes = [2, 1], strides = [1, 1]} : vector<2x16xf32> to vector<2x1xf32>
    %375 = vector.extract_strided_slice %196 {offsets = [4, 0], sizes = [1, 64], strides = [1, 1]} : vector<16x64xf32> to vector<1x64xf32>
    %376 = vector.broadcast %374 : vector<2x1xf32> to vector<2x64xf32>
    %377 = vector.broadcast %375 : vector<1x64xf32> to vector<2x64xf32>
    %378 = arith.mulf %376, %377 : vector<2x64xf32>
    %379 = arith.addf %373, %378 : vector<2x64xf32>
    %380 = vector.extract_strided_slice %347 {offsets = [0, 5], sizes = [2, 1], strides = [1, 1]} : vector<2x16xf32> to vector<2x1xf32>
    %381 = vector.extract_strided_slice %196 {offsets = [5, 0], sizes = [1, 64], strides = [1, 1]} : vector<16x64xf32> to vector<1x64xf32>
    %382 = vector.broadcast %380 : vector<2x1xf32> to vector<2x64xf32>
    %383 = vector.broadcast %381 : vector<1x64xf32> to vector<2x64xf32>
    %384 = arith.mulf %382, %383 : vector<2x64xf32>
    %385 = arith.addf %379, %384 : vector<2x64xf32>
    %386 = vector.extract_strided_slice %347 {offsets = [0, 6], sizes = [2, 1], strides = [1, 1]} : vector<2x16xf32> to vector<2x1xf32>
    %387 = vector.extract_strided_slice %196 {offsets = [6, 0], sizes = [1, 64], strides = [1, 1]} : vector<16x64xf32> to vector<1x64xf32>
    %388 = vector.broadcast %386 : vector<2x1xf32> to vector<2x64xf32>
    %389 = vector.broadcast %387 : vector<1x64xf32> to vector<2x64xf32>
    %390 = arith.mulf %388, %389 : vector<2x64xf32>
    %391 = arith.addf %385, %390 : vector<2x64xf32>
    %392 = vector.extract_strided_slice %347 {offsets = [0, 7], sizes = [2, 1], strides = [1, 1]} : vector<2x16xf32> to vector<2x1xf32>
    %393 = vector.extract_strided_slice %196 {offsets = [7, 0], sizes = [1, 64], strides = [1, 1]} : vector<16x64xf32> to vector<1x64xf32>
    %394 = vector.broadcast %392 : vector<2x1xf32> to vector<2x64xf32>
    %395 = vector.broadcast %393 : vector<1x64xf32> to vector<2x64xf32>
    %396 = arith.mulf %394, %395 : vector<2x64xf32>
    %397 = arith.addf %391, %396 : vector<2x64xf32>
    %398 = vector.extract_strided_slice %347 {offsets = [0, 8], sizes = [2, 1], strides = [1, 1]} : vector<2x16xf32> to vector<2x1xf32>
    %399 = vector.extract_strided_slice %196 {offsets = [8, 0], sizes = [1, 64], strides = [1, 1]} : vector<16x64xf32> to vector<1x64xf32>
    %400 = vector.broadcast %398 : vector<2x1xf32> to vector<2x64xf32>
    %401 = vector.broadcast %399 : vector<1x64xf32> to vector<2x64xf32>
    %402 = arith.mulf %400, %401 : vector<2x64xf32>
    %403 = arith.addf %397, %402 : vector<2x64xf32>
    %404 = vector.extract_strided_slice %347 {offsets = [0, 9], sizes = [2, 1], strides = [1, 1]} : vector<2x16xf32> to vector<2x1xf32>
    %405 = vector.extract_strided_slice %196 {offsets = [9, 0], sizes = [1, 64], strides = [1, 1]} : vector<16x64xf32> to vector<1x64xf32>
    %406 = vector.broadcast %404 : vector<2x1xf32> to vector<2x64xf32>
    %407 = vector.broadcast %405 : vector<1x64xf32> to vector<2x64xf32>
    %408 = arith.mulf %406, %407 : vector<2x64xf32>
    %409 = arith.addf %403, %408 : vector<2x64xf32>
    %410 = vector.extract_strided_slice %347 {offsets = [0, 10], sizes = [2, 1], strides = [1, 1]} : vector<2x16xf32> to vector<2x1xf32>
    %411 = vector.extract_strided_slice %196 {offsets = [10, 0], sizes = [1, 64], strides = [1, 1]} : vector<16x64xf32> to vector<1x64xf32>
    %412 = vector.broadcast %410 : vector<2x1xf32> to vector<2x64xf32>
    %413 = vector.broadcast %411 : vector<1x64xf32> to vector<2x64xf32>
    %414 = arith.mulf %412, %413 : vector<2x64xf32>
    %415 = arith.addf %409, %414 : vector<2x64xf32>
    %416 = vector.extract_strided_slice %347 {offsets = [0, 11], sizes = [2, 1], strides = [1, 1]} : vector<2x16xf32> to vector<2x1xf32>
    %417 = vector.extract_strided_slice %196 {offsets = [11, 0], sizes = [1, 64], strides = [1, 1]} : vector<16x64xf32> to vector<1x64xf32>
    %418 = vector.broadcast %416 : vector<2x1xf32> to vector<2x64xf32>
    %419 = vector.broadcast %417 : vector<1x64xf32> to vector<2x64xf32>
    %420 = arith.mulf %418, %419 : vector<2x64xf32>
    %421 = arith.addf %415, %420 : vector<2x64xf32>
    %422 = vector.extract_strided_slice %347 {offsets = [0, 12], sizes = [2, 1], strides = [1, 1]} : vector<2x16xf32> to vector<2x1xf32>
    %423 = vector.extract_strided_slice %196 {offsets = [12, 0], sizes = [1, 64], strides = [1, 1]} : vector<16x64xf32> to vector<1x64xf32>
    %424 = vector.broadcast %422 : vector<2x1xf32> to vector<2x64xf32>
    %425 = vector.broadcast %423 : vector<1x64xf32> to vector<2x64xf32>
    %426 = arith.mulf %424, %425 : vector<2x64xf32>
    %427 = arith.addf %421, %426 : vector<2x64xf32>
    %428 = vector.extract_strided_slice %347 {offsets = [0, 13], sizes = [2, 1], strides = [1, 1]} : vector<2x16xf32> to vector<2x1xf32>
    %429 = vector.extract_strided_slice %196 {offsets = [13, 0], sizes = [1, 64], strides = [1, 1]} : vector<16x64xf32> to vector<1x64xf32>
    %430 = vector.broadcast %428 : vector<2x1xf32> to vector<2x64xf32>
    %431 = vector.broadcast %429 : vector<1x64xf32> to vector<2x64xf32>
    %432 = arith.mulf %430, %431 : vector<2x64xf32>
    %433 = arith.addf %427, %432 : vector<2x64xf32>
    %434 = vector.extract_strided_slice %347 {offsets = [0, 14], sizes = [2, 1], strides = [1, 1]} : vector<2x16xf32> to vector<2x1xf32>
    %435 = vector.extract_strided_slice %196 {offsets = [14, 0], sizes = [1, 64], strides = [1, 1]} : vector<16x64xf32> to vector<1x64xf32>
    %436 = vector.broadcast %434 : vector<2x1xf32> to vector<2x64xf32>
    %437 = vector.broadcast %435 : vector<1x64xf32> to vector<2x64xf32>
    %438 = arith.mulf %436, %437 : vector<2x64xf32>
    %439 = arith.addf %433, %438 : vector<2x64xf32>
    %440 = vector.extract_strided_slice %347 {offsets = [0, 15], sizes = [2, 1], strides = [1, 1]} : vector<2x16xf32> to vector<2x1xf32>
    %441 = vector.extract_strided_slice %196 {offsets = [15, 0], sizes = [1, 64], strides = [1, 1]} : vector<16x64xf32> to vector<1x64xf32>
    %442 = vector.broadcast %440 : vector<2x1xf32> to vector<2x64xf32>
    %443 = vector.broadcast %441 : vector<1x64xf32> to vector<2x64xf32>
    %444 = arith.mulf %442, %443 : vector<2x64xf32>
    %445 = arith.addf %439, %444 : vector<2x64xf32>
    %446 = vector.extract_strided_slice %445 {offsets = [0, 0], sizes = [2, 16], strides = [1, 1]} : vector<2x64xf32> to vector<2x16xf32>
    %447 = arith.negf %446 : vector<2x16xf32>
    %448 = math.exp %447 : vector<2x16xf32>
    %cst_111 = arith.constant 1.000000e+00 : f32
    %449 = vector.broadcast %cst_111 : f32 to vector<2x16xf32>
    %450 = arith.addf %449, %448 : vector<2x16xf32>
    %451 = arith.divf %449, %450 : vector<2x16xf32>
    %452 = vector.extract_strided_slice %445 {offsets = [0, 16], sizes = [2, 16], strides = [1, 1]} : vector<2x64xf32> to vector<2x16xf32>
    %453 = arith.negf %452 : vector<2x16xf32>
    %454 = math.exp %453 : vector<2x16xf32>
    %cst_112 = arith.constant 1.000000e+00 : f32
    %455 = vector.broadcast %cst_112 : f32 to vector<2x16xf32>
    %456 = arith.addf %455, %454 : vector<2x16xf32>
    %457 = arith.divf %455, %456 : vector<2x16xf32>
    %458 = vector.extract_strided_slice %445 {offsets = [0, 32], sizes = [2, 16], strides = [1, 1]} : vector<2x64xf32> to vector<2x16xf32>
    %459 = math.tanh %458 : vector<2x16xf32>
    %460 = vector.extract_strided_slice %445 {offsets = [0, 48], sizes = [2, 16], strides = [1, 1]} : vector<2x64xf32> to vector<2x16xf32>
    %461 = arith.negf %460 : vector<2x16xf32>
    %462 = math.exp %461 : vector<2x16xf32>
    %cst_113 = arith.constant 1.000000e+00 : f32
    %463 = vector.broadcast %cst_113 : f32 to vector<2x16xf32>
    %464 = arith.addf %463, %462 : vector<2x16xf32>
    %465 = arith.divf %463, %464 : vector<2x16xf32>
    %466 = arith.mulf %457, %345 : vector<2x16xf32>
    %467 = arith.mulf %451, %459 : vector<2x16xf32>
    %468 = arith.addf %466, %467 : vector<2x16xf32>
    %469 = math.tanh %468 : vector<2x16xf32>
    %470 = arith.mulf %465, %469 : vector<2x16xf32>
    %471 = vector.extract_strided_slice %195 {offsets = [0, 3, 0], sizes = [2, 1, 64], strides = [1, 1, 1]} : vector<2x8x128xf32> to vector<2x1x64xf32>
    %472 = vector.shape_cast %471 : vector<2x1x64xf32> to vector<2x64xf32>
    %473 = vector.extract_strided_slice %470 {offsets = [0, 0], sizes = [2, 1], strides = [1, 1]} : vector<2x16xf32> to vector<2x1xf32>
    %474 = vector.extract_strided_slice %196 {offsets = [0, 0], sizes = [1, 64], strides = [1, 1]} : vector<16x64xf32> to vector<1x64xf32>
    %475 = vector.broadcast %473 : vector<2x1xf32> to vector<2x64xf32>
    %476 = vector.broadcast %474 : vector<1x64xf32> to vector<2x64xf32>
    %477 = arith.mulf %475, %476 : vector<2x64xf32>
    %478 = arith.addf %472, %477 : vector<2x64xf32>
    %479 = vector.extract_strided_slice %470 {offsets = [0, 1], sizes = [2, 1], strides = [1, 1]} : vector<2x16xf32> to vector<2x1xf32>
    %480 = vector.extract_strided_slice %196 {offsets = [1, 0], sizes = [1, 64], strides = [1, 1]} : vector<16x64xf32> to vector<1x64xf32>
    %481 = vector.broadcast %479 : vector<2x1xf32> to vector<2x64xf32>
    %482 = vector.broadcast %480 : vector<1x64xf32> to vector<2x64xf32>
    %483 = arith.mulf %481, %482 : vector<2x64xf32>
    %484 = arith.addf %478, %483 : vector<2x64xf32>
    %485 = vector.extract_strided_slice %470 {offsets = [0, 2], sizes = [2, 1], strides = [1, 1]} : vector<2x16xf32> to vector<2x1xf32>
    %486 = vector.extract_strided_slice %196 {offsets = [2, 0], sizes = [1, 64], strides = [1, 1]} : vector<16x64xf32> to vector<1x64xf32>
    %487 = vector.broadcast %485 : vector<2x1xf32> to vector<2x64xf32>
    %488 = vector.broadcast %486 : vector<1x64xf32> to vector<2x64xf32>
    %489 = arith.mulf %487, %488 : vector<2x64xf32>
    %490 = arith.addf %484, %489 : vector<2x64xf32>
    %491 = vector.extract_strided_slice %470 {offsets = [0, 3], sizes = [2, 1], strides = [1, 1]} : vector<2x16xf32> to vector<2x1xf32>
    %492 = vector.extract_strided_slice %196 {offsets = [3, 0], sizes = [1, 64], strides = [1, 1]} : vector<16x64xf32> to vector<1x64xf32>
    %493 = vector.broadcast %491 : vector<2x1xf32> to vector<2x64xf32>
    %494 = vector.broadcast %492 : vector<1x64xf32> to vector<2x64xf32>
    %495 = arith.mulf %493, %494 : vector<2x64xf32>
    %496 = arith.addf %490, %495 : vector<2x64xf32>
    %497 = vector.extract_strided_slice %470 {offsets = [0, 4], sizes = [2, 1], strides = [1, 1]} : vector<2x16xf32> to vector<2x1xf32>
    %498 = vector.extract_strided_slice %196 {offsets = [4, 0], sizes = [1, 64], strides = [1, 1]} : vector<16x64xf32> to vector<1x64xf32>
    %499 = vector.broadcast %497 : vector<2x1xf32> to vector<2x64xf32>
    %500 = vector.broadcast %498 : vector<1x64xf32> to vector<2x64xf32>
    %501 = arith.mulf %499, %500 : vector<2x64xf32>
    %502 = arith.addf %496, %501 : vector<2x64xf32>
    %503 = vector.extract_strided_slice %470 {offsets = [0, 5], sizes = [2, 1], strides = [1, 1]} : vector<2x16xf32> to vector<2x1xf32>
    %504 = vector.extract_strided_slice %196 {offsets = [5, 0], sizes = [1, 64], strides = [1, 1]} : vector<16x64xf32> to vector<1x64xf32>
    %505 = vector.broadcast %503 : vector<2x1xf32> to vector<2x64xf32>
    %506 = vector.broadcast %504 : vector<1x64xf32> to vector<2x64xf32>
    %507 = arith.mulf %505, %506 : vector<2x64xf32>
    %508 = arith.addf %502, %507 : vector<2x64xf32>
    %509 = vector.extract_strided_slice %470 {offsets = [0, 6], sizes = [2, 1], strides = [1, 1]} : vector<2x16xf32> to vector<2x1xf32>
    %510 = vector.extract_strided_slice %196 {offsets = [6, 0], sizes = [1, 64], strides = [1, 1]} : vector<16x64xf32> to vector<1x64xf32>
    %511 = vector.broadcast %509 : vector<2x1xf32> to vector<2x64xf32>
    %512 = vector.broadcast %510 : vector<1x64xf32> to vector<2x64xf32>
    %513 = arith.mulf %511, %512 : vector<2x64xf32>
    %514 = arith.addf %508, %513 : vector<2x64xf32>
    %515 = vector.extract_strided_slice %470 {offsets = [0, 7], sizes = [2, 1], strides = [1, 1]} : vector<2x16xf32> to vector<2x1xf32>
    %516 = vector.extract_strided_slice %196 {offsets = [7, 0], sizes = [1, 64], strides = [1, 1]} : vector<16x64xf32> to vector<1x64xf32>
    %517 = vector.broadcast %515 : vector<2x1xf32> to vector<2x64xf32>
    %518 = vector.broadcast %516 : vector<1x64xf32> to vector<2x64xf32>
    %519 = arith.mulf %517, %518 : vector<2x64xf32>
    %520 = arith.addf %514, %519 : vector<2x64xf32>
    %521 = vector.extract_strided_slice %470 {offsets = [0, 8], sizes = [2, 1], strides = [1, 1]} : vector<2x16xf32> to vector<2x1xf32>
    %522 = vector.extract_strided_slice %196 {offsets = [8, 0], sizes = [1, 64], strides = [1, 1]} : vector<16x64xf32> to vector<1x64xf32>
    %523 = vector.broadcast %521 : vector<2x1xf32> to vector<2x64xf32>
    %524 = vector.broadcast %522 : vector<1x64xf32> to vector<2x64xf32>
    %525 = arith.mulf %523, %524 : vector<2x64xf32>
    %526 = arith.addf %520, %525 : vector<2x64xf32>
    %527 = vector.extract_strided_slice %470 {offsets = [0, 9], sizes = [2, 1], strides = [1, 1]} : vector<2x16xf32> to vector<2x1xf32>
    %528 = vector.extract_strided_slice %196 {offsets = [9, 0], sizes = [1, 64], strides = [1, 1]} : vector<16x64xf32> to vector<1x64xf32>
    %529 = vector.broadcast %527 : vector<2x1xf32> to vector<2x64xf32>
    %530 = vector.broadcast %528 : vector<1x64xf32> to vector<2x64xf32>
    %531 = arith.mulf %529, %530 : vector<2x64xf32>
    %532 = arith.addf %526, %531 : vector<2x64xf32>
    %533 = vector.extract_strided_slice %470 {offsets = [0, 10], sizes = [2, 1], strides = [1, 1]} : vector<2x16xf32> to vector<2x1xf32>
    %534 = vector.extract_strided_slice %196 {offsets = [10, 0], sizes = [1, 64], strides = [1, 1]} : vector<16x64xf32> to vector<1x64xf32>
    %535 = vector.broadcast %533 : vector<2x1xf32> to vector<2x64xf32>
    %536 = vector.broadcast %534 : vector<1x64xf32> to vector<2x64xf32>
    %537 = arith.mulf %535, %536 : vector<2x64xf32>
    %538 = arith.addf %532, %537 : vector<2x64xf32>
    %539 = vector.extract_strided_slice %470 {offsets = [0, 11], sizes = [2, 1], strides = [1, 1]} : vector<2x16xf32> to vector<2x1xf32>
    %540 = vector.extract_strided_slice %196 {offsets = [11, 0], sizes = [1, 64], strides = [1, 1]} : vector<16x64xf32> to vector<1x64xf32>
    %541 = vector.broadcast %539 : vector<2x1xf32> to vector<2x64xf32>
    %542 = vector.broadcast %540 : vector<1x64xf32> to vector<2x64xf32>
    %543 = arith.mulf %541, %542 : vector<2x64xf32>
    %544 = arith.addf %538, %543 : vector<2x64xf32>
    %545 = vector.extract_strided_slice %470 {offsets = [0, 12], sizes = [2, 1], strides = [1, 1]} : vector<2x16xf32> to vector<2x1xf32>
    %546 = vector.extract_strided_slice %196 {offsets = [12, 0], sizes = [1, 64], strides = [1, 1]} : vector<16x64xf32> to vector<1x64xf32>
    %547 = vector.broadcast %545 : vector<2x1xf32> to vector<2x64xf32>
    %548 = vector.broadcast %546 : vector<1x64xf32> to vector<2x64xf32>
    %549 = arith.mulf %547, %548 : vector<2x64xf32>
    %550 = arith.addf %544, %549 : vector<2x64xf32>
    %551 = vector.extract_strided_slice %470 {offsets = [0, 13], sizes = [2, 1], strides = [1, 1]} : vector<2x16xf32> to vector<2x1xf32>
    %552 = vector.extract_strided_slice %196 {offsets = [13, 0], sizes = [1, 64], strides = [1, 1]} : vector<16x64xf32> to vector<1x64xf32>
    %553 = vector.broadcast %551 : vector<2x1xf32> to vector<2x64xf32>
    %554 = vector.broadcast %552 : vector<1x64xf32> to vector<2x64xf32>
    %555 = arith.mulf %553, %554 : vector<2x64xf32>
    %556 = arith.addf %550, %555 : vector<2x64xf32>
    %557 = vector.extract_strided_slice %470 {offsets = [0, 14], sizes = [2, 1], strides = [1, 1]} : vector<2x16xf32> to vector<2x1xf32>
    %558 = vector.extract_strided_slice %196 {offsets = [14, 0], sizes = [1, 64], strides = [1, 1]} : vector<16x64xf32> to vector<1x64xf32>
    %559 = vector.broadcast %557 : vector<2x1xf32> to vector<2x64xf32>
    %560 = vector.broadcast %558 : vector<1x64xf32> to vector<2x64xf32>
    %561 = arith.mulf %559, %560 : vector<2x64xf32>
    %562 = arith.addf %556, %561 : vector<2x64xf32>
    %563 = vector.extract_strided_slice %470 {offsets = [0, 15], sizes = [2, 1], strides = [1, 1]} : vector<2x16xf32> to vector<2x1xf32>
    %564 = vector.extract_strided_slice %196 {offsets = [15, 0], sizes = [1, 64], strides = [1, 1]} : vector<16x64xf32> to vector<1x64xf32>
    %565 = vector.broadcast %563 : vector<2x1xf32> to vector<2x64xf32>
    %566 = vector.broadcast %564 : vector<1x64xf32> to vector<2x64xf32>
    %567 = arith.mulf %565, %566 : vector<2x64xf32>
    %568 = arith.addf %562, %567 : vector<2x64xf32>
    %569 = vector.extract_strided_slice %568 {offsets = [0, 0], sizes = [2, 16], strides = [1, 1]} : vector<2x64xf32> to vector<2x16xf32>
    %570 = arith.negf %569 : vector<2x16xf32>
    %571 = math.exp %570 : vector<2x16xf32>
    %cst_114 = arith.constant 1.000000e+00 : f32
    %572 = vector.broadcast %cst_114 : f32 to vector<2x16xf32>
    %573 = arith.addf %572, %571 : vector<2x16xf32>
    %574 = arith.divf %572, %573 : vector<2x16xf32>
    %575 = vector.extract_strided_slice %568 {offsets = [0, 16], sizes = [2, 16], strides = [1, 1]} : vector<2x64xf32> to vector<2x16xf32>
    %576 = arith.negf %575 : vector<2x16xf32>
    %577 = math.exp %576 : vector<2x16xf32>
    %cst_115 = arith.constant 1.000000e+00 : f32
    %578 = vector.broadcast %cst_115 : f32 to vector<2x16xf32>
    %579 = arith.addf %578, %577 : vector<2x16xf32>
    %580 = arith.divf %578, %579 : vector<2x16xf32>
    %581 = vector.extract_strided_slice %568 {offsets = [0, 32], sizes = [2, 16], strides = [1, 1]} : vector<2x64xf32> to vector<2x16xf32>
    %582 = math.tanh %581 : vector<2x16xf32>
    %583 = vector.extract_strided_slice %568 {offsets = [0, 48], sizes = [2, 16], strides = [1, 1]} : vector<2x64xf32> to vector<2x16xf32>
    %584 = arith.negf %583 : vector<2x16xf32>
    %585 = math.exp %584 : vector<2x16xf32>
    %cst_116 = arith.constant 1.000000e+00 : f32
    %586 = vector.broadcast %cst_116 : f32 to vector<2x16xf32>
    %587 = arith.addf %586, %585 : vector<2x16xf32>
    %588 = arith.divf %586, %587 : vector<2x16xf32>
    %589 = arith.mulf %580, %468 : vector<2x16xf32>
    %590 = arith.mulf %574, %582 : vector<2x16xf32>
    %591 = arith.addf %589, %590 : vector<2x16xf32>
    %592 = math.tanh %591 : vector<2x16xf32>
    %593 = arith.mulf %588, %592 : vector<2x16xf32>
    %594 = vector.extract_strided_slice %195 {offsets = [0, 4, 0], sizes = [2, 1, 64], strides = [1, 1, 1]} : vector<2x8x128xf32> to vector<2x1x64xf32>
    %595 = vector.shape_cast %594 : vector<2x1x64xf32> to vector<2x64xf32>
    %596 = vector.extract_strided_slice %593 {offsets = [0, 0], sizes = [2, 1], strides = [1, 1]} : vector<2x16xf32> to vector<2x1xf32>
    %597 = vector.extract_strided_slice %196 {offsets = [0, 0], sizes = [1, 64], strides = [1, 1]} : vector<16x64xf32> to vector<1x64xf32>
    %598 = vector.broadcast %596 : vector<2x1xf32> to vector<2x64xf32>
    %599 = vector.broadcast %597 : vector<1x64xf32> to vector<2x64xf32>
    %600 = arith.mulf %598, %599 : vector<2x64xf32>
    %601 = arith.addf %595, %600 : vector<2x64xf32>
    %602 = vector.extract_strided_slice %593 {offsets = [0, 1], sizes = [2, 1], strides = [1, 1]} : vector<2x16xf32> to vector<2x1xf32>
    %603 = vector.extract_strided_slice %196 {offsets = [1, 0], sizes = [1, 64], strides = [1, 1]} : vector<16x64xf32> to vector<1x64xf32>
    %604 = vector.broadcast %602 : vector<2x1xf32> to vector<2x64xf32>
    %605 = vector.broadcast %603 : vector<1x64xf32> to vector<2x64xf32>
    %606 = arith.mulf %604, %605 : vector<2x64xf32>
    %607 = arith.addf %601, %606 : vector<2x64xf32>
    %608 = vector.extract_strided_slice %593 {offsets = [0, 2], sizes = [2, 1], strides = [1, 1]} : vector<2x16xf32> to vector<2x1xf32>
    %609 = vector.extract_strided_slice %196 {offsets = [2, 0], sizes = [1, 64], strides = [1, 1]} : vector<16x64xf32> to vector<1x64xf32>
    %610 = vector.broadcast %608 : vector<2x1xf32> to vector<2x64xf32>
    %611 = vector.broadcast %609 : vector<1x64xf32> to vector<2x64xf32>
    %612 = arith.mulf %610, %611 : vector<2x64xf32>
    %613 = arith.addf %607, %612 : vector<2x64xf32>
    %614 = vector.extract_strided_slice %593 {offsets = [0, 3], sizes = [2, 1], strides = [1, 1]} : vector<2x16xf32> to vector<2x1xf32>
    %615 = vector.extract_strided_slice %196 {offsets = [3, 0], sizes = [1, 64], strides = [1, 1]} : vector<16x64xf32> to vector<1x64xf32>
    %616 = vector.broadcast %614 : vector<2x1xf32> to vector<2x64xf32>
    %617 = vector.broadcast %615 : vector<1x64xf32> to vector<2x64xf32>
    %618 = arith.mulf %616, %617 : vector<2x64xf32>
    %619 = arith.addf %613, %618 : vector<2x64xf32>
    %620 = vector.extract_strided_slice %593 {offsets = [0, 4], sizes = [2, 1], strides = [1, 1]} : vector<2x16xf32> to vector<2x1xf32>
    %621 = vector.extract_strided_slice %196 {offsets = [4, 0], sizes = [1, 64], strides = [1, 1]} : vector<16x64xf32> to vector<1x64xf32>
    %622 = vector.broadcast %620 : vector<2x1xf32> to vector<2x64xf32>
    %623 = vector.broadcast %621 : vector<1x64xf32> to vector<2x64xf32>
    %624 = arith.mulf %622, %623 : vector<2x64xf32>
    %625 = arith.addf %619, %624 : vector<2x64xf32>
    %626 = vector.extract_strided_slice %593 {offsets = [0, 5], sizes = [2, 1], strides = [1, 1]} : vector<2x16xf32> to vector<2x1xf32>
    %627 = vector.extract_strided_slice %196 {offsets = [5, 0], sizes = [1, 64], strides = [1, 1]} : vector<16x64xf32> to vector<1x64xf32>
    %628 = vector.broadcast %626 : vector<2x1xf32> to vector<2x64xf32>
    %629 = vector.broadcast %627 : vector<1x64xf32> to vector<2x64xf32>
    %630 = arith.mulf %628, %629 : vector<2x64xf32>
    %631 = arith.addf %625, %630 : vector<2x64xf32>
    %632 = vector.extract_strided_slice %593 {offsets = [0, 6], sizes = [2, 1], strides = [1, 1]} : vector<2x16xf32> to vector<2x1xf32>
    %633 = vector.extract_strided_slice %196 {offsets = [6, 0], sizes = [1, 64], strides = [1, 1]} : vector<16x64xf32> to vector<1x64xf32>
    %634 = vector.broadcast %632 : vector<2x1xf32> to vector<2x64xf32>
    %635 = vector.broadcast %633 : vector<1x64xf32> to vector<2x64xf32>
    %636 = arith.mulf %634, %635 : vector<2x64xf32>
    %637 = arith.addf %631, %636 : vector<2x64xf32>
    %638 = vector.extract_strided_slice %593 {offsets = [0, 7], sizes = [2, 1], strides = [1, 1]} : vector<2x16xf32> to vector<2x1xf32>
    %639 = vector.extract_strided_slice %196 {offsets = [7, 0], sizes = [1, 64], strides = [1, 1]} : vector<16x64xf32> to vector<1x64xf32>
    %640 = vector.broadcast %638 : vector<2x1xf32> to vector<2x64xf32>
    %641 = vector.broadcast %639 : vector<1x64xf32> to vector<2x64xf32>
    %642 = arith.mulf %640, %641 : vector<2x64xf32>
    %643 = arith.addf %637, %642 : vector<2x64xf32>
    %644 = vector.extract_strided_slice %593 {offsets = [0, 8], sizes = [2, 1], strides = [1, 1]} : vector<2x16xf32> to vector<2x1xf32>
    %645 = vector.extract_strided_slice %196 {offsets = [8, 0], sizes = [1, 64], strides = [1, 1]} : vector<16x64xf32> to vector<1x64xf32>
    %646 = vector.broadcast %644 : vector<2x1xf32> to vector<2x64xf32>
    %647 = vector.broadcast %645 : vector<1x64xf32> to vector<2x64xf32>
    %648 = arith.mulf %646, %647 : vector<2x64xf32>
    %649 = arith.addf %643, %648 : vector<2x64xf32>
    %650 = vector.extract_strided_slice %593 {offsets = [0, 9], sizes = [2, 1], strides = [1, 1]} : vector<2x16xf32> to vector<2x1xf32>
    %651 = vector.extract_strided_slice %196 {offsets = [9, 0], sizes = [1, 64], strides = [1, 1]} : vector<16x64xf32> to vector<1x64xf32>
    %652 = vector.broadcast %650 : vector<2x1xf32> to vector<2x64xf32>
    %653 = vector.broadcast %651 : vector<1x64xf32> to vector<2x64xf32>
    %654 = arith.mulf %652, %653 : vector<2x64xf32>
    %655 = arith.addf %649, %654 : vector<2x64xf32>
    %656 = vector.extract_strided_slice %593 {offsets = [0, 10], sizes = [2, 1], strides = [1, 1]} : vector<2x16xf32> to vector<2x1xf32>
    %657 = vector.extract_strided_slice %196 {offsets = [10, 0], sizes = [1, 64], strides = [1, 1]} : vector<16x64xf32> to vector<1x64xf32>
    %658 = vector.broadcast %656 : vector<2x1xf32> to vector<2x64xf32>
    %659 = vector.broadcast %657 : vector<1x64xf32> to vector<2x64xf32>
    %660 = arith.mulf %658, %659 : vector<2x64xf32>
    %661 = arith.addf %655, %660 : vector<2x64xf32>
    %662 = vector.extract_strided_slice %593 {offsets = [0, 11], sizes = [2, 1], strides = [1, 1]} : vector<2x16xf32> to vector<2x1xf32>
    %663 = vector.extract_strided_slice %196 {offsets = [11, 0], sizes = [1, 64], strides = [1, 1]} : vector<16x64xf32> to vector<1x64xf32>
    %664 = vector.broadcast %662 : vector<2x1xf32> to vector<2x64xf32>
    %665 = vector.broadcast %663 : vector<1x64xf32> to vector<2x64xf32>
    %666 = arith.mulf %664, %665 : vector<2x64xf32>
    %667 = arith.addf %661, %666 : vector<2x64xf32>
    %668 = vector.extract_strided_slice %593 {offsets = [0, 12], sizes = [2, 1], strides = [1, 1]} : vector<2x16xf32> to vector<2x1xf32>
    %669 = vector.extract_strided_slice %196 {offsets = [12, 0], sizes = [1, 64], strides = [1, 1]} : vector<16x64xf32> to vector<1x64xf32>
    %670 = vector.broadcast %668 : vector<2x1xf32> to vector<2x64xf32>
    %671 = vector.broadcast %669 : vector<1x64xf32> to vector<2x64xf32>
    %672 = arith.mulf %670, %671 : vector<2x64xf32>
    %673 = arith.addf %667, %672 : vector<2x64xf32>
    %674 = vector.extract_strided_slice %593 {offsets = [0, 13], sizes = [2, 1], strides = [1, 1]} : vector<2x16xf32> to vector<2x1xf32>
    %675 = vector.extract_strided_slice %196 {offsets = [13, 0], sizes = [1, 64], strides = [1, 1]} : vector<16x64xf32> to vector<1x64xf32>
    %676 = vector.broadcast %674 : vector<2x1xf32> to vector<2x64xf32>
    %677 = vector.broadcast %675 : vector<1x64xf32> to vector<2x64xf32>
    %678 = arith.mulf %676, %677 : vector<2x64xf32>
    %679 = arith.addf %673, %678 : vector<2x64xf32>
    %680 = vector.extract_strided_slice %593 {offsets = [0, 14], sizes = [2, 1], strides = [1, 1]} : vector<2x16xf32> to vector<2x1xf32>
    %681 = vector.extract_strided_slice %196 {offsets = [14, 0], sizes = [1, 64], strides = [1, 1]} : vector<16x64xf32> to vector<1x64xf32>
    %682 = vector.broadcast %680 : vector<2x1xf32> to vector<2x64xf32>
    %683 = vector.broadcast %681 : vector<1x64xf32> to vector<2x64xf32>
    %684 = arith.mulf %682, %683 : vector<2x64xf32>
    %685 = arith.addf %679, %684 : vector<2x64xf32>
    %686 = vector.extract_strided_slice %593 {offsets = [0, 15], sizes = [2, 1], strides = [1, 1]} : vector<2x16xf32> to vector<2x1xf32>
    %687 = vector.extract_strided_slice %196 {offsets = [15, 0], sizes = [1, 64], strides = [1, 1]} : vector<16x64xf32> to vector<1x64xf32>
    %688 = vector.broadcast %686 : vector<2x1xf32> to vector<2x64xf32>
    %689 = vector.broadcast %687 : vector<1x64xf32> to vector<2x64xf32>
    %690 = arith.mulf %688, %689 : vector<2x64xf32>
    %691 = arith.addf %685, %690 : vector<2x64xf32>
    %692 = vector.extract_strided_slice %691 {offsets = [0, 0], sizes = [2, 16], strides = [1, 1]} : vector<2x64xf32> to vector<2x16xf32>
    %693 = arith.negf %692 : vector<2x16xf32>
    %694 = math.exp %693 : vector<2x16xf32>
    %cst_117 = arith.constant 1.000000e+00 : f32
    %695 = vector.broadcast %cst_117 : f32 to vector<2x16xf32>
    %696 = arith.addf %695, %694 : vector<2x16xf32>
    %697 = arith.divf %695, %696 : vector<2x16xf32>
    %698 = vector.extract_strided_slice %691 {offsets = [0, 16], sizes = [2, 16], strides = [1, 1]} : vector<2x64xf32> to vector<2x16xf32>
    %699 = arith.negf %698 : vector<2x16xf32>
    %700 = math.exp %699 : vector<2x16xf32>
    %cst_118 = arith.constant 1.000000e+00 : f32
    %701 = vector.broadcast %cst_118 : f32 to vector<2x16xf32>
    %702 = arith.addf %701, %700 : vector<2x16xf32>
    %703 = arith.divf %701, %702 : vector<2x16xf32>
    %704 = vector.extract_strided_slice %691 {offsets = [0, 32], sizes = [2, 16], strides = [1, 1]} : vector<2x64xf32> to vector<2x16xf32>
    %705 = math.tanh %704 : vector<2x16xf32>
    %706 = vector.extract_strided_slice %691 {offsets = [0, 48], sizes = [2, 16], strides = [1, 1]} : vector<2x64xf32> to vector<2x16xf32>
    %707 = arith.negf %706 : vector<2x16xf32>
    %708 = math.exp %707 : vector<2x16xf32>
    %cst_119 = arith.constant 1.000000e+00 : f32
    %709 = vector.broadcast %cst_119 : f32 to vector<2x16xf32>
    %710 = arith.addf %709, %708 : vector<2x16xf32>
    %711 = arith.divf %709, %710 : vector<2x16xf32>
    %712 = arith.mulf %703, %591 : vector<2x16xf32>
    %713 = arith.mulf %697, %705 : vector<2x16xf32>
    %714 = arith.addf %712, %713 : vector<2x16xf32>
    %715 = math.tanh %714 : vector<2x16xf32>
    %716 = arith.mulf %711, %715 : vector<2x16xf32>
    %717 = vector.extract_strided_slice %195 {offsets = [0, 5, 0], sizes = [2, 1, 64], strides = [1, 1, 1]} : vector<2x8x128xf32> to vector<2x1x64xf32>
    %718 = vector.shape_cast %717 : vector<2x1x64xf32> to vector<2x64xf32>
    %719 = vector.extract_strided_slice %716 {offsets = [0, 0], sizes = [2, 1], strides = [1, 1]} : vector<2x16xf32> to vector<2x1xf32>
    %720 = vector.extract_strided_slice %196 {offsets = [0, 0], sizes = [1, 64], strides = [1, 1]} : vector<16x64xf32> to vector<1x64xf32>
    %721 = vector.broadcast %719 : vector<2x1xf32> to vector<2x64xf32>
    %722 = vector.broadcast %720 : vector<1x64xf32> to vector<2x64xf32>
    %723 = arith.mulf %721, %722 : vector<2x64xf32>
    %724 = arith.addf %718, %723 : vector<2x64xf32>
    %725 = vector.extract_strided_slice %716 {offsets = [0, 1], sizes = [2, 1], strides = [1, 1]} : vector<2x16xf32> to vector<2x1xf32>
    %726 = vector.extract_strided_slice %196 {offsets = [1, 0], sizes = [1, 64], strides = [1, 1]} : vector<16x64xf32> to vector<1x64xf32>
    %727 = vector.broadcast %725 : vector<2x1xf32> to vector<2x64xf32>
    %728 = vector.broadcast %726 : vector<1x64xf32> to vector<2x64xf32>
    %729 = arith.mulf %727, %728 : vector<2x64xf32>
    %730 = arith.addf %724, %729 : vector<2x64xf32>
    %731 = vector.extract_strided_slice %716 {offsets = [0, 2], sizes = [2, 1], strides = [1, 1]} : vector<2x16xf32> to vector<2x1xf32>
    %732 = vector.extract_strided_slice %196 {offsets = [2, 0], sizes = [1, 64], strides = [1, 1]} : vector<16x64xf32> to vector<1x64xf32>
    %733 = vector.broadcast %731 : vector<2x1xf32> to vector<2x64xf32>
    %734 = vector.broadcast %732 : vector<1x64xf32> to vector<2x64xf32>
    %735 = arith.mulf %733, %734 : vector<2x64xf32>
    %736 = arith.addf %730, %735 : vector<2x64xf32>
    %737 = vector.extract_strided_slice %716 {offsets = [0, 3], sizes = [2, 1], strides = [1, 1]} : vector<2x16xf32> to vector<2x1xf32>
    %738 = vector.extract_strided_slice %196 {offsets = [3, 0], sizes = [1, 64], strides = [1, 1]} : vector<16x64xf32> to vector<1x64xf32>
    %739 = vector.broadcast %737 : vector<2x1xf32> to vector<2x64xf32>
    %740 = vector.broadcast %738 : vector<1x64xf32> to vector<2x64xf32>
    %741 = arith.mulf %739, %740 : vector<2x64xf32>
    %742 = arith.addf %736, %741 : vector<2x64xf32>
    %743 = vector.extract_strided_slice %716 {offsets = [0, 4], sizes = [2, 1], strides = [1, 1]} : vector<2x16xf32> to vector<2x1xf32>
    %744 = vector.extract_strided_slice %196 {offsets = [4, 0], sizes = [1, 64], strides = [1, 1]} : vector<16x64xf32> to vector<1x64xf32>
    %745 = vector.broadcast %743 : vector<2x1xf32> to vector<2x64xf32>
    %746 = vector.broadcast %744 : vector<1x64xf32> to vector<2x64xf32>
    %747 = arith.mulf %745, %746 : vector<2x64xf32>
    %748 = arith.addf %742, %747 : vector<2x64xf32>
    %749 = vector.extract_strided_slice %716 {offsets = [0, 5], sizes = [2, 1], strides = [1, 1]} : vector<2x16xf32> to vector<2x1xf32>
    %750 = vector.extract_strided_slice %196 {offsets = [5, 0], sizes = [1, 64], strides = [1, 1]} : vector<16x64xf32> to vector<1x64xf32>
    %751 = vector.broadcast %749 : vector<2x1xf32> to vector<2x64xf32>
    %752 = vector.broadcast %750 : vector<1x64xf32> to vector<2x64xf32>
    %753 = arith.mulf %751, %752 : vector<2x64xf32>
    %754 = arith.addf %748, %753 : vector<2x64xf32>
    %755 = vector.extract_strided_slice %716 {offsets = [0, 6], sizes = [2, 1], strides = [1, 1]} : vector<2x16xf32> to vector<2x1xf32>
    %756 = vector.extract_strided_slice %196 {offsets = [6, 0], sizes = [1, 64], strides = [1, 1]} : vector<16x64xf32> to vector<1x64xf32>
    %757 = vector.broadcast %755 : vector<2x1xf32> to vector<2x64xf32>
    %758 = vector.broadcast %756 : vector<1x64xf32> to vector<2x64xf32>
    %759 = arith.mulf %757, %758 : vector<2x64xf32>
    %760 = arith.addf %754, %759 : vector<2x64xf32>
    %761 = vector.extract_strided_slice %716 {offsets = [0, 7], sizes = [2, 1], strides = [1, 1]} : vector<2x16xf32> to vector<2x1xf32>
    %762 = vector.extract_strided_slice %196 {offsets = [7, 0], sizes = [1, 64], strides = [1, 1]} : vector<16x64xf32> to vector<1x64xf32>
    %763 = vector.broadcast %761 : vector<2x1xf32> to vector<2x64xf32>
    %764 = vector.broadcast %762 : vector<1x64xf32> to vector<2x64xf32>
    %765 = arith.mulf %763, %764 : vector<2x64xf32>
    %766 = arith.addf %760, %765 : vector<2x64xf32>
    %767 = vector.extract_strided_slice %716 {offsets = [0, 8], sizes = [2, 1], strides = [1, 1]} : vector<2x16xf32> to vector<2x1xf32>
    %768 = vector.extract_strided_slice %196 {offsets = [8, 0], sizes = [1, 64], strides = [1, 1]} : vector<16x64xf32> to vector<1x64xf32>
    %769 = vector.broadcast %767 : vector<2x1xf32> to vector<2x64xf32>
    %770 = vector.broadcast %768 : vector<1x64xf32> to vector<2x64xf32>
    %771 = arith.mulf %769, %770 : vector<2x64xf32>
    %772 = arith.addf %766, %771 : vector<2x64xf32>
    %773 = vector.extract_strided_slice %716 {offsets = [0, 9], sizes = [2, 1], strides = [1, 1]} : vector<2x16xf32> to vector<2x1xf32>
    %774 = vector.extract_strided_slice %196 {offsets = [9, 0], sizes = [1, 64], strides = [1, 1]} : vector<16x64xf32> to vector<1x64xf32>
    %775 = vector.broadcast %773 : vector<2x1xf32> to vector<2x64xf32>
    %776 = vector.broadcast %774 : vector<1x64xf32> to vector<2x64xf32>
    %777 = arith.mulf %775, %776 : vector<2x64xf32>
    %778 = arith.addf %772, %777 : vector<2x64xf32>
    %779 = vector.extract_strided_slice %716 {offsets = [0, 10], sizes = [2, 1], strides = [1, 1]} : vector<2x16xf32> to vector<2x1xf32>
    %780 = vector.extract_strided_slice %196 {offsets = [10, 0], sizes = [1, 64], strides = [1, 1]} : vector<16x64xf32> to vector<1x64xf32>
    %781 = vector.broadcast %779 : vector<2x1xf32> to vector<2x64xf32>
    %782 = vector.broadcast %780 : vector<1x64xf32> to vector<2x64xf32>
    %783 = arith.mulf %781, %782 : vector<2x64xf32>
    %784 = arith.addf %778, %783 : vector<2x64xf32>
    %785 = vector.extract_strided_slice %716 {offsets = [0, 11], sizes = [2, 1], strides = [1, 1]} : vector<2x16xf32> to vector<2x1xf32>
    %786 = vector.extract_strided_slice %196 {offsets = [11, 0], sizes = [1, 64], strides = [1, 1]} : vector<16x64xf32> to vector<1x64xf32>
    %787 = vector.broadcast %785 : vector<2x1xf32> to vector<2x64xf32>
    %788 = vector.broadcast %786 : vector<1x64xf32> to vector<2x64xf32>
    %789 = arith.mulf %787, %788 : vector<2x64xf32>
    %790 = arith.addf %784, %789 : vector<2x64xf32>
    %791 = vector.extract_strided_slice %716 {offsets = [0, 12], sizes = [2, 1], strides = [1, 1]} : vector<2x16xf32> to vector<2x1xf32>
    %792 = vector.extract_strided_slice %196 {offsets = [12, 0], sizes = [1, 64], strides = [1, 1]} : vector<16x64xf32> to vector<1x64xf32>
    %793 = vector.broadcast %791 : vector<2x1xf32> to vector<2x64xf32>
    %794 = vector.broadcast %792 : vector<1x64xf32> to vector<2x64xf32>
    %795 = arith.mulf %793, %794 : vector<2x64xf32>
    %796 = arith.addf %790, %795 : vector<2x64xf32>
    %797 = vector.extract_strided_slice %716 {offsets = [0, 13], sizes = [2, 1], strides = [1, 1]} : vector<2x16xf32> to vector<2x1xf32>
    %798 = vector.extract_strided_slice %196 {offsets = [13, 0], sizes = [1, 64], strides = [1, 1]} : vector<16x64xf32> to vector<1x64xf32>
    %799 = vector.broadcast %797 : vector<2x1xf32> to vector<2x64xf32>
    %800 = vector.broadcast %798 : vector<1x64xf32> to vector<2x64xf32>
    %801 = arith.mulf %799, %800 : vector<2x64xf32>
    %802 = arith.addf %796, %801 : vector<2x64xf32>
    %803 = vector.extract_strided_slice %716 {offsets = [0, 14], sizes = [2, 1], strides = [1, 1]} : vector<2x16xf32> to vector<2x1xf32>
    %804 = vector.extract_strided_slice %196 {offsets = [14, 0], sizes = [1, 64], strides = [1, 1]} : vector<16x64xf32> to vector<1x64xf32>
    %805 = vector.broadcast %803 : vector<2x1xf32> to vector<2x64xf32>
    %806 = vector.broadcast %804 : vector<1x64xf32> to vector<2x64xf32>
    %807 = arith.mulf %805, %806 : vector<2x64xf32>
    %808 = arith.addf %802, %807 : vector<2x64xf32>
    %809 = vector.extract_strided_slice %716 {offsets = [0, 15], sizes = [2, 1], strides = [1, 1]} : vector<2x16xf32> to vector<2x1xf32>
    %810 = vector.extract_strided_slice %196 {offsets = [15, 0], sizes = [1, 64], strides = [1, 1]} : vector<16x64xf32> to vector<1x64xf32>
    %811 = vector.broadcast %809 : vector<2x1xf32> to vector<2x64xf32>
    %812 = vector.broadcast %810 : vector<1x64xf32> to vector<2x64xf32>
    %813 = arith.mulf %811, %812 : vector<2x64xf32>
    %814 = arith.addf %808, %813 : vector<2x64xf32>
    %815 = vector.extract_strided_slice %814 {offsets = [0, 0], sizes = [2, 16], strides = [1, 1]} : vector<2x64xf32> to vector<2x16xf32>
    %816 = arith.negf %815 : vector<2x16xf32>
    %817 = math.exp %816 : vector<2x16xf32>
    %cst_120 = arith.constant 1.000000e+00 : f32
    %818 = vector.broadcast %cst_120 : f32 to vector<2x16xf32>
    %819 = arith.addf %818, %817 : vector<2x16xf32>
    %820 = arith.divf %818, %819 : vector<2x16xf32>
    %821 = vector.extract_strided_slice %814 {offsets = [0, 16], sizes = [2, 16], strides = [1, 1]} : vector<2x64xf32> to vector<2x16xf32>
    %822 = arith.negf %821 : vector<2x16xf32>
    %823 = math.exp %822 : vector<2x16xf32>
    %cst_121 = arith.constant 1.000000e+00 : f32
    %824 = vector.broadcast %cst_121 : f32 to vector<2x16xf32>
    %825 = arith.addf %824, %823 : vector<2x16xf32>
    %826 = arith.divf %824, %825 : vector<2x16xf32>
    %827 = vector.extract_strided_slice %814 {offsets = [0, 32], sizes = [2, 16], strides = [1, 1]} : vector<2x64xf32> to vector<2x16xf32>
    %828 = math.tanh %827 : vector<2x16xf32>
    %829 = vector.extract_strided_slice %814 {offsets = [0, 48], sizes = [2, 16], strides = [1, 1]} : vector<2x64xf32> to vector<2x16xf32>
    %830 = arith.negf %829 : vector<2x16xf32>
    %831 = math.exp %830 : vector<2x16xf32>
    %cst_122 = arith.constant 1.000000e+00 : f32
    %832 = vector.broadcast %cst_122 : f32 to vector<2x16xf32>
    %833 = arith.addf %832, %831 : vector<2x16xf32>
    %834 = arith.divf %832, %833 : vector<2x16xf32>
    %835 = arith.mulf %826, %714 : vector<2x16xf32>
    %836 = arith.mulf %820, %828 : vector<2x16xf32>
    %837 = arith.addf %835, %836 : vector<2x16xf32>
    %838 = math.tanh %837 : vector<2x16xf32>
    %839 = arith.mulf %834, %838 : vector<2x16xf32>
    %840 = vector.extract_strided_slice %195 {offsets = [0, 6, 0], sizes = [2, 1, 64], strides = [1, 1, 1]} : vector<2x8x128xf32> to vector<2x1x64xf32>
    %841 = vector.shape_cast %840 : vector<2x1x64xf32> to vector<2x64xf32>
    %842 = vector.extract_strided_slice %839 {offsets = [0, 0], sizes = [2, 1], strides = [1, 1]} : vector<2x16xf32> to vector<2x1xf32>
    %843 = vector.extract_strided_slice %196 {offsets = [0, 0], sizes = [1, 64], strides = [1, 1]} : vector<16x64xf32> to vector<1x64xf32>
    %844 = vector.broadcast %842 : vector<2x1xf32> to vector<2x64xf32>
    %845 = vector.broadcast %843 : vector<1x64xf32> to vector<2x64xf32>
    %846 = arith.mulf %844, %845 : vector<2x64xf32>
    %847 = arith.addf %841, %846 : vector<2x64xf32>
    %848 = vector.extract_strided_slice %839 {offsets = [0, 1], sizes = [2, 1], strides = [1, 1]} : vector<2x16xf32> to vector<2x1xf32>
    %849 = vector.extract_strided_slice %196 {offsets = [1, 0], sizes = [1, 64], strides = [1, 1]} : vector<16x64xf32> to vector<1x64xf32>
    %850 = vector.broadcast %848 : vector<2x1xf32> to vector<2x64xf32>
    %851 = vector.broadcast %849 : vector<1x64xf32> to vector<2x64xf32>
    %852 = arith.mulf %850, %851 : vector<2x64xf32>
    %853 = arith.addf %847, %852 : vector<2x64xf32>
    %854 = vector.extract_strided_slice %839 {offsets = [0, 2], sizes = [2, 1], strides = [1, 1]} : vector<2x16xf32> to vector<2x1xf32>
    %855 = vector.extract_strided_slice %196 {offsets = [2, 0], sizes = [1, 64], strides = [1, 1]} : vector<16x64xf32> to vector<1x64xf32>
    %856 = vector.broadcast %854 : vector<2x1xf32> to vector<2x64xf32>
    %857 = vector.broadcast %855 : vector<1x64xf32> to vector<2x64xf32>
    %858 = arith.mulf %856, %857 : vector<2x64xf32>
    %859 = arith.addf %853, %858 : vector<2x64xf32>
    %860 = vector.extract_strided_slice %839 {offsets = [0, 3], sizes = [2, 1], strides = [1, 1]} : vector<2x16xf32> to vector<2x1xf32>
    %861 = vector.extract_strided_slice %196 {offsets = [3, 0], sizes = [1, 64], strides = [1, 1]} : vector<16x64xf32> to vector<1x64xf32>
    %862 = vector.broadcast %860 : vector<2x1xf32> to vector<2x64xf32>
    %863 = vector.broadcast %861 : vector<1x64xf32> to vector<2x64xf32>
    %864 = arith.mulf %862, %863 : vector<2x64xf32>
    %865 = arith.addf %859, %864 : vector<2x64xf32>
    %866 = vector.extract_strided_slice %839 {offsets = [0, 4], sizes = [2, 1], strides = [1, 1]} : vector<2x16xf32> to vector<2x1xf32>
    %867 = vector.extract_strided_slice %196 {offsets = [4, 0], sizes = [1, 64], strides = [1, 1]} : vector<16x64xf32> to vector<1x64xf32>
    %868 = vector.broadcast %866 : vector<2x1xf32> to vector<2x64xf32>
    %869 = vector.broadcast %867 : vector<1x64xf32> to vector<2x64xf32>
    %870 = arith.mulf %868, %869 : vector<2x64xf32>
    %871 = arith.addf %865, %870 : vector<2x64xf32>
    %872 = vector.extract_strided_slice %839 {offsets = [0, 5], sizes = [2, 1], strides = [1, 1]} : vector<2x16xf32> to vector<2x1xf32>
    %873 = vector.extract_strided_slice %196 {offsets = [5, 0], sizes = [1, 64], strides = [1, 1]} : vector<16x64xf32> to vector<1x64xf32>
    %874 = vector.broadcast %872 : vector<2x1xf32> to vector<2x64xf32>
    %875 = vector.broadcast %873 : vector<1x64xf32> to vector<2x64xf32>
    %876 = arith.mulf %874, %875 : vector<2x64xf32>
    %877 = arith.addf %871, %876 : vector<2x64xf32>
    %878 = vector.extract_strided_slice %839 {offsets = [0, 6], sizes = [2, 1], strides = [1, 1]} : vector<2x16xf32> to vector<2x1xf32>
    %879 = vector.extract_strided_slice %196 {offsets = [6, 0], sizes = [1, 64], strides = [1, 1]} : vector<16x64xf32> to vector<1x64xf32>
    %880 = vector.broadcast %878 : vector<2x1xf32> to vector<2x64xf32>
    %881 = vector.broadcast %879 : vector<1x64xf32> to vector<2x64xf32>
    %882 = arith.mulf %880, %881 : vector<2x64xf32>
    %883 = arith.addf %877, %882 : vector<2x64xf32>
    %884 = vector.extract_strided_slice %839 {offsets = [0, 7], sizes = [2, 1], strides = [1, 1]} : vector<2x16xf32> to vector<2x1xf32>
    %885 = vector.extract_strided_slice %196 {offsets = [7, 0], sizes = [1, 64], strides = [1, 1]} : vector<16x64xf32> to vector<1x64xf32>
    %886 = vector.broadcast %884 : vector<2x1xf32> to vector<2x64xf32>
    %887 = vector.broadcast %885 : vector<1x64xf32> to vector<2x64xf32>
    %888 = arith.mulf %886, %887 : vector<2x64xf32>
    %889 = arith.addf %883, %888 : vector<2x64xf32>
    %890 = vector.extract_strided_slice %839 {offsets = [0, 8], sizes = [2, 1], strides = [1, 1]} : vector<2x16xf32> to vector<2x1xf32>
    %891 = vector.extract_strided_slice %196 {offsets = [8, 0], sizes = [1, 64], strides = [1, 1]} : vector<16x64xf32> to vector<1x64xf32>
    %892 = vector.broadcast %890 : vector<2x1xf32> to vector<2x64xf32>
    %893 = vector.broadcast %891 : vector<1x64xf32> to vector<2x64xf32>
    %894 = arith.mulf %892, %893 : vector<2x64xf32>
    %895 = arith.addf %889, %894 : vector<2x64xf32>
    %896 = vector.extract_strided_slice %839 {offsets = [0, 9], sizes = [2, 1], strides = [1, 1]} : vector<2x16xf32> to vector<2x1xf32>
    %897 = vector.extract_strided_slice %196 {offsets = [9, 0], sizes = [1, 64], strides = [1, 1]} : vector<16x64xf32> to vector<1x64xf32>
    %898 = vector.broadcast %896 : vector<2x1xf32> to vector<2x64xf32>
    %899 = vector.broadcast %897 : vector<1x64xf32> to vector<2x64xf32>
    %900 = arith.mulf %898, %899 : vector<2x64xf32>
    %901 = arith.addf %895, %900 : vector<2x64xf32>
    %902 = vector.extract_strided_slice %839 {offsets = [0, 10], sizes = [2, 1], strides = [1, 1]} : vector<2x16xf32> to vector<2x1xf32>
    %903 = vector.extract_strided_slice %196 {offsets = [10, 0], sizes = [1, 64], strides = [1, 1]} : vector<16x64xf32> to vector<1x64xf32>
    %904 = vector.broadcast %902 : vector<2x1xf32> to vector<2x64xf32>
    %905 = vector.broadcast %903 : vector<1x64xf32> to vector<2x64xf32>
    %906 = arith.mulf %904, %905 : vector<2x64xf32>
    %907 = arith.addf %901, %906 : vector<2x64xf32>
    %908 = vector.extract_strided_slice %839 {offsets = [0, 11], sizes = [2, 1], strides = [1, 1]} : vector<2x16xf32> to vector<2x1xf32>
    %909 = vector.extract_strided_slice %196 {offsets = [11, 0], sizes = [1, 64], strides = [1, 1]} : vector<16x64xf32> to vector<1x64xf32>
    %910 = vector.broadcast %908 : vector<2x1xf32> to vector<2x64xf32>
    %911 = vector.broadcast %909 : vector<1x64xf32> to vector<2x64xf32>
    %912 = arith.mulf %910, %911 : vector<2x64xf32>
    %913 = arith.addf %907, %912 : vector<2x64xf32>
    %914 = vector.extract_strided_slice %839 {offsets = [0, 12], sizes = [2, 1], strides = [1, 1]} : vector<2x16xf32> to vector<2x1xf32>
    %915 = vector.extract_strided_slice %196 {offsets = [12, 0], sizes = [1, 64], strides = [1, 1]} : vector<16x64xf32> to vector<1x64xf32>
    %916 = vector.broadcast %914 : vector<2x1xf32> to vector<2x64xf32>
    %917 = vector.broadcast %915 : vector<1x64xf32> to vector<2x64xf32>
    %918 = arith.mulf %916, %917 : vector<2x64xf32>
    %919 = arith.addf %913, %918 : vector<2x64xf32>
    %920 = vector.extract_strided_slice %839 {offsets = [0, 13], sizes = [2, 1], strides = [1, 1]} : vector<2x16xf32> to vector<2x1xf32>
    %921 = vector.extract_strided_slice %196 {offsets = [13, 0], sizes = [1, 64], strides = [1, 1]} : vector<16x64xf32> to vector<1x64xf32>
    %922 = vector.broadcast %920 : vector<2x1xf32> to vector<2x64xf32>
    %923 = vector.broadcast %921 : vector<1x64xf32> to vector<2x64xf32>
    %924 = arith.mulf %922, %923 : vector<2x64xf32>
    %925 = arith.addf %919, %924 : vector<2x64xf32>
    %926 = vector.extract_strided_slice %839 {offsets = [0, 14], sizes = [2, 1], strides = [1, 1]} : vector<2x16xf32> to vector<2x1xf32>
    %927 = vector.extract_strided_slice %196 {offsets = [14, 0], sizes = [1, 64], strides = [1, 1]} : vector<16x64xf32> to vector<1x64xf32>
    %928 = vector.broadcast %926 : vector<2x1xf32> to vector<2x64xf32>
    %929 = vector.broadcast %927 : vector<1x64xf32> to vector<2x64xf32>
    %930 = arith.mulf %928, %929 : vector<2x64xf32>
    %931 = arith.addf %925, %930 : vector<2x64xf32>
    %932 = vector.extract_strided_slice %839 {offsets = [0, 15], sizes = [2, 1], strides = [1, 1]} : vector<2x16xf32> to vector<2x1xf32>
    %933 = vector.extract_strided_slice %196 {offsets = [15, 0], sizes = [1, 64], strides = [1, 1]} : vector<16x64xf32> to vector<1x64xf32>
    %934 = vector.broadcast %932 : vector<2x1xf32> to vector<2x64xf32>
    %935 = vector.broadcast %933 : vector<1x64xf32> to vector<2x64xf32>
    %936 = arith.mulf %934, %935 : vector<2x64xf32>
    %937 = arith.addf %931, %936 : vector<2x64xf32>
    %938 = vector.extract_strided_slice %937 {offsets = [0, 0], sizes = [2, 16], strides = [1, 1]} : vector<2x64xf32> to vector<2x16xf32>
    %939 = arith.negf %938 : vector<2x16xf32>
    %940 = math.exp %939 : vector<2x16xf32>
    %cst_123 = arith.constant 1.000000e+00 : f32
    %941 = vector.broadcast %cst_123 : f32 to vector<2x16xf32>
    %942 = arith.addf %941, %940 : vector<2x16xf32>
    %943 = arith.divf %941, %942 : vector<2x16xf32>
    %944 = vector.extract_strided_slice %937 {offsets = [0, 16], sizes = [2, 16], strides = [1, 1]} : vector<2x64xf32> to vector<2x16xf32>
    %945 = arith.negf %944 : vector<2x16xf32>
    %946 = math.exp %945 : vector<2x16xf32>
    %cst_124 = arith.constant 1.000000e+00 : f32
    %947 = vector.broadcast %cst_124 : f32 to vector<2x16xf32>
    %948 = arith.addf %947, %946 : vector<2x16xf32>
    %949 = arith.divf %947, %948 : vector<2x16xf32>
    %950 = vector.extract_strided_slice %937 {offsets = [0, 32], sizes = [2, 16], strides = [1, 1]} : vector<2x64xf32> to vector<2x16xf32>
    %951 = math.tanh %950 : vector<2x16xf32>
    %952 = vector.extract_strided_slice %937 {offsets = [0, 48], sizes = [2, 16], strides = [1, 1]} : vector<2x64xf32> to vector<2x16xf32>
    %953 = arith.negf %952 : vector<2x16xf32>
    %954 = math.exp %953 : vector<2x16xf32>
    %cst_125 = arith.constant 1.000000e+00 : f32
    %955 = vector.broadcast %cst_125 : f32 to vector<2x16xf32>
    %956 = arith.addf %955, %954 : vector<2x16xf32>
    %957 = arith.divf %955, %956 : vector<2x16xf32>
    %958 = arith.mulf %949, %837 : vector<2x16xf32>
    %959 = arith.mulf %943, %951 : vector<2x16xf32>
    %960 = arith.addf %958, %959 : vector<2x16xf32>
    %961 = math.tanh %960 : vector<2x16xf32>
    %962 = arith.mulf %957, %961 : vector<2x16xf32>
    %963 = vector.extract_strided_slice %195 {offsets = [0, 7, 0], sizes = [2, 1, 64], strides = [1, 1, 1]} : vector<2x8x128xf32> to vector<2x1x64xf32>
    %964 = vector.shape_cast %963 : vector<2x1x64xf32> to vector<2x64xf32>
    %965 = vector.extract_strided_slice %962 {offsets = [0, 0], sizes = [2, 1], strides = [1, 1]} : vector<2x16xf32> to vector<2x1xf32>
    %966 = vector.extract_strided_slice %196 {offsets = [0, 0], sizes = [1, 64], strides = [1, 1]} : vector<16x64xf32> to vector<1x64xf32>
    %967 = vector.broadcast %965 : vector<2x1xf32> to vector<2x64xf32>
    %968 = vector.broadcast %966 : vector<1x64xf32> to vector<2x64xf32>
    %969 = arith.mulf %967, %968 : vector<2x64xf32>
    %970 = arith.addf %964, %969 : vector<2x64xf32>
    %971 = vector.extract_strided_slice %962 {offsets = [0, 1], sizes = [2, 1], strides = [1, 1]} : vector<2x16xf32> to vector<2x1xf32>
    %972 = vector.extract_strided_slice %196 {offsets = [1, 0], sizes = [1, 64], strides = [1, 1]} : vector<16x64xf32> to vector<1x64xf32>
    %973 = vector.broadcast %971 : vector<2x1xf32> to vector<2x64xf32>
    %974 = vector.broadcast %972 : vector<1x64xf32> to vector<2x64xf32>
    %975 = arith.mulf %973, %974 : vector<2x64xf32>
    %976 = arith.addf %970, %975 : vector<2x64xf32>
    %977 = vector.extract_strided_slice %962 {offsets = [0, 2], sizes = [2, 1], strides = [1, 1]} : vector<2x16xf32> to vector<2x1xf32>
    %978 = vector.extract_strided_slice %196 {offsets = [2, 0], sizes = [1, 64], strides = [1, 1]} : vector<16x64xf32> to vector<1x64xf32>
    %979 = vector.broadcast %977 : vector<2x1xf32> to vector<2x64xf32>
    %980 = vector.broadcast %978 : vector<1x64xf32> to vector<2x64xf32>
    %981 = arith.mulf %979, %980 : vector<2x64xf32>
    %982 = arith.addf %976, %981 : vector<2x64xf32>
    %983 = vector.extract_strided_slice %962 {offsets = [0, 3], sizes = [2, 1], strides = [1, 1]} : vector<2x16xf32> to vector<2x1xf32>
    %984 = vector.extract_strided_slice %196 {offsets = [3, 0], sizes = [1, 64], strides = [1, 1]} : vector<16x64xf32> to vector<1x64xf32>
    %985 = vector.broadcast %983 : vector<2x1xf32> to vector<2x64xf32>
    %986 = vector.broadcast %984 : vector<1x64xf32> to vector<2x64xf32>
    %987 = arith.mulf %985, %986 : vector<2x64xf32>
    %988 = arith.addf %982, %987 : vector<2x64xf32>
    %989 = vector.extract_strided_slice %962 {offsets = [0, 4], sizes = [2, 1], strides = [1, 1]} : vector<2x16xf32> to vector<2x1xf32>
    %990 = vector.extract_strided_slice %196 {offsets = [4, 0], sizes = [1, 64], strides = [1, 1]} : vector<16x64xf32> to vector<1x64xf32>
    %991 = vector.broadcast %989 : vector<2x1xf32> to vector<2x64xf32>
    %992 = vector.broadcast %990 : vector<1x64xf32> to vector<2x64xf32>
    %993 = arith.mulf %991, %992 : vector<2x64xf32>
    %994 = arith.addf %988, %993 : vector<2x64xf32>
    %995 = vector.extract_strided_slice %962 {offsets = [0, 5], sizes = [2, 1], strides = [1, 1]} : vector<2x16xf32> to vector<2x1xf32>
    %996 = vector.extract_strided_slice %196 {offsets = [5, 0], sizes = [1, 64], strides = [1, 1]} : vector<16x64xf32> to vector<1x64xf32>
    %997 = vector.broadcast %995 : vector<2x1xf32> to vector<2x64xf32>
    %998 = vector.broadcast %996 : vector<1x64xf32> to vector<2x64xf32>
    %999 = arith.mulf %997, %998 : vector<2x64xf32>
    %1000 = arith.addf %994, %999 : vector<2x64xf32>
    %1001 = vector.extract_strided_slice %962 {offsets = [0, 6], sizes = [2, 1], strides = [1, 1]} : vector<2x16xf32> to vector<2x1xf32>
    %1002 = vector.extract_strided_slice %196 {offsets = [6, 0], sizes = [1, 64], strides = [1, 1]} : vector<16x64xf32> to vector<1x64xf32>
    %1003 = vector.broadcast %1001 : vector<2x1xf32> to vector<2x64xf32>
    %1004 = vector.broadcast %1002 : vector<1x64xf32> to vector<2x64xf32>
    %1005 = arith.mulf %1003, %1004 : vector<2x64xf32>
    %1006 = arith.addf %1000, %1005 : vector<2x64xf32>
    %1007 = vector.extract_strided_slice %962 {offsets = [0, 7], sizes = [2, 1], strides = [1, 1]} : vector<2x16xf32> to vector<2x1xf32>
    %1008 = vector.extract_strided_slice %196 {offsets = [7, 0], sizes = [1, 64], strides = [1, 1]} : vector<16x64xf32> to vector<1x64xf32>
    %1009 = vector.broadcast %1007 : vector<2x1xf32> to vector<2x64xf32>
    %1010 = vector.broadcast %1008 : vector<1x64xf32> to vector<2x64xf32>
    %1011 = arith.mulf %1009, %1010 : vector<2x64xf32>
    %1012 = arith.addf %1006, %1011 : vector<2x64xf32>
    %1013 = vector.extract_strided_slice %962 {offsets = [0, 8], sizes = [2, 1], strides = [1, 1]} : vector<2x16xf32> to vector<2x1xf32>
    %1014 = vector.extract_strided_slice %196 {offsets = [8, 0], sizes = [1, 64], strides = [1, 1]} : vector<16x64xf32> to vector<1x64xf32>
    %1015 = vector.broadcast %1013 : vector<2x1xf32> to vector<2x64xf32>
    %1016 = vector.broadcast %1014 : vector<1x64xf32> to vector<2x64xf32>
    %1017 = arith.mulf %1015, %1016 : vector<2x64xf32>
    %1018 = arith.addf %1012, %1017 : vector<2x64xf32>
    %1019 = vector.extract_strided_slice %962 {offsets = [0, 9], sizes = [2, 1], strides = [1, 1]} : vector<2x16xf32> to vector<2x1xf32>
    %1020 = vector.extract_strided_slice %196 {offsets = [9, 0], sizes = [1, 64], strides = [1, 1]} : vector<16x64xf32> to vector<1x64xf32>
    %1021 = vector.broadcast %1019 : vector<2x1xf32> to vector<2x64xf32>
    %1022 = vector.broadcast %1020 : vector<1x64xf32> to vector<2x64xf32>
    %1023 = arith.mulf %1021, %1022 : vector<2x64xf32>
    %1024 = arith.addf %1018, %1023 : vector<2x64xf32>
    %1025 = vector.extract_strided_slice %962 {offsets = [0, 10], sizes = [2, 1], strides = [1, 1]} : vector<2x16xf32> to vector<2x1xf32>
    %1026 = vector.extract_strided_slice %196 {offsets = [10, 0], sizes = [1, 64], strides = [1, 1]} : vector<16x64xf32> to vector<1x64xf32>
    %1027 = vector.broadcast %1025 : vector<2x1xf32> to vector<2x64xf32>
    %1028 = vector.broadcast %1026 : vector<1x64xf32> to vector<2x64xf32>
    %1029 = arith.mulf %1027, %1028 : vector<2x64xf32>
    %1030 = arith.addf %1024, %1029 : vector<2x64xf32>
    %1031 = vector.extract_strided_slice %962 {offsets = [0, 11], sizes = [2, 1], strides = [1, 1]} : vector<2x16xf32> to vector<2x1xf32>
    %1032 = vector.extract_strided_slice %196 {offsets = [11, 0], sizes = [1, 64], strides = [1, 1]} : vector<16x64xf32> to vector<1x64xf32>
    %1033 = vector.broadcast %1031 : vector<2x1xf32> to vector<2x64xf32>
    %1034 = vector.broadcast %1032 : vector<1x64xf32> to vector<2x64xf32>
    %1035 = arith.mulf %1033, %1034 : vector<2x64xf32>
    %1036 = arith.addf %1030, %1035 : vector<2x64xf32>
    %1037 = vector.extract_strided_slice %962 {offsets = [0, 12], sizes = [2, 1], strides = [1, 1]} : vector<2x16xf32> to vector<2x1xf32>
    %1038 = vector.extract_strided_slice %196 {offsets = [12, 0], sizes = [1, 64], strides = [1, 1]} : vector<16x64xf32> to vector<1x64xf32>
    %1039 = vector.broadcast %1037 : vector<2x1xf32> to vector<2x64xf32>
    %1040 = vector.broadcast %1038 : vector<1x64xf32> to vector<2x64xf32>
    %1041 = arith.mulf %1039, %1040 : vector<2x64xf32>
    %1042 = arith.addf %1036, %1041 : vector<2x64xf32>
    %1043 = vector.extract_strided_slice %962 {offsets = [0, 13], sizes = [2, 1], strides = [1, 1]} : vector<2x16xf32> to vector<2x1xf32>
    %1044 = vector.extract_strided_slice %196 {offsets = [13, 0], sizes = [1, 64], strides = [1, 1]} : vector<16x64xf32> to vector<1x64xf32>
    %1045 = vector.broadcast %1043 : vector<2x1xf32> to vector<2x64xf32>
    %1046 = vector.broadcast %1044 : vector<1x64xf32> to vector<2x64xf32>
    %1047 = arith.mulf %1045, %1046 : vector<2x64xf32>
    %1048 = arith.addf %1042, %1047 : vector<2x64xf32>
    %1049 = vector.extract_strided_slice %962 {offsets = [0, 14], sizes = [2, 1], strides = [1, 1]} : vector<2x16xf32> to vector<2x1xf32>
    %1050 = vector.extract_strided_slice %196 {offsets = [14, 0], sizes = [1, 64], strides = [1, 1]} : vector<16x64xf32> to vector<1x64xf32>
    %1051 = vector.broadcast %1049 : vector<2x1xf32> to vector<2x64xf32>
    %1052 = vector.broadcast %1050 : vector<1x64xf32> to vector<2x64xf32>
    %1053 = arith.mulf %1051, %1052 : vector<2x64xf32>
    %1054 = arith.addf %1048, %1053 : vector<2x64xf32>
    %1055 = vector.extract_strided_slice %962 {offsets = [0, 15], sizes = [2, 1], strides = [1, 1]} : vector<2x16xf32> to vector<2x1xf32>
    %1056 = vector.extract_strided_slice %196 {offsets = [15, 0], sizes = [1, 64], strides = [1, 1]} : vector<16x64xf32> to vector<1x64xf32>
    %1057 = vector.broadcast %1055 : vector<2x1xf32> to vector<2x64xf32>
    %1058 = vector.broadcast %1056 : vector<1x64xf32> to vector<2x64xf32>
    %1059 = arith.mulf %1057, %1058 : vector<2x64xf32>
    %1060 = arith.addf %1054, %1059 : vector<2x64xf32>
    %1061 = vector.extract_strided_slice %1060 {offsets = [0, 0], sizes = [2, 16], strides = [1, 1]} : vector<2x64xf32> to vector<2x16xf32>
    %1062 = arith.negf %1061 : vector<2x16xf32>
    %1063 = math.exp %1062 : vector<2x16xf32>
    %cst_126 = arith.constant 1.000000e+00 : f32
    %1064 = vector.broadcast %cst_126 : f32 to vector<2x16xf32>
    %1065 = arith.addf %1064, %1063 : vector<2x16xf32>
    %1066 = arith.divf %1064, %1065 : vector<2x16xf32>
    %1067 = vector.extract_strided_slice %1060 {offsets = [0, 16], sizes = [2, 16], strides = [1, 1]} : vector<2x64xf32> to vector<2x16xf32>
    %1068 = arith.negf %1067 : vector<2x16xf32>
    %1069 = math.exp %1068 : vector<2x16xf32>
    %cst_127 = arith.constant 1.000000e+00 : f32
    %1070 = vector.broadcast %cst_127 : f32 to vector<2x16xf32>
    %1071 = arith.addf %1070, %1069 : vector<2x16xf32>
    %1072 = arith.divf %1070, %1071 : vector<2x16xf32>
    %1073 = vector.extract_strided_slice %1060 {offsets = [0, 32], sizes = [2, 16], strides = [1, 1]} : vector<2x64xf32> to vector<2x16xf32>
    %1074 = math.tanh %1073 : vector<2x16xf32>
    %1075 = vector.extract_strided_slice %1060 {offsets = [0, 48], sizes = [2, 16], strides = [1, 1]} : vector<2x64xf32> to vector<2x16xf32>
    %1076 = arith.negf %1075 : vector<2x16xf32>
    %1077 = math.exp %1076 : vector<2x16xf32>
    %cst_128 = arith.constant 1.000000e+00 : f32
    %1078 = vector.broadcast %cst_128 : f32 to vector<2x16xf32>
    %1079 = arith.addf %1078, %1077 : vector<2x16xf32>
    %1080 = arith.divf %1078, %1079 : vector<2x16xf32>
    %1081 = arith.mulf %1072, %960 : vector<2x16xf32>
    %1082 = arith.mulf %1066, %1074 : vector<2x16xf32>
    %1083 = arith.addf %1081, %1082 : vector<2x16xf32>
    %1084 = math.tanh %1083 : vector<2x16xf32>
    %1085 = arith.mulf %1080, %1084 : vector<2x16xf32>
    %1086 = vector.extract_strided_slice %195 {offsets = [0, 7, 64], sizes = [2, 1, 64], strides = [1, 1, 1]} : vector<2x8x128xf32> to vector<2x1x64xf32>
    %1087 = vector.shape_cast %1086 : vector<2x1x64xf32> to vector<2x64xf32>
    %1088 = vector.extract_strided_slice %1087 {offsets = [0, 0], sizes = [2, 16], strides = [1, 1]} : vector<2x64xf32> to vector<2x16xf32>
    %1089 = arith.negf %1088 : vector<2x16xf32>
    %1090 = math.exp %1089 : vector<2x16xf32>
    %cst_129 = arith.constant 1.000000e+00 : f32
    %1091 = vector.broadcast %cst_129 : f32 to vector<2x16xf32>
    %1092 = arith.addf %1091, %1090 : vector<2x16xf32>
    %1093 = arith.divf %1091, %1092 : vector<2x16xf32>
    %1094 = vector.extract_strided_slice %1087 {offsets = [0, 32], sizes = [2, 16], strides = [1, 1]} : vector<2x64xf32> to vector<2x16xf32>
    %1095 = math.tanh %1094 : vector<2x16xf32>
    %1096 = arith.mulf %1093, %1095 : vector<2x16xf32>
    %1097 = vector.extract_strided_slice %1087 {offsets = [0, 48], sizes = [2, 16], strides = [1, 1]} : vector<2x64xf32> to vector<2x16xf32>
    %1098 = arith.negf %1097 : vector<2x16xf32>
    %1099 = math.exp %1098 : vector<2x16xf32>
    %cst_130 = arith.constant 1.000000e+00 : f32
    %1100 = vector.broadcast %cst_130 : f32 to vector<2x16xf32>
    %1101 = arith.addf %1100, %1099 : vector<2x16xf32>
    %1102 = arith.divf %1100, %1101 : vector<2x16xf32>
    %1103 = math.tanh %1096 : vector<2x16xf32>
    %1104 = arith.mulf %1102, %1103 : vector<2x16xf32>
    %1105 = tpu.concatenate %1085, %1104 in 1 : vector<2x16xf32>, vector<2x16xf32> -> vector<2x32xf32>
    %c0_131 = arith.constant 0 : index
    %c0_132 = arith.constant 0 : index
    %1106 = vector.load %arg34[%c0_131, %c0_132] : memref<32x2xf32, #tpu.memory_space<vmem>>, vector<32x2xf32>
    %cst_133 = arith.constant dense<0.000000e+00> : vector<2x2xf32>
    %1107 = tpu.matmul %1105, %1106, %cst_133 {dimension_numbers = #tpu.dot_dimension_numbers<[1], [0], [0], [1], [0, 0, 1, 1], [], []>} : vector<2x32xf32>, vector<32x2xf32>, vector<2x2xf32> -> vector<2x2xf32>
    %c0_134 = arith.constant 0 : index
    %c0_135 = arith.constant 0 : index
    %1108 = vector.load %arg35[%c0_134, %c0_135] : memref<1x2xf32, #tpu.memory_space<vmem>>, vector<1x2xf32>
    %1109 = vector.broadcast %1108 : vector<1x2xf32> to vector<2x2xf32>
    %1110 = arith.addf %1107, %1109 : vector<2x2xf32>
    %c0_136 = arith.constant 0 : index
    %c0_137 = arith.constant 0 : index
    %1111 = vector.load %arg36[%c0_136, %c0_137] : memref<2x2xf32, #tpu.memory_space<vmem>>, vector<2x2xf32>
    tpu.vector_store %arg36[%c0_136, %c0_137], %1110 {strides = array<i32>} : memref<2x2xf32, #tpu.memory_space<vmem>>, vector<2x2xf32>,
    %cst_138 = arith.constant dense<0xFF800000> : vector<2xf32>
    %1112 = vector.multi_reduction <maximumf>, %1110, %cst_138 [1] : vector<2x2xf32> to vector<2xf32>
    %1113 = vector.shape_cast %1112 : vector<2xf32> to vector<2x1xf32>
    %1114 = vector.broadcast %1113 : vector<2x1xf32> to vector<2x2xf32>
    %1115 = arith.subf %1110, %1114 : vector<2x2xf32>
    %1116 = math.exp %1115 : vector<2x2xf32>
    %cst_139 = arith.constant dense<0.000000e+00> : vector<2xf32>
    %1117 = vector.multi_reduction <add>, %1116, %cst_139 [1] : vector<2x2xf32> to vector<2xf32>
    %1118 = vector.shape_cast %1117 : vector<2xf32> to vector<2x1xf32>
    %1119 = math.log %1118 : vector<2x1xf32>
    %1120 = arith.addf %1113, %1119 : vector<2x1xf32>
    %c0_140 = arith.constant 0 : index
    %c0_141 = arith.constant 0 : index
    %1121 = vector.load %arg4[%c0_140, %c0_141] : memref<2x1xi32, #tpu.memory_space<vmem>>, vector<2x1xi32>
    %1122 = arith.sitofp %1121 : vector<2x1xi32> to vector<2x1xf32>
    %1123 = vector.extract_strided_slice %1110 {offsets = [0, 0], sizes = [2, 1], strides = [1, 1]} : vector<2x2xf32> to vector<2x1xf32>
    %cst_142 = arith.constant 1.000000e+00 : f32
    %1124 = vector.broadcast %cst_142 : f32 to vector<2x1xf32>
    %1125 = arith.subf %1124, %1122 : vector<2x1xf32>
    %1126 = arith.mulf %1123, %1125 : vector<2x1xf32>
    %1127 = vector.extract_strided_slice %1110 {offsets = [0, 1], sizes = [2, 1], strides = [1, 1]} : vector<2x2xf32> to vector<2x1xf32>
    %1128 = arith.mulf %1127, %1122 : vector<2x1xf32>
    %1129 = arith.addf %1126, %1128 : vector<2x1xf32>
    %1130 = arith.subf %1120, %1129 : vector<2x1xf32>
    %cst_143 = arith.constant dense<0.000000e+00> : vector<1xf32>
    %1131 = vector.multi_reduction <add>, %1130, %cst_143 [0] : vector<2x1xf32> to vector<1xf32>
    %1132 = vector.shape_cast %1131 : vector<1xf32> to vector<1x1xf32>
    %cst_144 = arith.constant 5.000000e-01 : f32
    %1133 = vector.broadcast %cst_144 : f32 to vector<1x1xf32>
    %1134 = arith.mulf %1132, %1133 : vector<1x1xf32>
    %c0_145 = arith.constant 0 : index
    %c0_146 = arith.constant 0 : index
    %1135 = vector.load %arg37[%c0_145, %c0_146] : memref<1x1xf32, #tpu.memory_space<vmem>>, vector<1x1xf32>
    tpu.vector_store %arg37[%c0_145, %c0_146], %1134 {strides = array<i32>} : memref<1x1xf32, #tpu.memory_space<vmem>>, vector<1x1xf32>,
    return
  }
}

</mosaic_0001>

<llo_original>
// kernel: humor_detection_forward.1
$region0: #{humor_detection_forward.1}
  #allocation0 [shape = 'u32[]', space=smem, size = 0x4, offset = 0x4, fixed_abs, tag = 'smem constant byte address 0x4 - core index']
  #allocation1 [shape = 'u32[144,128]{1,0:T(1,128)}', space=vmem, size = 0x12000, scoped, tag = 'internal scratch']
  %s0 = inlined_call_operand.smem [shape: u32[38], index: -1, kind: input, shape index: {}]
  %s1 = sld [smem:[%s0]]
  %s2 = scalar_lea.smem %s0, 1
  %s3 = sld [smem:[%s2]]
  %s4 = scalar_lea.smem %s0, 2
  %s5 = sld [smem:[%s4]]
  %s6 = scalar_lea.smem %s0, 3
  %s7 = sld [smem:[%s6]]
  %s8 = scalar_lea.smem %s0, 4
  %s9 = sld [smem:[%s8]]
  %s10 = scalar_lea.smem %s0, 5
  %s11 = sld [smem:[%s10]]
  %s12 = scalar_lea.smem %s0, 6
  %s13 = sld [smem:[%s12]]
  %s14 = scalar_lea.smem %s0, 7
  %s15 = sld [smem:[%s14]]
  %s16 = scalar_lea.smem %s0, 8
  %s17 = sld [smem:[%s16]]
  %s18 = scalar_lea.smem %s0, 9
  %s19 = sld [smem:[%s18]]
  %s20 = scalar_lea.smem %s0, 10
  %s21 = sld [smem:[%s20]]
  %s22 = scalar_lea.smem %s0, 11
  %s23 = sld [smem:[%s22]]
  %s24 = scalar_lea.smem %s0, 12
  %s25 = sld [smem:[%s24]]
  %s26 = scalar_lea.smem %s0, 13
  %s27 = sld [smem:[%s26]]
  %s28 = scalar_lea.smem %s0, 14
  %s29 = sld [smem:[%s28]]
  %s30 = scalar_lea.smem %s0, 15
  %s31 = sld [smem:[%s30]]
  %s32 = scalar_lea.smem %s0, 16
  %s33 = sld [smem:[%s32]]
  %s34 = scalar_lea.smem %s0, 17
  %s35 = sld [smem:[%s34]]
  %s36 = scalar_lea.smem %s0, 18
  %s37 = sld [smem:[%s36]]
  %s38 = scalar_lea.smem %s0, 19
  %s39 = sld [smem:[%s38]]
  %s40 = scalar_lea.smem %s0, 20
  %s41 = sld [smem:[%s40]]
  %s42 = scalar_lea.smem %s0, 21
  %s43 = sld [smem:[%s42]]
  %s44 = scalar_lea.smem %s0, 22
  %s45 = sld [smem:[%s44]]
  %s46 = scalar_lea.smem %s0, 23
  %s47 = sld [smem:[%s46]]
  %s48 = scalar_lea.smem %s0, 24
  %s49 = sld [smem:[%s48]]
  %s50 = scalar_lea.smem %s0, 25
  %s51 = sld [smem:[%s50]]
  %s52 = scalar_lea.smem %s0, 26
  %s53 = sld [smem:[%s52]]
  %s54 = scalar_lea.smem %s0, 27
  %s55 = sld [smem:[%s54]]
  %s56 = scalar_lea.smem %s0, 28
  %s57 = sld [smem:[%s56]]
  %s58 = scalar_lea.smem %s0, 29
  %s59 = sld [smem:[%s58]]
  %s60 = scalar_lea.smem %s0, 30
  %s61 = sld [smem:[%s60]]
  %s62 = scalar_lea.smem %s0, 31
  %s63 = sld [smem:[%s62]]
  %s64 = scalar_lea.smem %s0, 32
  %s65 = sld [smem:[%s64]]
  %s66 = scalar_lea.smem %s0, 33
  %s67 = sld [smem:[%s66]]
  %s68 = scalar_lea.smem %s0, 34
  %s69 = sld [smem:[%s68]]
  %s70 = scalar_lea.smem %s0, 35
  %s71 = sld [smem:[%s70]]
  %s72 = scalar_lea.smem %s0, 36
  %s73 = sld [smem:[%s72]]
  %s74 = scalar_lea.smem %s0, 37
  %s75 = sld [smem:[%s74]]
  %76 = xla_tuple %s73, %s75
  %s77 = sld [smem:[#allocation0]]
  $region234: #{humor_detection_forward.1} parent=0
    _
  %s79 = ssub.s32 1, %s77
  %s80 = scalar_select 0, %s79, %s77
  $region1: #{humor_detection_forward.1} parent=0
    #allocation2 [shape = 'u8[4096]{0}', space=vmem, size = 0x1000, scoped, tag = 'input window, operand 10, single buffered']
    #allocation3 [shape = 's32[1]{0}', space=sflag, size = 0x4, scoped, tag = 'scoped memory for humor_detection_forward.1']
    #allocation4 [shape = 's32[1]{0}', space=sflag, size = 0x4, scoped, tag = 'scoped memory for humor_detection_forward.1']
    #allocation5 [shape = 'u8[512]{0}', space=vmem, size = 0x400, scoped, tag = 'input window, operand 12, single buffered']
    #allocation6 [shape = 's32[1]{0}', space=sflag, size = 0x4, scoped, tag = 'scoped memory for humor_detection_forward.1']
    #allocation7 [shape = 'u8[512]{0}', space=vmem, size = 0x400, scoped, tag = 'input window, operand 13, single buffered']
    #allocation8 [shape = 'u8[512]{0}', space=vmem, size = 0x400, scoped, tag = 'input window, operand 15, single buffered']
    #allocation9 [shape = 's32[1]{0}', space=sflag, size = 0x4, scoped, tag = 'scoped memory for humor_detection_forward.1']
    #allocation10 [shape = 'u8[512]{0}', space=vmem, size = 0x400, scoped, tag = 'input window, operand 17, single buffered']
    #allocation11 [shape = 'u8[512]{0}', space=vmem, size = 0x400, scoped, tag = 'input window, operand 19, single buffered']
    #allocation12 [shape = 's32[1]{0}', space=sflag, size = 0x4, scoped, tag = 'scoped memory for humor_detection_forward.1']
    #allocation13 [shape = 'u8[512]{0}', space=vmem, size = 0x400, scoped, tag = 'input window, operand 21, single buffered']
    #allocation14 [shape = 'u8[512]{0}', space=vmem, size = 0x400, scoped, tag = 'input window, operand 22, single buffered']
    #allocation15 [shape = 's32[1]{0}', space=sflag, size = 0x4, scoped, tag = 'scoped memory for humor_detection_forward.1']
    #allocation16 [shape = 'u8[512]{0}', space=vmem, size = 0x400, scoped, tag = 'input window, operand 23, single buffered']
    #allocation17 [shape = 'u8[16384]{0}', space=vmem, size = 0x4000, scoped, tag = 'input window, operand 24, single buffered']
    #allocation18 [shape = 's32[1]{0}', space=sflag, size = 0x4, scoped, tag = 'scoped memory for humor_detection_forward.1']
    #allocation19 [shape = 'u8[512]{0}', space=vmem, size = 0x400, scoped, tag = 'input window, operand 25, single buffered']
    #allocation20 [shape = 'u8[512]{0}', space=vmem, size = 0x400, scoped, tag = 'input window, operand 27, single buffered']
    #allocation21 [shape = 's32[1]{0}', space=sflag, size = 0x4, scoped, tag = 'scoped memory for humor_detection_forward.1']
    #allocation22 [shape = 'u8[512]{0}', space=vmem, size = 0x400, scoped, tag = 'input window, operand 28, single buffered']
    #allocation23 [shape = 'u8[512]{0}', space=vmem, size = 0x400, scoped, tag = 'input window, operand 29, single buffered']
    #allocation24 [shape = 's32[1]{0}', space=sflag, size = 0x4, scoped, tag = 'scoped memory for humor_detection_forward.1']
    #allocation25 [shape = 'u8[512]{0}', space=vmem, size = 0x400, scoped, tag = 'input window, operand 31, single buffered']
    #allocation26 [shape = 'u8[512]{0}', space=vmem, size = 0x400, scoped, tag = 'input window, operand 32, single buffered']
    #allocation27 [shape = 's32[1]{0}', space=sflag, size = 0x4, scoped, tag = 'scoped memory for humor_detection_forward.1']
    #allocation28 [shape = 'u8[8192]{0}', space=vmem, size = 0x2000, scoped, tag = 'input window, operand 33, single buffered']
    #allocation29 [shape = 'u8[512]{0}', space=vmem, size = 0x400, scoped, tag = 'input window, operand 35, single buffered']
    #allocation30 [shape = 's32[1]{0}', space=sflag, size = 0x4, scoped, tag = 'scoped memory for humor_detection_forward.1']
    #allocation31 [shape = 'u8[1024]{0}', space=vmem, size = 0x400, scoped, tag = 'output window, operand 0, single buffered']
    #allocation32 [shape = 'u8[512]{0}', space=vmem, size = 0x400, scoped, tag = 'output window, operand 1, single buffered']
    #allocation33 [shape = 's32[1]{0}', space=sflag, size = 0x4, scoped, tag = 'scoped memory for humor_detection_forward.1']
    %81 = vsyncpa [#allocation3], 0
    %82 = vsyncpa [#allocation6], 0
    %83 = vsyncpa [#allocation9], 0
    %84 = vsyncpa [#allocation12], 0
    %85 = vsyncpa [#allocation15], 0
    %86 = vsyncpa [#allocation18], 0
    %87 = vsyncpa [#allocation21], 0
    %88 = vsyncpa [#allocation24], 0
    %89 = vsyncpa [#allocation27], 0
    %90 = vsyncpa [#allocation30], 0
    %91 = vsyncpa [#allocation4], 0
    %92 = vsyncpa [#allocation33], 0
    // Predicated region
    $region2: #{humor_detection_forward.1} parent=1 // pred_check
      _
    $region3: #{humor_detection_forward.1} parent=1 // pred_check_branch
      %94 = sbr.rel (0) target = $region5
    $region4: #{humor_detection_forward.1} parent=1 // pred_region
      _
    $region5: #{humor_detection_forward.1} parent=1 // pred_fallthru
      _
    // Predicated region
    $region6: #{humor_detection_forward.1} parent=1 // pred_check
      _
    $region7: #{humor_detection_forward.1} parent=1 // pred_check_branch
      %96 = sbr.rel (0) target = $region9
    $region8: #{humor_detection_forward.1} parent=1 // pred_region
      _
    $region9: #{humor_detection_forward.1} parent=1 // pred_fallthru
      _
    // Predicated region
    $region10: #{humor_detection_forward.1} parent=1 // pred_check
      _
    $region11: #{humor_detection_forward.1} parent=1 // pred_check_branch
      %98 = sbr.rel (0) target = $region13
    $region12: #{humor_detection_forward.1} parent=1 // pred_region
      _
    $region13: #{humor_detection_forward.1} parent=1 // pred_fallthru
      _
    // Predicated region
    $region14: #{humor_detection_forward.1} parent=1 // pred_check
      _
    $region15: #{humor_detection_forward.1} parent=1 // pred_check_branch
      %100 = sbr.rel (0) target = $region17
    $region16: #{humor_detection_forward.1} parent=1 // pred_region
      _
    $region17: #{humor_detection_forward.1} parent=1 // pred_fallthru
      _
    // Predicated region
    $region18: #{humor_detection_forward.1} parent=1 // pred_check
      _
    $region19: #{humor_detection_forward.1} parent=1 // pred_check_branch
      %102 = sbr.rel (0) target = $region21
    $region20: #{humor_detection_forward.1} parent=1 // pred_region
      _
    $region21: #{humor_detection_forward.1} parent=1 // pred_fallthru
      _
    // Predicated region
    $region22: #{humor_detection_forward.1} parent=1 // pred_check
      _
    $region23: #{humor_detection_forward.1} parent=1 // pred_check_branch
      %104 = sbr.rel (0) target = $region25
    $region24: #{humor_detection_forward.1} parent=1 // pred_region
      _
    $region25: #{humor_detection_forward.1} parent=1 // pred_fallthru
      _
    // Predicated region
    $region26: #{humor_detection_forward.1} parent=1 // pred_check
      _
    $region27: #{humor_detection_forward.1} parent=1 // pred_check_branch
      %106 = sbr.rel (0) target = $region29
    $region28: #{humor_detection_forward.1} parent=1 // pred_region
      _
    $region29: #{humor_detection_forward.1} parent=1 // pred_fallthru
      _
    // Predicated region
    $region30: #{humor_detection_forward.1} parent=1 // pred_check
      _
    $region31: #{humor_detection_forward.1} parent=1 // pred_check_branch
      %108 = sbr.rel (0) target = $region33
    $region32: #{humor_detection_forward.1} parent=1 // pred_region
      _
    $region33: #{humor_detection_forward.1} parent=1 // pred_fallthru
      _
    // Predicated region
    $region34: #{humor_detection_forward.1} parent=1 // pred_check
      _
    $region35: #{humor_detection_forward.1} parent=1 // pred_check_branch
      %110 = sbr.rel (0) target = $region37
    $region36: #{humor_detection_forward.1} parent=1 // pred_region
      _
    $region37: #{humor_detection_forward.1} parent=1 // pred_fallthru
      _
    // Predicated region
    $region38: #{humor_detection_forward.1} parent=1 // pred_check
      _
    $region39: #{humor_detection_forward.1} parent=1 // pred_check_branch
      %112 = sbr.rel (0) target = $region41
    $region40: #{humor_detection_forward.1} parent=1 // pred_region
      _
    $region41: #{humor_detection_forward.1} parent=1 // pred_fallthru
      _
    // Predicated region
    $region42: #{humor_detection_forward.1} parent=1 // pred_check
      _
    $region43: #{humor_detection_forward.1} parent=1 // pred_check_branch
      %114 = sbr.rel (0) target = $region45
    $region44: #{humor_detection_forward.1} parent=1 // pred_region
      %s116 = ssub.s32 128, 128
      %117 = vsyncadd [#allocation3], %s116
      %s119 = sshll.u32 [#allocation2], 4
      %s120 = int_to_ptr.vmem [resolvable:$true] %s119
      %122 = dma.hbm_to_vmem [thread:$0]  %s21, 128, %s120, [#allocation3]
    $region45: #{humor_detection_forward.1} parent=1 // pred_fallthru
      _
    // Predicated region
    $region46: #{humor_detection_forward.1} parent=1 // pred_check
      _
    $region47: #{humor_detection_forward.1} parent=1 // pred_check_branch
      %124 = sbr.rel (0) target = $region49
    $region48: #{humor_detection_forward.1} parent=1 // pred_region
      _
    $region49: #{humor_detection_forward.1} parent=1 // pred_fallthru
      _
    // Predicated region
    $region50: #{humor_detection_forward.1} parent=1 // pred_check
      _
    $region51: #{humor_detection_forward.1} parent=1 // pred_check_branch
      %126 = sbr.rel (0) target = $region53
    $region52: #{humor_detection_forward.1} parent=1 // pred_region
      %s128 = ssub.s32 16, 16
      %129 = vsyncadd [#allocation6], %s128
      %s131 = sshll.u32 [#allocation5], 4
      %s132 = int_to_ptr.vmem [resolvable:$true] %s131
      %134 = dma.hbm_to_vmem [thread:$0]  %s25, 16, %s132, [#allocation6]
    $region53: #{humor_detection_forward.1} parent=1 // pred_fallthru
      _
    // Predicated region
    $region54: #{humor_detection_forward.1} parent=1 // pred_check
      _
    $region55: #{humor_detection_forward.1} parent=1 // pred_check_branch
      %136 = sbr.rel (0) target = $region57
    $region56: #{humor_detection_forward.1} parent=1 // pred_region
      %s138 = ssub.s32 16, 16
      %139 = vsyncadd [#allocation6], %s138
      %s141 = sshll.u32 [#allocation7], 4
      %s142 = int_to_ptr.vmem [resolvable:$true] %s141
      %144 = dma.hbm_to_vmem [thread:$0]  %s27, 16, %s142, [#allocation6]
    $region57: #{humor_detection_forward.1} parent=1 // pred_fallthru
      _
    // Predicated region
    $region58: #{humor_detection_forward.1} parent=1 // pred_check
      _
    $region59: #{humor_detection_forward.1} parent=1 // pred_check_branch
      %146 = sbr.rel (0) target = $region61
    $region60: #{humor_detection_forward.1} parent=1 // pred_region
      _
    $region61: #{humor_detection_forward.1} parent=1 // pred_fallthru
      _
    // Predicated region
    $region62: #{humor_detection_forward.1} parent=1 // pred_check
      _
    $region63: #{humor_detection_forward.1} parent=1 // pred_check_branch
      %148 = sbr.rel (0) target = $region65
    $region64: #{humor_detection_forward.1} parent=1 // pred_region
      %s150 = ssub.s32 16, 16
      %151 = vsyncadd [#allocation9], %s150
      %s153 = sshll.u32 [#allocation8], 4
      %s154 = int_to_ptr.vmem [resolvable:$true] %s153
      %156 = dma.hbm_to_vmem [thread:$0]  %s31, 16, %s154, [#allocation9]
    $region65: #{humor_detection_forward.1} parent=1 // pred_fallthru
      _
    // Predicated region
    $region66: #{humor_detection_forward.1} parent=1 // pred_check
      _
    $region67: #{humor_detection_forward.1} parent=1 // pred_check_branch
      %158 = sbr.rel (0) target = $region69
    $region68: #{humor_detection_forward.1} parent=1 // pred_region
      _
    $region69: #{humor_detection_forward.1} parent=1 // pred_fallthru
      _
    // Predicated region
    $region70: #{humor_detection_forward.1} parent=1 // pred_check
      _
    $region71: #{humor_detection_forward.1} parent=1 // pred_check_branch
      %160 = sbr.rel (0) target = $region73
    $region72: #{humor_detection_forward.1} parent=1 // pred_region
      %s162 = ssub.s32 16, 16
      %163 = vsyncadd [#allocation9], %s162
      %s165 = sshll.u32 [#allocation10], 4
      %s166 = int_to_ptr.vmem [resolvable:$true] %s165
      %168 = dma.hbm_to_vmem [thread:$0]  %s35, 16, %s166, [#allocation9]
    $region73: #{humor_detection_forward.1} parent=1 // pred_fallthru
      _
    // Predicated region
    $region74: #{humor_detection_forward.1} parent=1 // pred_check
      _
    $region75: #{humor_detection_forward.1} parent=1 // pred_check_branch
      %170 = sbr.rel (0) target = $region77
    $region76: #{humor_detection_forward.1} parent=1 // pred_region
      _
    $region77: #{humor_detection_forward.1} parent=1 // pred_fallthru
      _
    // Predicated region
    $region78: #{humor_detection_forward.1} parent=1 // pred_check
      _
    $region79: #{humor_detection_forward.1} parent=1 // pred_check_branch
      %172 = sbr.rel (0) target = $region81
    $region80: #{humor_detection_forward.1} parent=1 // pred_region
      %s174 = ssub.s32 16, 16
      %175 = vsyncadd [#allocation12], %s174
      %s177 = sshll.u32 [#allocation11], 4
      %s178 = int_to_ptr.vmem [resolvable:$true] %s177
      %180 = dma.hbm_to_vmem [thread:$0]  %s39, 16, %s178, [#allocation12]
    $region81: #{humor_detection_forward.1} parent=1 // pred_fallthru
      _
    // Predicated region
    $region82: #{humor_detection_forward.1} parent=1 // pred_check
      _
    $region83: #{humor_detection_forward.1} parent=1 // pred_check_branch
      %182 = sbr.rel (0) target = $region85
    $region84: #{humor_detection_forward.1} parent=1 // pred_region
      _
    $region85: #{humor_detection_forward.1} parent=1 // pred_fallthru
      _
    // Predicated region
    $region86: #{humor_detection_forward.1} parent=1 // pred_check
      _
    $region87: #{humor_detection_forward.1} parent=1 // pred_check_branch
      %184 = sbr.rel (0) target = $region89
    $region88: #{humor_detection_forward.1} parent=1 // pred_region
      %s186 = ssub.s32 16, 16
      %187 = vsyncadd [#allocation12], %s186
      %s189 = sshll.u32 [#allocation13], 4
      %s190 = int_to_ptr.vmem [resolvable:$true] %s189
      %192 = dma.hbm_to_vmem [thread:$0]  %s43, 16, %s190, [#allocation12]
    $region89: #{humor_detection_forward.1} parent=1 // pred_fallthru
      _
    // Predicated region
    $region90: #{humor_detection_forward.1} parent=1 // pred_check
      _
    $region91: #{humor_detection_forward.1} parent=1 // pred_check_branch
      %194 = sbr.rel (0) target = $region93
    $region92: #{humor_detection_forward.1} parent=1 // pred_region
      %s196 = ssub.s32 16, 16
      %197 = vsyncadd [#allocation15], %s196
      %s199 = sshll.u32 [#allocation14], 4
      %s200 = int_to_ptr.vmem [resolvable:$true] %s199
      %202 = dma.hbm_to_vmem [thread:$0]  %s45, 16, %s200, [#allocation15]
    $region93: #{humor_detection_forward.1} parent=1 // pred_fallthru
      _
    // Predicated region
    $region94: #{humor_detection_forward.1} parent=1 // pred_check
      _
    $region95: #{humor_detection_forward.1} parent=1 // pred_check_branch
      %204 = sbr.rel (0) target = $region97
    $region96: #{humor_detection_forward.1} parent=1 // pred_region
      %s206 = ssub.s32 16, 16
      %207 = vsyncadd [#allocation15], %s206
      %s209 = sshll.u32 [#allocation16], 4
      %s210 = int_to_ptr.vmem [resolvable:$true] %s209
      %212 = dma.hbm_to_vmem [thread:$0]  %s47, 16, %s210, [#allocation15]
    $region97: #{humor_detection_forward.1} parent=1 // pred_fallthru
      _
    // Predicated region
    $region98: #{humor_detection_forward.1} parent=1 // pred_check
      _
    $region99: #{humor_detection_forward.1} parent=1 // pred_check_branch
      %214 = sbr.rel (0) target = $region101
    $region100: #{humor_detection_forward.1} parent=1 // pred_region
      %s216 = ssub.s32 512, 512
      %217 = vsyncadd [#allocation18], %s216
      %s218 = sshll.u32 [#allocation17], 4
      %s219 = int_to_ptr.vmem [resolvable:$true] %s218
      %224 = dma.hbm_to_vmem [thread:$0]  %s49, 512, %s219, [#allocation18], 64, 64, 4
    $region101: #{humor_detection_forward.1} parent=1 // pred_fallthru
      _
    // Predicated region
    $region102: #{humor_detection_forward.1} parent=1 // pred_check
      _
    $region103: #{humor_detection_forward.1} parent=1 // pred_check_branch
      %226 = sbr.rel (0) target = $region105
    $region104: #{humor_detection_forward.1} parent=1 // pred_region
      %s228 = ssub.s32 16, 16
      %229 = vsyncadd [#allocation18], %s228
      %s231 = sshll.u32 [#allocation19], 4
      %s232 = int_to_ptr.vmem [resolvable:$true] %s231
      %234 = dma.hbm_to_vmem [thread:$0]  %s51, 16, %s232, [#allocation18]
    $region105: #{humor_detection_forward.1} parent=1 // pred_fallthru
      _
    // Predicated region
    $region106: #{humor_detection_forward.1} parent=1 // pred_check
      _
    $region107: #{humor_detection_forward.1} parent=1 // pred_check_branch
      %236 = sbr.rel (0) target = $region109
    $region108: #{humor_detection_forward.1} parent=1 // pred_region
      _
    $region109: #{humor_detection_forward.1} parent=1 // pred_fallthru
      _
    // Predicated region
    $region110: #{humor_detection_forward.1} parent=1 // pred_check
      _
    $region111: #{humor_detection_forward.1} parent=1 // pred_check_branch
      %238 = sbr.rel (0) target = $region113
    $region112: #{humor_detection_forward.1} parent=1 // pred_region
      %s240 = ssub.s32 16, 16
      %241 = vsyncadd [#allocation21], %s240
      %s243 = sshll.u32 [#allocation20], 4
      %s244 = int_to_ptr.vmem [resolvable:$true] %s243
      %246 = dma.hbm_to_vmem [thread:$0]  %s55, 16, %s244, [#allocation21]
    $region113: #{humor_detection_forward.1} parent=1 // pred_fallthru
      _
    // Predicated region
    $region114: #{humor_detection_forward.1} parent=1 // pred_check
      _
    $region115: #{humor_detection_forward.1} parent=1 // pred_check_branch
      %248 = sbr.rel (0) target = $region117
    $region116: #{humor_detection_forward.1} parent=1 // pred_region
      %s250 = ssub.s32 16, 16
      %251 = vsyncadd [#allocation21], %s250
      %s253 = sshll.u32 [#allocation22], 4
      %s254 = int_to_ptr.vmem [resolvable:$true] %s253
      %256 = dma.hbm_to_vmem [thread:$0]  %s57, 16, %s254, [#allocation21]
    $region117: #{humor_detection_forward.1} parent=1 // pred_fallthru
      _
    // Predicated region
    $region118: #{humor_detection_forward.1} parent=1 // pred_check
      _
    $region119: #{humor_detection_forward.1} parent=1 // pred_check_branch
      %258 = sbr.rel (0) target = $region121
    $region120: #{humor_detection_forward.1} parent=1 // pred_region
      %s260 = ssub.s32 16, 16
      %261 = vsyncadd [#allocation24], %s260
      %s263 = sshll.u32 [#allocation23], 4
      %s264 = int_to_ptr.vmem [resolvable:$true] %s263
      %266 = dma.hbm_to_vmem [thread:$0]  %s59, 16, %s264, [#allocation24]
    $region121: #{humor_detection_forward.1} parent=1 // pred_fallthru
      _
    // Predicated region
    $region122: #{humor_detection_forward.1} parent=1 // pred_check
      _
    $region123: #{humor_detection_forward.1} parent=1 // pred_check_branch
      %268 = sbr.rel (0) target = $region125
    $region124: #{humor_detection_forward.1} parent=1 // pred_region
      _
    $region125: #{humor_detection_forward.1} parent=1 // pred_fallthru
      _
    // Predicated region
    $region126: #{humor_detection_forward.1} parent=1 // pred_check
      _
    $region127: #{humor_detection_forward.1} parent=1 // pred_check_branch
      %270 = sbr.rel (0) target = $region129
    $region128: #{humor_detection_forward.1} parent=1 // pred_region
      %s272 = ssub.s32 16, 16
      %273 = vsyncadd [#allocation24], %s272
      %s275 = sshll.u32 [#allocation25], 4
      %s276 = int_to_ptr.vmem [resolvable:$true] %s275
      %278 = dma.hbm_to_vmem [thread:$0]  %s63, 16, %s276, [#allocation24]
    $region129: #{humor_detection_forward.1} parent=1 // pred_fallthru
      _
    // Predicated region
    $region130: #{humor_detection_forward.1} parent=1 // pred_check
      _
    $region131: #{humor_detection_forward.1} parent=1 // pred_check_branch
      %280 = sbr.rel (0) target = $region133
    $region132: #{humor_detection_forward.1} parent=1 // pred_region
      %s282 = ssub.s32 16, 16
      %283 = vsyncadd [#allocation27], %s282
      %s285 = sshll.u32 [#allocation26], 4
      %s286 = int_to_ptr.vmem [resolvable:$true] %s285
      %288 = dma.hbm_to_vmem [thread:$0]  %s65, 16, %s286, [#allocation27]
    $region133: #{humor_detection_forward.1} parent=1 // pred_fallthru
      _
    // Predicated region
    $region134: #{humor_detection_forward.1} parent=1 // pred_check
      _
    $region135: #{humor_detection_forward.1} parent=1 // pred_check_branch
      %290 = sbr.rel (0) target = $region137
    $region136: #{humor_detection_forward.1} parent=1 // pred_region
      %s292 = ssub.s32 256, 256
      %293 = vsyncadd [#allocation27], %s292
      %s294 = sshll.u32 [#allocation28], 4
      %s295 = int_to_ptr.vmem [resolvable:$true] %s294
      %300 = dma.hbm_to_vmem [thread:$0]  %s67, 256, %s295, [#allocation27], 128, 128, 8
    $region137: #{humor_detection_forward.1} parent=1 // pred_fallthru
      _
    // Predicated region
    $region138: #{humor_detection_forward.1} parent=1 // pred_check
      _
    $region139: #{humor_detection_forward.1} parent=1 // pred_check_branch
      %302 = sbr.rel (0) target = $region141
    $region140: #{humor_detection_forward.1} parent=1 // pred_region
      _
    $region141: #{humor_detection_forward.1} parent=1 // pred_fallthru
      _
    // Predicated region
    $region142: #{humor_detection_forward.1} parent=1 // pred_check
      _
    $region143: #{humor_detection_forward.1} parent=1 // pred_check_branch
      %304 = sbr.rel (0) target = $region145
    $region144: #{humor_detection_forward.1} parent=1 // pred_region
      %s306 = ssub.s32 16, 16
      %307 = vsyncadd [#allocation30], %s306
      %s309 = sshll.u32 [#allocation29], 4
      %s310 = int_to_ptr.vmem [resolvable:$true] %s309
      %312 = dma.hbm_to_vmem [thread:$0]  %s71, 16, %s310, [#allocation30]
    $region145: #{humor_detection_forward.1} parent=1 // pred_fallthru
      _
    // Predicated region
    $region146: #{humor_detection_forward.1} parent=1 // pred_check
      _
    $region147: #{humor_detection_forward.1} parent=1 // pred_check_branch
      %314 = sbr.rel (0) target = $region149
    $region148: #{humor_detection_forward.1} parent=1 // pred_region
      %315 = dma.done [#allocation3], 128
    $region149: #{humor_detection_forward.1} parent=1 // pred_fallthru
      _
    // Predicated region
    $region150: #{humor_detection_forward.1} parent=1 // pred_check
      _
    $region151: #{humor_detection_forward.1} parent=1 // pred_check_branch
      %317 = sbr.rel (0) target = $region153
    $region152: #{humor_detection_forward.1} parent=1 // pred_region
      %318 = dma.done [#allocation6], 16
    $region153: #{humor_detection_forward.1} parent=1 // pred_fallthru
      _
    // Predicated region
    $region154: #{humor_detection_forward.1} parent=1 // pred_check
      _
    $region155: #{humor_detection_forward.1} parent=1 // pred_check_branch
      %320 = sbr.rel (0) target = $region157
    $region156: #{humor_detection_forward.1} parent=1 // pred_region
      %321 = dma.done [#allocation6], 16
    $region157: #{humor_detection_forward.1} parent=1 // pred_fallthru
      _
    // Predicated region
    $region158: #{humor_detection_forward.1} parent=1 // pred_check
      _
    $region159: #{humor_detection_forward.1} parent=1 // pred_check_branch
      %323 = sbr.rel (0) target = $region161
    $region160: #{humor_detection_forward.1} parent=1 // pred_region
      %324 = dma.done [#allocation9], 16
    $region161: #{humor_detection_forward.1} parent=1 // pred_fallthru
      _
    // Predicated region
    $region162: #{humor_detection_forward.1} parent=1 // pred_check
      _
    $region163: #{humor_detection_forward.1} parent=1 // pred_check_branch
      %326 = sbr.rel (0) target = $region165
    $region164: #{humor_detection_forward.1} parent=1 // pred_region
      %327 = dma.done [#allocation9], 16
    $region165: #{humor_detection_forward.1} parent=1 // pred_fallthru
      _
    // Predicated region
    $region166: #{humor_detection_forward.1} parent=1 // pred_check
      _
    $region167: #{humor_detection_forward.1} parent=1 // pred_check_branch
      %329 = sbr.rel (0) target = $region169
    $region168: #{humor_detection_forward.1} parent=1 // pred_region
      %330 = dma.done [#allocation12], 16
    $region169: #{humor_detection_forward.1} parent=1 // pred_fallthru
      _
    // Predicated region
    $region170: #{humor_detection_forward.1} parent=1 // pred_check
      _
    $region171: #{humor_detection_forward.1} parent=1 // pred_check_branch
      %332 = sbr.rel (0) target = $region173
    $region172: #{humor_detection_forward.1} parent=1 // pred_region
      %333 = dma.done [#allocation12], 16
    $region173: #{humor_detection_forward.1} parent=1 // pred_fallthru
      _
    // Predicated region
    $region174: #{humor_detection_forward.1} parent=1 // pred_check
      _
    $region175: #{humor_detection_forward.1} parent=1 // pred_check_branch
      %335 = sbr.rel (0) target = $region177
    $region176: #{humor_detection_forward.1} parent=1 // pred_region
      %336 = dma.done [#allocation15], 16
    $region177: #{humor_detection_forward.1} parent=1 // pred_fallthru
      _
    // Predicated region
    $region178: #{humor_detection_forward.1} parent=1 // pred_check
      _
    $region179: #{humor_detection_forward.1} parent=1 // pred_check_branch
      %338 = sbr.rel (0) target = $region181
    $region180: #{humor_detection_forward.1} parent=1 // pred_region
      %339 = dma.done [#allocation15], 16
    $region181: #{humor_detection_forward.1} parent=1 // pred_fallthru
      _
    // Predicated region
    $region182: #{humor_detection_forward.1} parent=1 // pred_check
      _
    $region183: #{humor_detection_forward.1} parent=1 // pred_check_branch
      %341 = sbr.rel (0) target = $region185
    $region184: #{humor_detection_forward.1} parent=1 // pred_region
      %342 = dma.done [#allocation18], 512
    $region185: #{humor_detection_forward.1} parent=1 // pred_fallthru
      _
    // Predicated region
    $region186: #{humor_detection_forward.1} parent=1 // pred_check
      _
    $region187: #{humor_detection_forward.1} parent=1 // pred_check_branch
      %344 = sbr.rel (0) target = $region189
    $region188: #{humor_detection_forward.1} parent=1 // pred_region
      %345 = dma.done [#allocation18], 16
    $region189: #{humor_detection_forward.1} parent=1 // pred_fallthru
      _
    // Predicated region
    $region190: #{humor_detection_forward.1} parent=1 // pred_check
      _
    $region191: #{humor_detection_forward.1} parent=1 // pred_check_branch
      %347 = sbr.rel (0) target = $region193
    $region192: #{humor_detection_forward.1} parent=1 // pred_region
      %348 = dma.done [#allocation21], 16
    $region193: #{humor_detection_forward.1} parent=1 // pred_fallthru
      _
    // Predicated region
    $region194: #{humor_detection_forward.1} parent=1 // pred_check
      _
    $region195: #{humor_detection_forward.1} parent=1 // pred_check_branch
      %350 = sbr.rel (0) target = $region197
    $region196: #{humor_detection_forward.1} parent=1 // pred_region
      %351 = dma.done [#allocation21], 16
    $region197: #{humor_detection_forward.1} parent=1 // pred_fallthru
      _
    // Predicated region
    $region198: #{humor_detection_forward.1} parent=1 // pred_check
      _
    $region199: #{humor_detection_forward.1} parent=1 // pred_check_branch
      %353 = sbr.rel (0) target = $region201
    $region200: #{humor_detection_forward.1} parent=1 // pred_region
      %354 = dma.done [#allocation24], 16
    $region201: #{humor_detection_forward.1} parent=1 // pred_fallthru
      _
    // Predicated region
    $region202: #{humor_detection_forward.1} parent=1 // pred_check
      _
    $region203: #{humor_detection_forward.1} parent=1 // pred_check_branch
      %356 = sbr.rel (0) target = $region205
    $region204: #{humor_detection_forward.1} parent=1 // pred_region
      %357 = dma.done [#allocation24], 16
    $region205: #{humor_detection_forward.1} parent=1 // pred_fallthru
      _
    // Predicated region
    $region206: #{humor_detection_forward.1} parent=1 // pred_check
      _
    $region207: #{humor_detection_forward.1} parent=1 // pred_check_branch
      %359 = sbr.rel (0) target = $region209
    $region208: #{humor_detection_forward.1} parent=1 // pred_region
      %360 = dma.done [#allocation27], 16
    $region209: #{humor_detection_forward.1} parent=1 // pred_fallthru
      _
    // Predicated region
    $region210: #{humor_detection_forward.1} parent=1 // pred_check
      _
    $region211: #{humor_detection_forward.1} parent=1 // pred_check_branch
      %362 = sbr.rel (0) target = $region213
    $region212: #{humor_detection_forward.1} parent=1 // pred_region
      %363 = dma.done [#allocation27], 256
    $region213: #{humor_detection_forward.1} parent=1 // pred_fallthru
      _
    // Predicated region
    $region214: #{humor_detection_forward.1} parent=1 // pred_check
      _
    $region215: #{humor_detection_forward.1} parent=1 // pred_check_branch
      %365 = sbr.rel (0) target = $region217
    $region216: #{humor_detection_forward.1} parent=1 // pred_region
      %366 = dma.done [#allocation30], 16
    $region217: #{humor_detection_forward.1} parent=1 // pred_fallthru
      _
    %v368 = vld [vmem:[%s1] sm:$0xff]
    %v369 = vld [vmem:[%s1 + $0x8] sm:$0xff]
    %v370 = vlaneseq
    %v371 = vand.u32 %v370, 127
    %372 = vset.pattern.permute.xlu0 0
    %373 = vperm.xlu0 %372, %v368
    %v374 = vpop.permute.xlu0 %373
    %375 = vset.pattern.permute.xlu0 0
    %376 = vperm.xlu0 %375, %v369
    %v377 = vpop.permute.xlu0 %376
    %vm378 = vcmp.eq.s32.totalorder %v371, %v374
    %vm379 = vcmp.eq.s32.totalorder %v371, %v377
    %v380 = vsel %vm378, 1, 0
    %v381 = vsel %vm379, 1, 0
    %v382 = vcvt.s32.f32 %v380
    %v383 = vcvt.s32.f32 %v381
    %v384 = vpack.c.bf16 %v383, %v382
    %v385 = vld [vmem:[%s19] sm:$0xf]
    %v386 = vld [vmem:[%s19 + $0x4] sm:$0xf]
    %v387 = vld [vmem:[%s19 + $0x8] sm:$0xf]
    %v388 = vld [vmem:[%s19 + $0xc] sm:$0xf]
    %v389 = vld [vmem:[%s19 + $0x10] sm:$0xf]
    %v390 = vld [vmem:[%s19 + $0x14] sm:$0xf]
    %v391 = vld [vmem:[%s19 + $0x18] sm:$0xf]
    %v392 = vld [vmem:[%s19 + $0x1c] sm:$0xf]
    %v393 = vld [vmem:[%s19 + $0x20] sm:$0xf]
    %v394 = vld [vmem:[%s19 + $0x24] sm:$0xf]
    %v395 = vld [vmem:[%s19 + $0x28] sm:$0xf]
    %v396 = vld [vmem:[%s19 + $0x2c] sm:$0xf]
    %v397 = vld [vmem:[%s19 + $0x30] sm:$0xf]
    %v398 = vld [vmem:[%s19 + $0x34] sm:$0xf]
    %v399 = vld [vmem:[%s19 + $0x38] sm:$0xf]
    %v400 = vld [vmem:[%s19 + $0x3c] sm:$0xf]
    %v401 = vld [vmem:[#allocation2] sm:$0xff]
    %v418 = vunpack.c.l.b16 %v385
    %v419 = vunpack.c.l.b16 %v386
    %v420 = vunpack.c.l.b16 %v387
    %v421 = vunpack.c.l.b16 %v388
    %v422 = vunpack.c.l.b16 %v389
    %v423 = vunpack.c.l.b16 %v390
    %v424 = vunpack.c.l.b16 %v391
    %v425 = vunpack.c.l.b16 %v392
    %v426 = vunpack.c.l.b16 %v393
    %v427 = vunpack.c.l.b16 %v394
    %v428 = vunpack.c.l.b16 %v395
    %v429 = vunpack.c.l.b16 %v396
    %v430 = vunpack.c.l.b16 %v397
    %v431 = vunpack.c.l.b16 %v398
    %v432 = vunpack.c.l.b16 %v399
    %v433 = vunpack.c.l.b16 %v400
    %v434 = vpack.c.b16 %v419, %v418
    %v435 = vpack.c.b16 %v421, %v420
    %v436 = vpack.c.b16 %v423, %v422
    %v437 = vpack.c.b16 %v425, %v424
    %v438 = vpack.c.b16 %v427, %v426
    %v439 = vpack.c.b16 %v429, %v428
    %v440 = vpack.c.b16 %v431, %v430
    %v441 = vpack.c.b16 %v433, %v432
    %450 = vmatprep.subr.bf16.mxu0 0
    %451 = vmatpush1.bf16.msra.mxu0 %v434
    %452 = vmatprep.subr.bf16.mxu0 0
    %453 = vmatpush1.bf16.msra.mxu0 %v435
    %454 = vmatprep.subr.bf16.mxu0 0
    %455 = vmatpush1.bf16.msra.mxu0 %v436
    %456 = vmatprep.subr.bf16.mxu0 0
    %457 = vmatpush1.bf16.msra.mxu0 %v437
    %458 = vmatprep.subr.bf16.mxu0 0
    %459 = vmatpush1.bf16.msra.mxu0 %v438
    %460 = vmatprep.subr.bf16.mxu0 0
    %461 = vmatpush1.bf16.msra.mxu0 %v439
    %462 = vmatprep.subr.bf16.mxu0 0
    %463 = vmatpush1.bf16.msra.mxu0 %v440
    %464 = vmatprep.subr.bf16.mxu0 0
    %465 = vmatpush1.bf16.msra.mxu0 %v441
    %466 = vmatprep.subr.bf16.mxu0 0
    %467 = vmatpush1.bf16.msra.mxu0 0
    %468 = vmatprep.subr.bf16.mxu0 0
    %469 = vmatpush1.bf16.msra.mxu0 0
    %470 = vmatprep.subr.bf16.mxu0 0
    %471 = vmatpush1.bf16.msra.mxu0 0
    %472 = vmatprep.subr.bf16.mxu0 0
    %473 = vmatpush1.bf16.msra.mxu0 0
    %474 = vmatprep.subr.bf16.mxu0 0
    %475 = vmatpush1.bf16.msra.mxu0 0
    %476 = vmatprep.subr.bf16.mxu0 0
    %477 = vmatpush1.bf16.msra.mxu0 0
    %478 = vmatprep.subr.bf16.mxu0 0
    %479 = vmatpush1.bf16.msra.mxu0 0
    %480 = vmatprep.subr.bf16.mxu0 0
    %481 = vmatpush1.bf16.msra.mxu0 0
    %482 = vmatprep.mubr.bf16.mxu0 0
    %483 = vmatmul.mubr.bf16.gmra.mrb[0].mxu0 %v384
    %v484 = vpop.f32.mrb[0].mxu0
    %v485 = vadd.f32 %v401, %v484
    %v486 = vpop.f32.mrb[0].mxu0
    %v487 = vpop.f32.mrb[0].mxu0
    %v488 = vadd.f32 %v401, %v487
    %v489 = vpop.f32.mrb[0].mxu0
    %490 = vdwg.mxu0
    %v491 = vld [vmem:[%s3] sm:$0xff]
    %v492 = vld [vmem:[%s3 + $0x8] sm:$0xff]
    %v493 = vcvt.s32.f32 %v491
    %v494 = vcvt.s32.f32 %v492
    %v495 = vld [vmem:[%s23] sm:$0x1]
    %v496 = vsub.f32 1.0, %v493
    %v497 = vsub.f32 1.0, %v494
    %v498 = vlaneseq
    %v499 = vshrl.u32 %v498, 7
    %v500 = vsub.s32 0, %v499
    %v501 = vrot.slane %v495, %v500
    %503 = vset.pattern.permute.xlu0 0
    %504 = vperm.xlu0 %503, %v496
    %v505 = vpop.permute.xlu0 %504
    %508 = vset.pattern.permute.xlu0 0
    %509 = vperm.xlu0 %508, %v497
    %v510 = vpop.permute.xlu0 %509
    %v512 = vmul.f32 %v501, %v505
    %v513 = vmul.f32 %v501, %v510
    %v514 = vadd.f32 %v485, %v512
    %v515 = vadd.f32 %v488, %v513
    %v516 = vld [vmem:[%s23 + $0x1] sm:$0x1]
    %v517 = vlaneseq
    %v518 = vshrl.u32 %v517, 7
    %v519 = vsub.s32 0, %v518
    %v520 = vrot.slane %v516, %v519
    %522 = vset.pattern.permute.xlu0 0
    %523 = vperm.xlu0 %522, %v493
    %v524 = vpop.permute.xlu0 %523
    %527 = vset.pattern.permute.xlu0 0
    %528 = vperm.xlu0 %527, %v494
    %v529 = vpop.permute.xlu0 %528
    %v531 = vmul.f32 %v520, %v524
    %v532 = vmul.f32 %v520, %v529
    %v533 = vadd.f32 %v514, %v531
    %v534 = vadd.f32 %v515, %v532
    %v535 = vld [vmem:[#allocation5] sm:$0x1]
    %v536 = vld [vmem:[#allocation7] sm:$0x1]
    %vm537 = vcmask 523264
    %v538 = vsel %vm537, %v533, 0.0
    %539 = vadd.xlane.f32.xlu0 %v538
    %v540 = vpop.xlane.xlu0 %539
    %v541 = vsel %vm537, %v534, 0.0
    %542 = vadd.xlane.f32.xlu0 %v541
    %v543 = vpop.xlane.xlu0 %542
    %v544 = vrcp.pop 64.0
    %v545 = vmul.f32 %v540, %v544
    %v546 = vmul.f32 %v543, %v544
    %v547 = vsub.f32 %v533, %v545
    %v548 = vsub.f32 %v534, %v546
    %v549 = vmul.f32 %v547, %v547
    %v550 = vmul.f32 %v548, %v548
    %v551 = vsel %vm537, %v549, 0.0
    %552 = vadd.xlane.f32.xlu0 %v551
    %v553 = vpop.xlane.xlu0 %552
    %v554 = vsel %vm537, %v550, 0.0
    %555 = vadd.xlane.f32.xlu0 %v554
    %v556 = vpop.xlane.xlu0 %555
    %v557 = vmul.f32 %v553, %v544
    %v558 = vmul.f32 %v556, %v544
    %v559 = vadd.f32 %v557, 1e-12
    %v560 = vadd.f32 %v558, 1e-12
    %v561 = vrsqrt.pop %v559
    %v562 = vrsqrt.pop %v560
    %v563 = vmul.f32 %v547, %v561
    %v564 = vmul.f32 %v548, %v562
    %v566 = vlaneseq
    %v567 = vshrl.u32 %v566, 7
    %v568 = vsub.s32 0, %v567
    %v569 = vrot.slane %v535, %v568
    %v571 = vmul.f32 %v563, %v569
    %v572 = vmul.f32 %v564, %v569
    %v574 = vlaneseq
    %v575 = vshrl.u32 %v574, 7
    %v576 = vsub.s32 0, %v575
    %v577 = vrot.slane %v536, %v576
    %v579 = vadd.f32 %v571, %v577
    %v580 = vadd.f32 %v572, %v577
    %v581 = vpack.c.bf16 %v580, %v579
    %v582 = vld [vmem:[%s29] sm:$0xf]
    %v583 = vld [vmem:[%s29 + $0x4] sm:$0xf]
    %v584 = vld [vmem:[%s29 + $0x8] sm:$0xf]
    %v585 = vld [vmem:[%s29 + $0xc] sm:$0xf]
    %v586 = vld [vmem:[%s29 + $0x10] sm:$0xf]
    %v587 = vld [vmem:[%s29 + $0x14] sm:$0xf]
    %v588 = vld [vmem:[%s29 + $0x18] sm:$0xf]
    %v589 = vld [vmem:[%s29 + $0x1c] sm:$0xf]
    %v590 = vld [vmem:[#allocation8] sm:$0x1]
    %v592 = vlaneseq
    %v593 = vshrl.u32 %v592, 7
    %v594 = vsub.s32 0, %v593
    %v595 = vrot.slane %v590, %v594
    %v605 = vunpack.c.l.b16 %v582
    %v606 = vunpack.c.l.b16 %v583
    %v607 = vunpack.c.l.b16 %v584
    %v608 = vunpack.c.l.b16 %v585
    %v609 = vunpack.c.l.b16 %v586
    %v610 = vunpack.c.l.b16 %v587
    %v611 = vunpack.c.l.b16 %v588
    %v612 = vunpack.c.l.b16 %v589
    %v613 = vpack.c.b16 %v606, %v605
    %v614 = vpack.c.b16 %v608, %v607
    %v615 = vpack.c.b16 %v610, %v609
    %v616 = vpack.c.b16 %v612, %v611
    %v622 = vsel %vm537, %v581, 0
    %624 = vmatprep.subr.bf16.mxu0 0
    %625 = vmatpush1.bf16.msra.mxu0 %v613
    %626 = vmatprep.subr.bf16.mxu0 0
    %627 = vmatpush1.bf16.msra.mxu0 %v614
    %628 = vmatprep.subr.bf16.mxu0 0
    %629 = vmatpush1.bf16.msra.mxu0 %v615
    %630 = vmatprep.subr.bf16.mxu0 0
    %631 = vmatpush1.bf16.msra.mxu0 %v616
    %632 = vmatprep.subr.bf16.mxu0 0
    %633 = vmatpush1.bf16.msra.mxu0 0
    %634 = vmatprep.subr.bf16.mxu0 0
    %635 = vmatpush1.bf16.msra.mxu0 0
    %636 = vmatprep.subr.bf16.mxu0 0
    %637 = vmatpush1.bf16.msra.mxu0 0
    %638 = vmatprep.subr.bf16.mxu0 0
    %639 = vmatpush1.bf16.msra.mxu0 0
    %640 = vmatprep.subr.bf16.mxu0 0
    %641 = vmatpush1.bf16.msra.mxu0 0
    %642 = vmatprep.subr.bf16.mxu0 0
    %643 = vmatpush1.bf16.msra.mxu0 0
    %644 = vmatprep.subr.bf16.mxu0 0
    %645 = vmatpush1.bf16.msra.mxu0 0
    %646 = vmatprep.subr.bf16.mxu0 0
    %647 = vmatpush1.bf16.msra.mxu0 0
    %648 = vmatprep.subr.bf16.mxu0 0
    %649 = vmatpush1.bf16.msra.mxu0 0
    %650 = vmatprep.subr.bf16.mxu0 0
    %651 = vmatpush1.bf16.msra.mxu0 0
    %652 = vmatprep.subr.bf16.mxu0 0
    %653 = vmatpush1.bf16.msra.mxu0 0
    %654 = vmatprep.subr.bf16.mxu0 0
    %655 = vmatpush1.bf16.msra.mxu0 0
    %656 = vmatprep.mubr.bf16.mxu0 0
    %657 = vmatmul.mubr.bf16.gmra.mrb[0].mxu0 %v622
    %v658 = vpop.f32.mrb[0].mxu0
    %v659 = vadd.f32 %v595, %v658
    %v660 = vpop.f32.mrb[0].mxu0
    %v661 = vpop.f32.mrb[0].mxu0
    %v662 = vadd.f32 %v595, %v661
    %v663 = vpop.f32.mrb[0].mxu0
    %664 = vdwg.mxu0
    %v665 = vld [vmem:[%s33] sm:$0xf]
    %v666 = vld [vmem:[%s33 + $0x4] sm:$0xf]
    %v667 = vld [vmem:[%s33 + $0x8] sm:$0xf]
    %v668 = vld [vmem:[%s33 + $0xc] sm:$0xf]
    %v669 = vld [vmem:[%s33 + $0x10] sm:$0xf]
    %v670 = vld [vmem:[%s33 + $0x14] sm:$0xf]
    %v671 = vld [vmem:[%s33 + $0x18] sm:$0xf]
    %v672 = vld [vmem:[%s33 + $0x1c] sm:$0xf]
    %v673 = vld [vmem:[#allocation10] sm:$0x1]
    %v675 = vlaneseq
    %v676 = vshrl.u32 %v675, 7
    %v677 = vsub.s32 0, %v676
    %v678 = vrot.slane %v673, %v677
    %v688 = vunpack.c.l.b16 %v665
    %v689 = vunpack.c.l.b16 %v666
    %v690 = vunpack.c.l.b16 %v667
    %v691 = vunpack.c.l.b16 %v668
    %v692 = vunpack.c.l.b16 %v669
    %v693 = vunpack.c.l.b16 %v670
    %v694 = vunpack.c.l.b16 %v671
    %v695 = vunpack.c.l.b16 %v672
    %v696 = vpack.c.b16 %v689, %v688
    %v697 = vpack.c.b16 %v691, %v690
    %v698 = vpack.c.b16 %v693, %v692
    %v699 = vpack.c.b16 %v695, %v694
    %704 = vmatprep.subr.bf16.mxu0 0
    %705 = vmatpush1.bf16.msra.mxu0 %v696
    %706 = vmatprep.subr.bf16.mxu0 0
    %707 = vmatpush1.bf16.msra.mxu0 %v697
    %708 = vmatprep.subr.bf16.mxu0 0
    %709 = vmatpush1.bf16.msra.mxu0 %v698
    %710 = vmatprep.subr.bf16.mxu0 0
    %711 = vmatpush1.bf16.msra.mxu0 %v699
    %712 = vmatprep.subr.bf16.mxu0 0
    %713 = vmatpush1.bf16.msra.mxu0 0
    %714 = vmatprep.subr.bf16.mxu0 0
    %715 = vmatpush1.bf16.msra.mxu0 0
    %716 = vmatprep.subr.bf16.mxu0 0
    %717 = vmatpush1.bf16.msra.mxu0 0
    %718 = vmatprep.subr.bf16.mxu0 0
    %719 = vmatpush1.bf16.msra.mxu0 0
    %720 = vmatprep.subr.bf16.mxu0 0
    %721 = vmatpush1.bf16.msra.mxu0 0
    %722 = vmatprep.subr.bf16.mxu0 0
    %723 = vmatpush1.bf16.msra.mxu0 0
    %724 = vmatprep.subr.bf16.mxu0 0
    %725 = vmatpush1.bf16.msra.mxu0 0
    %726 = vmatprep.subr.bf16.mxu0 0
    %727 = vmatpush1.bf16.msra.mxu0 0
    %728 = vmatprep.subr.bf16.mxu0 0
    %729 = vmatpush1.bf16.msra.mxu0 0
    %730 = vmatprep.subr.bf16.mxu0 0
    %731 = vmatpush1.bf16.msra.mxu0 0
    %732 = vmatprep.subr.bf16.mxu0 0
    %733 = vmatpush1.bf16.msra.mxu0 0
    %734 = vmatprep.subr.bf16.mxu0 0
    %735 = vmatpush1.bf16.msra.mxu0 0
    %736 = vmatprep.mubr.bf16.mxu0 0
    %737 = vmatmul.mubr.bf16.gmra.mrb[0].mxu0 %v622
    %v738 = vpop.f32.mrb[0].mxu0
    %v739 = vadd.f32 %v678, %v738
    %v740 = vpop.f32.mrb[0].mxu0
    %v741 = vpop.f32.mrb[0].mxu0
    %v742 = vadd.f32 %v678, %v741
    %v743 = vpop.f32.mrb[0].mxu0
    %744 = vdwg.mxu0
    %v745 = vld [vmem:[%s37] sm:$0xf]
    %v746 = vld [vmem:[%s37 + $0x4] sm:$0xf]
    %v747 = vld [vmem:[%s37 + $0x8] sm:$0xf]
    %v748 = vld [vmem:[%s37 + $0xc] sm:$0xf]
    %v749 = vld [vmem:[%s37 + $0x10] sm:$0xf]
    %v750 = vld [vmem:[%s37 + $0x14] sm:$0xf]
    %v751 = vld [vmem:[%s37 + $0x18] sm:$0xf]
    %v752 = vld [vmem:[%s37 + $0x1c] sm:$0xf]
    %v753 = vld [vmem:[#allocation11] sm:$0x1]
    %v755 = vlaneseq
    %v756 = vshrl.u32 %v755, 7
    %v757 = vsub.s32 0, %v756
    %v758 = vrot.slane %v753, %v757
    %v768 = vunpack.c.l.b16 %v745
    %v769 = vunpack.c.l.b16 %v746
    %v770 = vunpack.c.l.b16 %v747
    %v771 = vunpack.c.l.b16 %v748
    %v772 = vunpack.c.l.b16 %v749
    %v773 = vunpack.c.l.b16 %v750
    %v774 = vunpack.c.l.b16 %v751
    %v775 = vunpack.c.l.b16 %v752
    %v776 = vpack.c.b16 %v769, %v768
    %v777 = vpack.c.b16 %v771, %v770
    %v778 = vpack.c.b16 %v773, %v772
    %v779 = vpack.c.b16 %v775, %v774
    %784 = vmatprep.subr.bf16.mxu0 0
    %785 = vmatpush1.bf16.msra.mxu0 %v776
    %786 = vmatprep.subr.bf16.mxu0 0
    %787 = vmatpush1.bf16.msra.mxu0 %v777
    %788 = vmatprep.subr.bf16.mxu0 0
    %789 = vmatpush1.bf16.msra.mxu0 %v778
    %790 = vmatprep.subr.bf16.mxu0 0
    %791 = vmatpush1.bf16.msra.mxu0 %v779
    %792 = vmatprep.subr.bf16.mxu0 0
    %793 = vmatpush1.bf16.msra.mxu0 0
    %794 = vmatprep.subr.bf16.mxu0 0
    %795 = vmatpush1.bf16.msra.mxu0 0
    %796 = vmatprep.subr.bf16.mxu0 0
    %797 = vmatpush1.bf16.msra.mxu0 0
    %798 = vmatprep.subr.bf16.mxu0 0
    %799 = vmatpush1.bf16.msra.mxu0 0
    %800 = vmatprep.subr.bf16.mxu0 0
    %801 = vmatpush1.bf16.msra.mxu0 0
    %802 = vmatprep.subr.bf16.mxu0 0
    %803 = vmatpush1.bf16.msra.mxu0 0
    %804 = vmatprep.subr.bf16.mxu0 0
    %805 = vmatpush1.bf16.msra.mxu0 0
    %806 = vmatprep.subr.bf16.mxu0 0
    %807 = vmatpush1.bf16.msra.mxu0 0
    %808 = vmatprep.subr.bf16.mxu0 0
    %809 = vmatpush1.bf16.msra.mxu0 0
    %810 = vmatprep.subr.bf16.mxu0 0
    %811 = vmatpush1.bf16.msra.mxu0 0
    %812 = vmatprep.subr.bf16.mxu0 0
    %813 = vmatpush1.bf16.msra.mxu0 0
    %814 = vmatprep.subr.bf16.mxu0 0
    %815 = vmatpush1.bf16.msra.mxu0 0
    %816 = vmatprep.mubr.bf16.mxu0 0
    %817 = vmatmul.mubr.bf16.gmra.mrb[0].mxu0 %v622
    %v818 = vpop.f32.mrb[0].mxu0
    %v819 = vadd.f32 %v758, %v818
    %v820 = vpop.f32.mrb[0].mxu0
    %v821 = vpop.f32.mrb[0].mxu0
    %v822 = vadd.f32 %v758, %v821
    %v823 = vpop.f32.mrb[0].mxu0
    %824 = vdwg.mxu0
    %v825 = vld [vmem:[%s13] sm:$0xff]
    %v826 = vld [vmem:[%s13 + $0x8] sm:$0xff]
    %v827 = vld [vmem:[%s13 + $0x10] sm:$0xff]
    %v828 = vld [vmem:[%s13 + $0x18] sm:$0xff]
    %v829 = vld [vmem:[%s13 + $0x20] sm:$0xff]
    %v830 = vld [vmem:[%s13 + $0x28] sm:$0xff]
    %v831 = vld [vmem:[%s13 + $0x30] sm:$0xff]
    %v832 = vld [vmem:[%s13 + $0x38] sm:$0xff]
    %v833 = vmul.f32 %v739, %v825
    %v834 = vmul.f32 %v742, %v826
    %v835 = vmul.f32 %v739, %v827
    %v836 = vmul.f32 %v742, %v828
    %v837 = vmul.f32 %v739, %v829
    %v838 = vmul.f32 %v742, %v830
    %v839 = vmul.f32 %v739, %v831
    %v840 = vmul.f32 %v742, %v832
    %v841 = vmul.f32 %v819, %v825
    %v842 = vmul.f32 %v822, %v826
    %v843 = vmul.f32 %v819, %v827
    %v844 = vmul.f32 %v822, %v828
    %v845 = vmul.f32 %v819, %v829
    %v846 = vmul.f32 %v822, %v830
    %v847 = vmul.f32 %v819, %v831
    %v848 = vmul.f32 %v822, %v832
    %v849 = vld [vmem:[%s11] sm:$0xff]
    %v850 = vld [vmem:[%s11 + $0x8] sm:$0xff]
    %v851 = vld [vmem:[%s5] sm:$0x1]
    %v853 = vlaneseq
    %v854 = vshrl.u32 %v853, 7
    %v855 = vsub.s32 0, %v854
    %v856 = vrot.slane %v851, %v855
    %857 = vrot.lane.b32.xlu0 %v856, 16
    %v858 = vpop.permute.xlu0 %857
    %860 = vrot.lane.b32.xlu0 %v856, 32
    %v861 = vpop.permute.xlu0 %860
    %863 = vrot.lane.b32.xlu0 %v856, 48
    %v864 = vpop.permute.xlu0 %863
    %vm866 = vcmask 130048
    %v867 = vsel %vm866, %v851, %v858
    %vm868 = vcmask 261120
    %v869 = vsel %vm868, %v867, %v861
    %vm870 = vcmask 392192
    %v871 = vsel %vm870, %v869, %v864
    %v872 = vsub.f32 %v871, 1.0
    %v873 = vmul.f32 %v872, 10000.0
    %v874 = vlaneseq
    %v875 = vshrl.u32 %v874, 7
    %v876 = vsub.s32 0, %v875
    %v877 = vrot.slane %v873, %v876
    %v878 = vmul.f32 %v849, %v877
    %v879 = vmul.f32 %v850, %v877
    %v880 = vsub.f32 1.0, %v849
    %v881 = vsub.f32 1.0, %v850
    %v882 = vmul.f32 %v880, -1e+09
    %v883 = vmul.f32 %v881, -1e+09
    %v884 = vadd.f32 %v878, %v882
    %v885 = vadd.f32 %v879, %v883
    %v887 = vsel %vm537, %v659, 0
    %v890 = vsel %vm537, %v662, 0
    %v893 = vsel %vm537, %v833, 0
    %v896 = vsel %vm537, %v834, 0
    %v899 = vsel %vm537, %v835, 0
    %v902 = vsel %vm537, %v836, 0
    %v905 = vsel %vm537, %v837, 0
    %v908 = vsel %vm537, %v838, 0
    %v911 = vsel %vm537, %v839, 0
    %v914 = vsel %vm537, %v840, 0
    %916 = vmatprep.subr.mxu0 0.0
    %917 = vmatpush1.xpose.msra.mxu0 %v893
    %918 = vmatprep.subr.mxu0 0.0
    %919 = vmatpush1.xpose.msra.mxu0 %v896
    %920 = vmatprep.subr.mxu0 0.0
    %921 = vmatpush1.xpose.msra.mxu0 %v899
    %922 = vmatprep.subr.mxu0 0.0
    %923 = vmatpush1.xpose.msra.mxu0 %v902
    %924 = vmatprep.subr.mxu0 0.0
    %925 = vmatpush1.xpose.msra.mxu0 %v905
    %926 = vmatprep.subr.mxu0 0.0
    %927 = vmatpush1.xpose.msra.mxu0 %v908
    %928 = vmatprep.subr.mxu0 0.0
    %929 = vmatpush1.xpose.msra.mxu0 %v911
    %930 = vmatprep.subr.mxu0 0.0
    %931 = vmatpush1.xpose.msra.mxu0 %v914
    %932 = vmatprep.subr.mxu0 0.0
    %933 = vmatpush1.xpose.msra.mxu0 0.0
    %934 = vmatprep.subr.mxu0 0.0
    %935 = vmatpush1.xpose.msra.mxu0 0.0
    %936 = vmatprep.subr.mxu0 0.0
    %937 = vmatpush1.xpose.msra.mxu0 0.0
    %938 = vmatprep.subr.mxu0 0.0
    %939 = vmatpush1.xpose.msra.mxu0 0.0
    %940 = vmatprep.subr.mxu0 0.0
    %941 = vmatpush1.xpose.msra.mxu0 0.0
    %942 = vmatprep.subr.mxu0 0.0
    %943 = vmatpush1.xpose.msra.mxu0 0.0
    %944 = vmatprep.subr.mxu0 0.0
    %945 = vmatpush1.xpose.msra.mxu0 0.0
    %946 = vmatprep.subr.mxu0 0.0
    %947 = vmatpush1.xpose.msra.mxu0 0.0
    %948 = vmatprep.subr.mxu0 0.0
    %949 = vmatpush1.xpose.msra.mxu0 0.0
    %950 = vmatprep.subr.mxu0 0.0
    %951 = vmatpush1.xpose.msra.mxu0 0.0
    %952 = vmatprep.subr.mxu0 0.0
    %953 = vmatpush1.xpose.msra.mxu0 0.0
    %954 = vmatprep.subr.mxu0 0.0
    %955 = vmatpush1.xpose.msra.mxu0 0.0
    %956 = vmatprep.subr.mxu0 0.0
    %957 = vmatpush1.xpose.msra.mxu0 0.0
    %958 = vmatprep.subr.mxu0 0.0
    %959 = vmatpush1.xpose.msra.mxu0 0.0
    %960 = vmatprep.subr.mxu0 0.0
    %961 = vmatpush1.xpose.msra.mxu0 0.0
    %962 = vmatprep.subr.mxu0 0.0
    %963 = vmatpush1.xpose.msra.mxu0 0.0
    %964 = vmatprep.subr.mxu0 0.0
    %965 = vmatpush1.xpose.msra.mxu0 0.0
    %966 = vmatprep.subr.mxu0 0.0
    %967 = vmatpush1.xpose.msra.mxu0 0.0
    %968 = vmatprep.subr.mxu0 0.0
    %969 = vmatpush1.xpose.msra.mxu0 0.0
    %970 = vmatprep.subr.mxu0 0.0
    %971 = vmatpush1.xpose.msra.mxu0 0.0
    %972 = vmatprep.subr.mxu0 0.0
    %973 = vmatpush1.xpose.msra.mxu0 0.0
    %974 = vmatprep.subr.mxu0 0.0
    %975 = vmatpush1.xpose.msra.mxu0 0.0
    %976 = vmatprep.subr.mxu0 0.0
    %977 = vmatpush1.xpose.msra.mxu0 0.0
    %978 = vmatprep.subr.mxu0 0.0
    %979 = vmatpush1.xpose.msra.mxu0 0.0
    %980 = vmatprep.mubr.f32.mxu0 0.0
    %981 = vmatmul.mubr.f32.gmra.mrb[0].mxu0 %v887
    %v982 = vpop.f32.mrb[0].mxu0
    %v983 = vadd.f32 %v884, %v982
    %v984 = vpop.f32.mrb[0].mxu0
    %985 = vmatprep.mubr.f32.mxu0 0.0
    %986 = vmatmul.mubr.f32.gmra.mrb[0].mxu0 %v890
    %v987 = vpop.f32.mrb[0].mxu0
    %v988 = vadd.f32 %v885, %v987
    %v989 = vpop.f32.mrb[0].mxu0
    %990 = vdwg.mxu0
    %v991 = vsel %vm537, %v983, -inf
    %992 = vmax.xlane.f32.xlu0 %v991
    %v993 = vpop.xlane.xlu0 %992
    %v994 = vsel %vm537, %v988, -inf
    %995 = vmax.xlane.f32.xlu0 %v994
    %v996 = vpop.xlane.xlu0 %995
    %v997 = vsub.f32 %v983, %v993
    %v998 = vsub.f32 %v988, %v996
    %v999 = vmul.f32 %v997, 1.442695
    %v1000 = vpow.pop %v999
    %v1001 = vmul.f32 %v998, 1.442695
    %v1002 = vpow.pop %v1001
    %v1003 = vld [vmem:[%s15] sm:$0xff]
    %v1004 = vld [vmem:[%s15 + $0x8] sm:$0xff]
    %v1005 = vld [vmem:[%s15 + $0x10] sm:$0xff]
    %v1006 = vld [vmem:[%s15 + $0x18] sm:$0xff]
    %v1007 = vld [vmem:[%s15 + $0x20] sm:$0xff]
    %v1008 = vld [vmem:[%s15 + $0x28] sm:$0xff]
    %v1009 = vld [vmem:[%s15 + $0x30] sm:$0xff]
    %v1010 = vld [vmem:[%s15 + $0x38] sm:$0xff]
    %v1012 = vsel %vm537, %v1000, 0
    %v1015 = vsel %vm537, %v1002, 0
    %1017 = vmatprep.subr.mxu0 0.0
    %1018 = vmatpush1.msra.mxu0 %v1003
    %1019 = vmatprep.subr.mxu0 0.0
    %1020 = vmatpush1.msra.mxu0 %v1004
    %1021 = vmatprep.subr.mxu0 0.0
    %1022 = vmatpush1.msra.mxu0 %v1005
    %1023 = vmatprep.subr.mxu0 0.0
    %1024 = vmatpush1.msra.mxu0 %v1006
    %1025 = vmatprep.subr.mxu0 0.0
    %1026 = vmatpush1.msra.mxu0 %v1007
    %1027 = vmatprep.subr.mxu0 0.0
    %1028 = vmatpush1.msra.mxu0 %v1008
    %1029 = vmatprep.subr.mxu0 0.0
    %1030 = vmatpush1.msra.mxu0 %v1009
    %1031 = vmatprep.subr.mxu0 0.0
    %1032 = vmatpush1.msra.mxu0 %v1010
    %1033 = vmatprep.subr.mxu0 0.0
    %1034 = vmatpush1.msra.mxu0 0.0
    %1035 = vmatprep.subr.mxu0 0.0
    %1036 = vmatpush1.msra.mxu0 0.0
    %1037 = vmatprep.subr.mxu0 0.0
    %1038 = vmatpush1.msra.mxu0 0.0
    %1039 = vmatprep.subr.mxu0 0.0
    %1040 = vmatpush1.msra.mxu0 0.0
    %1041 = vmatprep.subr.mxu0 0.0
    %1042 = vmatpush1.msra.mxu0 0.0
    %1043 = vmatprep.subr.mxu0 0.0
    %1044 = vmatpush1.msra.mxu0 0.0
    %1045 = vmatprep.subr.mxu0 0.0
    %1046 = vmatpush1.msra.mxu0 0.0
    %1047 = vmatprep.subr.mxu0 0.0
    %1048 = vmatpush1.msra.mxu0 0.0
    %1049 = vmatprep.subr.mxu0 0.0
    %1050 = vmatpush1.msra.mxu0 0.0
    %1051 = vmatprep.subr.mxu0 0.0
    %1052 = vmatpush1.msra.mxu0 0.0
    %1053 = vmatprep.subr.mxu0 0.0
    %1054 = vmatpush1.msra.mxu0 0.0
    %1055 = vmatprep.subr.mxu0 0.0
    %1056 = vmatpush1.msra.mxu0 0.0
    %1057 = vmatprep.subr.mxu0 0.0
    %1058 = vmatpush1.msra.mxu0 0.0
    %1059 = vmatprep.subr.mxu0 0.0
    %1060 = vmatpush1.msra.mxu0 0.0
    %1061 = vmatprep.subr.mxu0 0.0
    %1062 = vmatpush1.msra.mxu0 0.0
    %1063 = vmatprep.subr.mxu0 0.0
    %1064 = vmatpush1.msra.mxu0 0.0
    %1065 = vmatprep.subr.mxu0 0.0
    %1066 = vmatpush1.msra.mxu0 0.0
    %1067 = vmatprep.subr.mxu0 0.0
    %1068 = vmatpush1.msra.mxu0 0.0
    %1069 = vmatprep.subr.mxu0 0.0
    %1070 = vmatpush1.msra.mxu0 0.0
    %1071 = vmatprep.subr.mxu0 0.0
    %1072 = vmatpush1.msra.mxu0 0.0
    %1073 = vmatprep.subr.mxu0 0.0
    %1074 = vmatpush1.msra.mxu0 0.0
    %1075 = vmatprep.subr.mxu0 0.0
    %1076 = vmatpush1.msra.mxu0 0.0
    %1077 = vmatprep.subr.mxu0 0.0
    %1078 = vmatpush1.msra.mxu0 0.0
    %1079 = vmatprep.subr.mxu0 0.0
    %1080 = vmatpush1.msra.mxu0 0.0
    %1081 = vmatprep.mubr.f32.mxu0 0.0
    %1082 = vmatmul.mubr.f32.gmra.mrb[0].mxu0 %v1012
    %v1083 = vpop.f32.mrb[0].mxu0
    %v1084 = vadd.f32 0.0, %v1083
    %v1085 = vpop.f32.mrb[0].mxu0
    %1086 = vmatprep.mubr.f32.mxu0 0.0
    %1087 = vmatmul.mubr.f32.gmra.mrb[0].mxu0 %v1015
    %v1088 = vpop.f32.mrb[0].mxu0
    %v1089 = vadd.f32 0.0, %v1088
    %v1090 = vpop.f32.mrb[0].mxu0
    %1091 = vdwg.mxu0
    %v1092 = vmax.f32 %v1084, 1e-30
    %v1093 = vmax.f32 %v1089, 1e-30
    %v1094 = vrcp.pop %v1092
    %v1095 = vmul.f32 1.0, %v1094
    %v1096 = vrcp.pop %v1093
    %v1097 = vmul.f32 1.0, %v1096
    %v1098 = vld [vmem:[%s17] sm:$0xf]
    %vm1099 = vcmask 31744
    %v1101 = vsel %vm1099, %v1095, 0
    %v1104 = vsel %vm1099, %v1097, 0
    %vm1106 = vcmask 1043456
    %v1108 = vsel %vm1106, %v1098, 0
    %1110 = vmatprep.subr.mxu0 0.0
    %1111 = vmatpush1.msra.mxu0 %v1108
    %1112 = vmatprep.subr.mxu0 0.0
    %1113 = vmatpush1.msra.mxu0 0.0
    %1114 = vmatprep.subr.mxu0 0.0
    %1115 = vmatpush1.msra.mxu0 0.0
    %1116 = vmatprep.subr.mxu0 0.0
    %1117 = vmatpush1.msra.mxu0 0.0
    %1118 = vmatprep.subr.mxu0 0.0
    %1119 = vmatpush1.msra.mxu0 0.0
    %1120 = vmatprep.subr.mxu0 0.0
    %1121 = vmatpush1.msra.mxu0 0.0
    %1122 = vmatprep.subr.mxu0 0.0
    %1123 = vmatpush1.msra.mxu0 0.0
    %1124 = vmatprep.subr.mxu0 0.0
    %1125 = vmatpush1.msra.mxu0 0.0
    %1126 = vmatprep.subr.mxu0 0.0
    %1127 = vmatpush1.msra.mxu0 0.0
    %1128 = vmatprep.subr.mxu0 0.0
    %1129 = vmatpush1.msra.mxu0 0.0
    %1130 = vmatprep.subr.mxu0 0.0
    %1131 = vmatpush1.msra.mxu0 0.0
    %1132 = vmatprep.subr.mxu0 0.0
    %1133 = vmatpush1.msra.mxu0 0.0
    %1134 = vmatprep.subr.mxu0 0.0
    %1135 = vmatpush1.msra.mxu0 0.0
    %1136 = vmatprep.subr.mxu0 0.0
    %1137 = vmatpush1.msra.mxu0 0.0
    %1138 = vmatprep.subr.mxu0 0.0
    %1139 = vmatpush1.msra.mxu0 0.0
    %1140 = vmatprep.subr.mxu0 0.0
    %1141 = vmatpush1.msra.mxu0 0.0
    %1142 = vmatprep.subr.mxu0 0.0
    %1143 = vmatpush1.msra.mxu0 0.0
    %1144 = vmatprep.subr.mxu0 0.0
    %1145 = vmatpush1.msra.mxu0 0.0
    %1146 = vmatprep.subr.mxu0 0.0
    %1147 = vmatpush1.msra.mxu0 0.0
    %1148 = vmatprep.subr.mxu0 0.0
    %1149 = vmatpush1.msra.mxu0 0.0
    %1150 = vmatprep.subr.mxu0 0.0
    %1151 = vmatpush1.msra.mxu0 0.0
    %1152 = vmatprep.subr.mxu0 0.0
    %1153 = vmatpush1.msra.mxu0 0.0
    %1154 = vmatprep.subr.mxu0 0.0
    %1155 = vmatpush1.msra.mxu0 0.0
    %1156 = vmatprep.subr.mxu0 0.0
    %1157 = vmatpush1.msra.mxu0 0.0
    %1158 = vmatprep.subr.mxu0 0.0
    %1159 = vmatpush1.msra.mxu0 0.0
    %1160 = vmatprep.subr.mxu0 0.0
    %1161 = vmatpush1.msra.mxu0 0.0
    %1162 = vmatprep.subr.mxu0 0.0
    %1163 = vmatpush1.msra.mxu0 0.0
    %1164 = vmatprep.subr.mxu0 0.0
    %1165 = vmatpush1.msra.mxu0 0.0
    %1166 = vmatprep.subr.mxu0 0.0
    %1167 = vmatpush1.msra.mxu0 0.0
    %1168 = vmatprep.subr.mxu0 0.0
    %1169 = vmatpush1.msra.mxu0 0.0
    %1170 = vmatprep.subr.mxu0 0.0
    %1171 = vmatpush1.msra.mxu0 0.0
    %1172 = vmatprep.subr.mxu0 0.0
    %1173 = vmatpush1.msra.mxu0 0.0
    %1174 = vmatprep.mubr.f32.mxu0 0.0
    %1175 = vmatmul.mubr.f32.gmra.mrb[0].mxu0 %v1101
    %v1176 = vpop.f32.mrb[0].mxu0
    %v1177 = vadd.f32 0.0, %v1176
    %v1178 = vpop.f32.mrb[0].mxu0
    %1179 = vmatprep.mubr.f32.mxu0 0.0
    %1180 = vmatmul.mubr.f32.gmra.mrb[0].mxu0 %v1104
    %v1181 = vpop.f32.mrb[0].mxu0
    %v1182 = vadd.f32 0.0, %v1181
    %v1183 = vpop.f32.mrb[0].mxu0
    %1184 = vdwg.mxu0
    %v1185 = vmul.f32 %v1000, %v1177
    %v1186 = vmul.f32 %v1002, %v1182
    %v1188 = vsel %vm537, %v1185, 0
    %v1191 = vsel %vm537, %v1186, 0
    %1193 = vmatprep.subr.mxu0 0.0
    %1194 = vmatpush1.msra.mxu0 %v841
    %1195 = vmatprep.subr.mxu0 0.0
    %1196 = vmatpush1.msra.mxu0 %v842
    %1197 = vmatprep.subr.mxu0 0.0
    %1198 = vmatpush1.msra.mxu0 %v843
    %1199 = vmatprep.subr.mxu0 0.0
    %1200 = vmatpush1.msra.mxu0 %v844
    %1201 = vmatprep.subr.mxu0 0.0
    %1202 = vmatpush1.msra.mxu0 %v845
    %1203 = vmatprep.subr.mxu0 0.0
    %1204 = vmatpush1.msra.mxu0 %v846
    %1205 = vmatprep.subr.mxu0 0.0
    %1206 = vmatpush1.msra.mxu0 %v847
    %1207 = vmatprep.subr.mxu0 0.0
    %1208 = vmatpush1.msra.mxu0 %v848
    %1209 = vmatprep.subr.mxu0 0.0
    %1210 = vmatpush1.msra.mxu0 0.0
    %1211 = vmatprep.subr.mxu0 0.0
    %1212 = vmatpush1.msra.mxu0 0.0
    %1213 = vmatprep.subr.mxu0 0.0
    %1214 = vmatpush1.msra.mxu0 0.0
    %1215 = vmatprep.subr.mxu0 0.0
    %1216 = vmatpush1.msra.mxu0 0.0
    %1217 = vmatprep.subr.mxu0 0.0
    %1218 = vmatpush1.msra.mxu0 0.0
    %1219 = vmatprep.subr.mxu0 0.0
    %1220 = vmatpush1.msra.mxu0 0.0
    %1221 = vmatprep.subr.mxu0 0.0
    %1222 = vmatpush1.msra.mxu0 0.0
    %1223 = vmatprep.subr.mxu0 0.0
    %1224 = vmatpush1.msra.mxu0 0.0
    %1225 = vmatprep.subr.mxu0 0.0
    %1226 = vmatpush1.msra.mxu0 0.0
    %1227 = vmatprep.subr.mxu0 0.0
    %1228 = vmatpush1.msra.mxu0 0.0
    %1229 = vmatprep.subr.mxu0 0.0
    %1230 = vmatpush1.msra.mxu0 0.0
    %1231 = vmatprep.subr.mxu0 0.0
    %1232 = vmatpush1.msra.mxu0 0.0
    %1233 = vmatprep.subr.mxu0 0.0
    %1234 = vmatpush1.msra.mxu0 0.0
    %1235 = vmatprep.subr.mxu0 0.0
    %1236 = vmatpush1.msra.mxu0 0.0
    %1237 = vmatprep.subr.mxu0 0.0
    %1238 = vmatpush1.msra.mxu0 0.0
    %1239 = vmatprep.subr.mxu0 0.0
    %1240 = vmatpush1.msra.mxu0 0.0
    %1241 = vmatprep.subr.mxu0 0.0
    %1242 = vmatpush1.msra.mxu0 0.0
    %1243 = vmatprep.subr.mxu0 0.0
    %1244 = vmatpush1.msra.mxu0 0.0
    %1245 = vmatprep.subr.mxu0 0.0
    %1246 = vmatpush1.msra.mxu0 0.0
    %1247 = vmatprep.subr.mxu0 0.0
    %1248 = vmatpush1.msra.mxu0 0.0
    %1249 = vmatprep.subr.mxu0 0.0
    %1250 = vmatpush1.msra.mxu0 0.0
    %1251 = vmatprep.subr.mxu0 0.0
    %1252 = vmatpush1.msra.mxu0 0.0
    %1253 = vmatprep.subr.mxu0 0.0
    %1254 = vmatpush1.msra.mxu0 0.0
    %1255 = vmatprep.subr.mxu0 0.0
    %1256 = vmatpush1.msra.mxu0 0.0
    %1257 = vmatprep.mubr.f32.mxu0 0.0
    %1258 = vmatmul.mubr.f32.gmra.mrb[0].mxu0 %v1188
    %v1259 = vpop.f32.mrb[0].mxu0
    %v1260 = vadd.f32 0.0, %v1259
    %v1261 = vpop.f32.mrb[0].mxu0
    %1262 = vmatprep.mubr.f32.mxu0 0.0
    %1263 = vmatmul.mubr.f32.gmra.mrb[0].mxu0 %v1191
    %v1264 = vpop.f32.mrb[0].mxu0
    %v1265 = vadd.f32 0.0, %v1264
    %v1266 = vpop.f32.mrb[0].mxu0
    %1267 = vdwg.mxu0
    %v1268 = vpack.c.bf16 %v1265, %v1260
    %v1269 = vld [vmem:[%s41] sm:$0xf]
    %v1270 = vld [vmem:[%s41 + $0x4] sm:$0xf]
    %v1271 = vld [vmem:[%s41 + $0x8] sm:$0xf]
    %v1272 = vld [vmem:[%s41 + $0xc] sm:$0xf]
    %v1273 = vld [vmem:[%s41 + $0x10] sm:$0xf]
    %v1274 = vld [vmem:[%s41 + $0x14] sm:$0xf]
    %v1275 = vld [vmem:[%s41 + $0x18] sm:$0xf]
    %v1276 = vld [vmem:[%s41 + $0x1c] sm:$0xf]
    %v1277 = vld [vmem:[#allocation13] sm:$0x1]
    %v1279 = vlaneseq
    %v1280 = vshrl.u32 %v1279, 7
    %v1281 = vsub.s32 0, %v1280
    %v1282 = vrot.slane %v1277, %v1281
    %v1292 = vunpack.c.l.b16 %v1269
    %v1293 = vunpack.c.l.b16 %v1270
    %v1294 = vunpack.c.l.b16 %v1271
    %v1295 = vunpack.c.l.b16 %v1272
    %v1296 = vunpack.c.l.b16 %v1273
    %v1297 = vunpack.c.l.b16 %v1274
    %v1298 = vunpack.c.l.b16 %v1275
    %v1299 = vunpack.c.l.b16 %v1276
    %v1300 = vpack.c.b16 %v1293, %v1292
    %v1301 = vpack.c.b16 %v1295, %v1294
    %v1302 = vpack.c.b16 %v1297, %v1296
    %v1303 = vpack.c.b16 %v1299, %v1298
    %v1309 = vsel %vm537, %v1268, 0
    %1311 = vmatprep.subr.bf16.mxu0 0
    %1312 = vmatpush1.bf16.msra.mxu0 %v1300
    %1313 = vmatprep.subr.bf16.mxu0 0
    %1314 = vmatpush1.bf16.msra.mxu0 %v1301
    %1315 = vmatprep.subr.bf16.mxu0 0
    %1316 = vmatpush1.bf16.msra.mxu0 %v1302
    %1317 = vmatprep.subr.bf16.mxu0 0
    %1318 = vmatpush1.bf16.msra.mxu0 %v1303
    %1319 = vmatprep.subr.bf16.mxu0 0
    %1320 = vmatpush1.bf16.msra.mxu0 0
    %1321 = vmatprep.subr.bf16.mxu0 0
    %1322 = vmatpush1.bf16.msra.mxu0 0
    %1323 = vmatprep.subr.bf16.mxu0 0
    %1324 = vmatpush1.bf16.msra.mxu0 0
    %1325 = vmatprep.subr.bf16.mxu0 0
    %1326 = vmatpush1.bf16.msra.mxu0 0
    %1327 = vmatprep.subr.bf16.mxu0 0
    %1328 = vmatpush1.bf16.msra.mxu0 0
    %1329 = vmatprep.subr.bf16.mxu0 0
    %1330 = vmatpush1.bf16.msra.mxu0 0
    %1331 = vmatprep.subr.bf16.mxu0 0
    %1332 = vmatpush1.bf16.msra.mxu0 0
    %1333 = vmatprep.subr.bf16.mxu0 0
    %1334 = vmatpush1.bf16.msra.mxu0 0
    %1335 = vmatprep.subr.bf16.mxu0 0
    %1336 = vmatpush1.bf16.msra.mxu0 0
    %1337 = vmatprep.subr.bf16.mxu0 0
    %1338 = vmatpush1.bf16.msra.mxu0 0
    %1339 = vmatprep.subr.bf16.mxu0 0
    %1340 = vmatpush1.bf16.msra.mxu0 0
    %1341 = vmatprep.subr.bf16.mxu0 0
    %1342 = vmatpush1.bf16.msra.mxu0 0
    %1343 = vmatprep.mubr.bf16.mxu0 0
    %1344 = vmatmul.mubr.bf16.gmra.mrb[0].mxu0 %v1309
    %v1345 = vpop.f32.mrb[0].mxu0
    %v1346 = vadd.f32 %v1282, %v1345
    %v1347 = vpop.f32.mrb[0].mxu0
    %v1348 = vpop.f32.mrb[0].mxu0
    %v1349 = vadd.f32 %v1282, %v1348
    %v1350 = vpop.f32.mrb[0].mxu0
    %1351 = vdwg.mxu0
    %v1352 = vadd.f32 %v579, %v1346
    %v1353 = vadd.f32 %v580, %v1349
    %v1354 = vld [vmem:[#allocation14] sm:$0x1]
    %v1355 = vld [vmem:[#allocation16] sm:$0x1]
    %v1356 = vsel %vm537, %v1352, 0.0
    %1357 = vadd.xlane.f32.xlu0 %v1356
    %v1358 = vpop.xlane.xlu0 %1357
    %v1359 = vsel %vm537, %v1353, 0.0
    %1360 = vadd.xlane.f32.xlu0 %v1359
    %v1361 = vpop.xlane.xlu0 %1360
    %v1362 = vmul.f32 %v1358, %v544
    %v1363 = vmul.f32 %v1361, %v544
    %v1364 = vsub.f32 %v1352, %v1362
    %v1365 = vsub.f32 %v1353, %v1363
    %v1366 = vmul.f32 %v1364, %v1364
    %v1367 = vmul.f32 %v1365, %v1365
    %v1368 = vsel %vm537, %v1366, 0.0
    %1369 = vadd.xlane.f32.xlu0 %v1368
    %v1370 = vpop.xlane.xlu0 %1369
    %v1371 = vsel %vm537, %v1367, 0.0
    %1372 = vadd.xlane.f32.xlu0 %v1371
    %v1373 = vpop.xlane.xlu0 %1372
    %v1374 = vmul.f32 %v1370, %v544
    %v1375 = vmul.f32 %v1373, %v544
    %v1376 = vadd.f32 %v1374, 1e-12
    %v1377 = vadd.f32 %v1375, 1e-12
    %v1378 = vrsqrt.pop %v1376
    %v1379 = vrsqrt.pop %v1377
    %v1380 = vmul.f32 %v1364, %v1378
    %v1381 = vmul.f32 %v1365, %v1379
    %v1383 = vlaneseq
    %v1384 = vshrl.u32 %v1383, 7
    %v1385 = vsub.s32 0, %v1384
    %v1386 = vrot.slane %v1354, %v1385
    %v1388 = vmul.f32 %v1380, %v1386
    %v1389 = vmul.f32 %v1381, %v1386
    %v1391 = vlaneseq
    %v1392 = vshrl.u32 %v1391, 7
    %v1393 = vsub.s32 0, %v1392
    %v1394 = vrot.slane %v1355, %v1393
    %v1396 = vadd.f32 %v1388, %v1394
    %v1397 = vadd.f32 %v1389, %v1394
    %v1398 = vpack.c.bf16 %v1397, %v1396
    %v1399 = vld [vmem:[#allocation17] sm:$0xf]
    %v1400 = vld [vmem:[#allocation17 + $0x4] sm:$0xf]
    %v1401 = vld [vmem:[#allocation17 + $0x8] sm:$0xf]
    %v1402 = vld [vmem:[#allocation17 + $0xc] sm:$0xf]
    %v1403 = vld [vmem:[#allocation17 + $0x10] sm:$0xf]
    %v1404 = vld [vmem:[#allocation17 + $0x14] sm:$0xf]
    %v1405 = vld [vmem:[#allocation17 + $0x18] sm:$0xf]
    %v1406 = vld [vmem:[#allocation17 + $0x1c] sm:$0xf]
    %v1407 = vld [vmem:[#allocation19] sm:$0x1]
    %v1409 = vlaneseq
    %v1410 = vshrl.u32 %v1409, 7
    %v1411 = vsub.s32 0, %v1410
    %v1412 = vrot.slane %v1407, %v1411
    %v1422 = vunpack.c.l.b16 %v1399
    %v1423 = vunpack.c.l.b16 %v1400
    %v1424 = vunpack.c.l.b16 %v1401
    %v1425 = vunpack.c.l.b16 %v1402
    %v1426 = vunpack.c.l.b16 %v1403
    %v1427 = vunpack.c.l.b16 %v1404
    %v1428 = vunpack.c.l.b16 %v1405
    %v1429 = vunpack.c.l.b16 %v1406
    %v1430 = vpack.c.b16 %v1423, %v1422
    %v1431 = vpack.c.b16 %v1425, %v1424
    %v1432 = vpack.c.b16 %v1427, %v1426
    %v1433 = vpack.c.b16 %v1429, %v1428
    %v1439 = vsel %vm537, %v1398, 0
    %1441 = vmatprep.subr.bf16.mxu0 0
    %1442 = vmatpush1.bf16.msra.mxu0 %v1430
    %1443 = vmatprep.subr.bf16.mxu0 0
    %1444 = vmatpush1.bf16.msra.mxu0 %v1431
    %1445 = vmatprep.subr.bf16.mxu0 0
    %1446 = vmatpush1.bf16.msra.mxu0 %v1432
    %1447 = vmatprep.subr.bf16.mxu0 0
    %1448 = vmatpush1.bf16.msra.mxu0 %v1433
    %1449 = vmatprep.subr.bf16.mxu0 0
    %1450 = vmatpush1.bf16.msra.mxu0 0
    %1451 = vmatprep.subr.bf16.mxu0 0
    %1452 = vmatpush1.bf16.msra.mxu0 0
    %1453 = vmatprep.subr.bf16.mxu0 0
    %1454 = vmatpush1.bf16.msra.mxu0 0
    %1455 = vmatprep.subr.bf16.mxu0 0
    %1456 = vmatpush1.bf16.msra.mxu0 0
    %1457 = vmatprep.subr.bf16.mxu0 0
    %1458 = vmatpush1.bf16.msra.mxu0 0
    %1459 = vmatprep.subr.bf16.mxu0 0
    %1460 = vmatpush1.bf16.msra.mxu0 0
    %1461 = vmatprep.subr.bf16.mxu0 0
    %1462 = vmatpush1.bf16.msra.mxu0 0
    %1463 = vmatprep.subr.bf16.mxu0 0
    %1464 = vmatpush1.bf16.msra.mxu0 0
    %1465 = vmatprep.subr.bf16.mxu0 0
    %1466 = vmatpush1.bf16.msra.mxu0 0
    %1467 = vmatprep.subr.bf16.mxu0 0
    %1468 = vmatpush1.bf16.msra.mxu0 0
    %1469 = vmatprep.subr.bf16.mxu0 0
    %1470 = vmatpush1.bf16.msra.mxu0 0
    %1471 = vmatprep.subr.bf16.mxu0 0
    %1472 = vmatpush1.bf16.msra.mxu0 0
    %1473 = vmatprep.mubr.bf16.mxu0 0
    %1474 = vmatmul.mubr.bf16.gmra.mrb[0].mxu0 %v1439
    %v1475 = vpop.f32.mrb[0].mxu0
    %v1476 = vadd.f32 %v1412, %v1475
    %v1477 = vpop.f32.mrb[0].mxu0
    %v1478 = vpop.f32.mrb[0].mxu0
    %v1479 = vadd.f32 %v1412, %v1478
    %v1480 = vpop.f32.mrb[0].mxu0
    %1481 = vdwg.mxu0
    %v1482 = vmul.f32 %v1476, %v1476
    %v1483 = vmul.f32 %v1479, %v1479
    %v1484 = vmul.f32 %v1476, %v1482
    %v1485 = vmul.f32 %v1479, %v1483
    %v1486 = vmul.f32 %v1484, 0.044715
    %v1487 = vmul.f32 %v1485, 0.044715
    %v1488 = vadd.f32 %v1476, %v1486
    %v1489 = vadd.f32 %v1479, %v1487
    %v1490 = vmul.f32 %v1488, 0.7978846
    %v1491 = vmul.f32 %v1489, 0.7978846
    %v1492 = vtanh.pop %v1490
    %v1493 = vtanh.pop %v1491
    %v1494 = vadd.f32 %v1492, 1.0
    %v1495 = vadd.f32 %v1493, 1.0
    %v1496 = vmul.f32 %v1494, 0.5
    %v1497 = vmul.f32 %v1495, 0.5
    %v1498 = vmul.f32 %v1476, %v1496
    %v1499 = vmul.f32 %v1479, %v1497
    %v1500 = vpack.c.bf16 %v1499, %v1498
    %v1501 = vld [vmem:[%s53] sm:$0xf]
    %v1502 = vld [vmem:[%s53 + $0x4] sm:$0xf]
    %v1503 = vld [vmem:[%s53 + $0x8] sm:$0xf]
    %v1504 = vld [vmem:[%s53 + $0xc] sm:$0xf]
    %v1505 = vld [vmem:[%s53 + $0x10] sm:$0xf]
    %v1506 = vld [vmem:[%s53 + $0x14] sm:$0xf]
    %v1507 = vld [vmem:[%s53 + $0x18] sm:$0xf]
    %v1508 = vld [vmem:[%s53 + $0x1c] sm:$0xf]
    %v1509 = vld [vmem:[%s53 + $0x20] sm:$0xf]
    %v1510 = vld [vmem:[%s53 + $0x24] sm:$0xf]
    %v1511 = vld [vmem:[%s53 + $0x28] sm:$0xf]
    %v1512 = vld [vmem:[%s53 + $0x2c] sm:$0xf]
    %v1513 = vld [vmem:[%s53 + $0x30] sm:$0xf]
    %v1514 = vld [vmem:[%s53 + $0x34] sm:$0xf]
    %v1515 = vld [vmem:[%s53 + $0x38] sm:$0xf]
    %v1516 = vld [vmem:[%s53 + $0x3c] sm:$0xf]
    %v1517 = vld [vmem:[#allocation20] sm:$0x1]
    %v1519 = vlaneseq
    %v1520 = vshrl.u32 %v1519, 7
    %v1521 = vsub.s32 0, %v1520
    %v1522 = vrot.slane %v1517, %v1521
    %v1540 = vunpack.c.l.b16 %v1501
    %v1541 = vunpack.c.l.b16 %v1502
    %v1542 = vunpack.c.l.b16 %v1503
    %v1543 = vunpack.c.l.b16 %v1504
    %v1544 = vunpack.c.l.b16 %v1505
    %v1545 = vunpack.c.l.b16 %v1506
    %v1546 = vunpack.c.l.b16 %v1507
    %v1547 = vunpack.c.l.b16 %v1508
    %v1548 = vunpack.c.l.b16 %v1509
    %v1549 = vunpack.c.l.b16 %v1510
    %v1550 = vunpack.c.l.b16 %v1511
    %v1551 = vunpack.c.l.b16 %v1512
    %v1552 = vunpack.c.l.b16 %v1513
    %v1553 = vunpack.c.l.b16 %v1514
    %v1554 = vunpack.c.l.b16 %v1515
    %v1555 = vunpack.c.l.b16 %v1516
    %v1556 = vpack.c.b16 %v1541, %v1540
    %v1557 = vpack.c.b16 %v1543, %v1542
    %v1558 = vpack.c.b16 %v1545, %v1544
    %v1559 = vpack.c.b16 %v1547, %v1546
    %v1560 = vpack.c.b16 %v1549, %v1548
    %v1561 = vpack.c.b16 %v1551, %v1550
    %v1562 = vpack.c.b16 %v1553, %v1552
    %v1563 = vpack.c.b16 %v1555, %v1554
    %1572 = vmatprep.subr.bf16.mxu0 0
    %1573 = vmatpush1.bf16.msra.mxu0 %v1556
    %1574 = vmatprep.subr.bf16.mxu0 0
    %1575 = vmatpush1.bf16.msra.mxu0 %v1557
    %1576 = vmatprep.subr.bf16.mxu0 0
    %1577 = vmatpush1.bf16.msra.mxu0 %v1558
    %1578 = vmatprep.subr.bf16.mxu0 0
    %1579 = vmatpush1.bf16.msra.mxu0 %v1559
    %1580 = vmatprep.subr.bf16.mxu0 0
    %1581 = vmatpush1.bf16.msra.mxu0 %v1560
    %1582 = vmatprep.subr.bf16.mxu0 0
    %1583 = vmatpush1.bf16.msra.mxu0 %v1561
    %1584 = vmatprep.subr.bf16.mxu0 0
    %1585 = vmatpush1.bf16.msra.mxu0 %v1562
    %1586 = vmatprep.subr.bf16.mxu0 0
    %1587 = vmatpush1.bf16.msra.mxu0 %v1563
    %1588 = vmatprep.subr.bf16.mxu0 0
    %1589 = vmatpush1.bf16.msra.mxu0 0
    %1590 = vmatprep.subr.bf16.mxu0 0
    %1591 = vmatpush1.bf16.msra.mxu0 0
    %1592 = vmatprep.subr.bf16.mxu0 0
    %1593 = vmatpush1.bf16.msra.mxu0 0
    %1594 = vmatprep.subr.bf16.mxu0 0
    %1595 = vmatpush1.bf16.msra.mxu0 0
    %1596 = vmatprep.subr.bf16.mxu0 0
    %1597 = vmatpush1.bf16.msra.mxu0 0
    %1598 = vmatprep.subr.bf16.mxu0 0
    %1599 = vmatpush1.bf16.msra.mxu0 0
    %1600 = vmatprep.subr.bf16.mxu0 0
    %1601 = vmatpush1.bf16.msra.mxu0 0
    %1602 = vmatprep.subr.bf16.mxu0 0
    %1603 = vmatpush1.bf16.msra.mxu0 0
    %1604 = vmatprep.mubr.bf16.mxu0 0
    %1605 = vmatmul.mubr.bf16.gmra.mrb[0].mxu0 %v1500
    %v1606 = vpop.f32.mrb[0].mxu0
    %v1607 = vadd.f32 %v1522, %v1606
    %v1608 = vpop.f32.mrb[0].mxu0
    %v1609 = vpop.f32.mrb[0].mxu0
    %v1610 = vadd.f32 %v1522, %v1609
    %v1611 = vpop.f32.mrb[0].mxu0
    %1612 = vdwg.mxu0
    %v1613 = vadd.f32 %v1396, %v1607
    %v1614 = vadd.f32 %v1397, %v1610
    %v1615 = vld [vmem:[#allocation22] sm:$0x1]
    %v1616 = vld [vmem:[#allocation23] sm:$0x1]
    %v1617 = vsel %vm537, %v1613, 0.0
    %1618 = vadd.xlane.f32.xlu0 %v1617
    %v1619 = vpop.xlane.xlu0 %1618
    %v1620 = vsel %vm537, %v1614, 0.0
    %1621 = vadd.xlane.f32.xlu0 %v1620
    %v1622 = vpop.xlane.xlu0 %1621
    %v1623 = vmul.f32 %v1619, %v544
    %v1624 = vmul.f32 %v1622, %v544
    %v1625 = vsub.f32 %v1613, %v1623
    %v1626 = vsub.f32 %v1614, %v1624
    %v1627 = vmul.f32 %v1625, %v1625
    %v1628 = vmul.f32 %v1626, %v1626
    %v1629 = vsel %vm537, %v1627, 0.0
    %1630 = vadd.xlane.f32.xlu0 %v1629
    %v1631 = vpop.xlane.xlu0 %1630
    %v1632 = vsel %vm537, %v1628, 0.0
    %1633 = vadd.xlane.f32.xlu0 %v1632
    %v1634 = vpop.xlane.xlu0 %1633
    %v1635 = vmul.f32 %v1631, %v544
    %v1636 = vmul.f32 %v1634, %v544
    %v1637 = vadd.f32 %v1635, 1e-12
    %v1638 = vadd.f32 %v1636, 1e-12
    %v1639 = vrsqrt.pop %v1637
    %v1640 = vrsqrt.pop %v1638
    %v1641 = vmul.f32 %v1625, %v1639
    %v1642 = vmul.f32 %v1626, %v1640
    %v1644 = vlaneseq
    %v1645 = vshrl.u32 %v1644, 7
    %v1646 = vsub.s32 0, %v1645
    %v1647 = vrot.slane %v1615, %v1646
    %v1649 = vmul.f32 %v1641, %v1647
    %v1650 = vmul.f32 %v1642, %v1647
    %v1652 = vlaneseq
    %v1653 = vshrl.u32 %v1652, 7
    %v1654 = vsub.s32 0, %v1653
    %v1655 = vrot.slane %v1616, %v1654
    %v1657 = vadd.f32 %v1649, %v1655
    %v1658 = vadd.f32 %v1650, %v1655
    %v1659 = vld [vmem:[%s7] sm:$0xff]
    %v1660 = vld [vmem:[%s7 + $0x8] sm:$0xff]
    %v1661 = vpack.c.bf16 %v1658, %v1657
    %v1662 = vld [vmem:[%s61] sm:$0xf]
    %v1663 = vld [vmem:[%s61 + $0x4] sm:$0xf]
    %v1664 = vld [vmem:[%s61 + $0x8] sm:$0xf]
    %v1665 = vld [vmem:[%s61 + $0xc] sm:$0xf]
    %v1666 = vld [vmem:[%s61 + $0x10] sm:$0xf]
    %v1667 = vld [vmem:[%s61 + $0x14] sm:$0xf]
    %v1668 = vld [vmem:[%s61 + $0x18] sm:$0xf]
    %v1669 = vld [vmem:[%s61 + $0x1c] sm:$0xf]
    %v1670 = vld [vmem:[#allocation25] sm:$0x1]
    %1672 = vset.pattern.permute.xlu0 0
    %1673 = vperm.xlu0 %1672, %v1659
    %v1674 = vpop.permute.xlu0 %1673
    %1677 = vset.pattern.permute.xlu0 0
    %1678 = vperm.xlu0 %1677, %v1660
    %v1679 = vpop.permute.xlu0 %1678
    %v1682 = vlaneseq
    %v1683 = vshrl.u32 %v1682, 7
    %v1684 = vsub.s32 0, %v1683
    %v1685 = vrot.slane %v1670, %v1684
    %v1687 = vmul.f32 %v1674, %v1685
    %v1688 = vmul.f32 %v1679, %v1685
    %v1697 = vunpack.c.l.b16 %v1662
    %v1698 = vunpack.c.l.b16 %v1663
    %v1699 = vunpack.c.l.b16 %v1664
    %v1700 = vunpack.c.l.b16 %v1665
    %v1701 = vunpack.c.l.b16 %v1666
    %v1702 = vunpack.c.l.b16 %v1667
    %v1703 = vunpack.c.l.b16 %v1668
    %v1704 = vunpack.c.l.b16 %v1669
    %v1705 = vpack.c.b16 %v1698, %v1697
    %v1706 = vpack.c.b16 %v1700, %v1699
    %v1707 = vpack.c.b16 %v1702, %v1701
    %v1708 = vpack.c.b16 %v1704, %v1703
    %v1714 = vsel %vm537, %v1661, 0
    %1716 = vmatprep.subr.bf16.mxu0 0
    %1717 = vmatpush1.bf16.msra.mxu0 %v1705
    %1718 = vmatprep.subr.bf16.mxu0 0
    %1719 = vmatpush1.bf16.msra.mxu0 %v1706
    %1720 = vmatprep.subr.bf16.mxu0 0
    %1721 = vmatpush1.bf16.msra.mxu0 %v1707
    %1722 = vmatprep.subr.bf16.mxu0 0
    %1723 = vmatpush1.bf16.msra.mxu0 %v1708
    %1724 = vmatprep.subr.bf16.mxu0 0
    %1725 = vmatpush1.bf16.msra.mxu0 0
    %1726 = vmatprep.subr.bf16.mxu0 0
    %1727 = vmatpush1.bf16.msra.mxu0 0
    %1728 = vmatprep.subr.bf16.mxu0 0
    %1729 = vmatpush1.bf16.msra.mxu0 0
    %1730 = vmatprep.subr.bf16.mxu0 0
    %1731 = vmatpush1.bf16.msra.mxu0 0
    %1732 = vmatprep.subr.bf16.mxu0 0
    %1733 = vmatpush1.bf16.msra.mxu0 0
    %1734 = vmatprep.subr.bf16.mxu0 0
    %1735 = vmatpush1.bf16.msra.mxu0 0
    %1736 = vmatprep.subr.bf16.mxu0 0
    %1737 = vmatpush1.bf16.msra.mxu0 0
    %1738 = vmatprep.subr.bf16.mxu0 0
    %1739 = vmatpush1.bf16.msra.mxu0 0
    %1740 = vmatprep.subr.bf16.mxu0 0
    %1741 = vmatpush1.bf16.msra.mxu0 0
    %1742 = vmatprep.subr.bf16.mxu0 0
    %1743 = vmatpush1.bf16.msra.mxu0 0
    %1744 = vmatprep.subr.bf16.mxu0 0
    %1745 = vmatpush1.bf16.msra.mxu0 0
    %1746 = vmatprep.subr.bf16.mxu0 0
    %1747 = vmatpush1.bf16.msra.mxu0 0
    %1748 = vmatprep.mubr.bf16.mxu0 0
    %1749 = vmatmul.mubr.bf16.gmra.mrb[0].mxu0 %v1714
    %v1750 = vpop.f32.mrb[0].mxu0
    %v1751 = vadd.f32 %v1687, %v1750
    %v1752 = vpop.f32.mrb[0].mxu0
    %v1753 = vpop.f32.mrb[0].mxu0
    %v1754 = vadd.f32 %v1688, %v1753
    %v1755 = vpop.f32.mrb[0].mxu0
    %1756 = vdwg.mxu0
    %v1757 = vld [vmem:[#allocation26] sm:$0x1]
    %v1759 = vlaneseq
    %v1760 = vshrl.u32 %v1759, 7
    %v1761 = vsub.s32 0, %v1760
    %v1762 = vrot.slane %v1757, %v1761
    %v1764 = vadd.f32 %v1751, %v1762
    %v1765 = vadd.f32 %v1754, %v1762
    %v1766 = vld [vmem:[#allocation28] sm:$0xff]
    %v1767 = vld [vmem:[#allocation28 + $0x8] sm:$0xff]
    %v1768 = vxor.u32 %v1764, 2147483648
    %v1769 = vxor.u32 %v1765, 2147483648
    %v1770 = vmul.f32 %v1768, 1.442695
    %v1771 = vpow.pop %v1770
    %v1772 = vmul.f32 %v1769, 1.442695
    %v1773 = vpow.pop %v1772
    %v1774 = vadd.f32 %v1771, 1.0
    %v1775 = vadd.f32 %v1773, 1.0
    %v1776 = vrcp.pop %v1774
    %v1777 = vmul.f32 1.0, %v1776
    %v1778 = vrcp.pop %v1775
    %v1779 = vmul.f32 1.0, %v1778
    %v1780 = vtanh.pop %v1764
    %v1781 = vtanh.pop %v1765
    %v1782 = vmul.f32 %v1777, 0.0
    %v1783 = vmul.f32 %v1779, 0.0
    %1786 = vrot.lane.b32.xlu0 %v1780, 96
    %v1787 = vpop.permute.xlu0 %1786
    %1788 = vrot.lane.b32.xlu0 %v1781, 96
    %v1789 = vpop.permute.xlu0 %1788
    %v1792 = vmul.f32 %v1777, %v1787
    %v1793 = vmul.f32 %v1779, %v1789
    %1796 = vrot.lane.b32.xlu0 %v1792, 16
    %v1797 = vpop.permute.xlu0 %1796
    %1798 = vrot.lane.b32.xlu0 %v1793, 16
    %v1799 = vpop.permute.xlu0 %1798
    %v1802 = vadd.f32 %v1782, %v1797
    %v1803 = vadd.f32 %v1783, %v1799
    %v1804 = vtanh.pop %v1802
    %v1805 = vtanh.pop %v1803
    %1808 = vrot.lane.b32.xlu0 %v1804, 32
    %v1809 = vpop.permute.xlu0 %1808
    %1810 = vrot.lane.b32.xlu0 %v1805, 32
    %v1811 = vpop.permute.xlu0 %1810
    %v1814 = vmul.f32 %v1777, %v1809
    %v1815 = vmul.f32 %v1779, %v1811
    %1817 = vset.pattern.permute.xlu0 48
    %1818 = vperm.xlu0 %1817, %v1814
    %v1819 = vpop.permute.xlu0 %1818
    %1822 = vset.pattern.permute.xlu0 48
    %1823 = vperm.xlu0 %1822, %v1815
    %v1824 = vpop.permute.xlu0 %1823
    %v1826 = vlaneseq
    %v1827 = vshrl.u32 %v1826, 7
    %v1828 = vsub.s32 0, %v1827
    %v1829 = vrot.slane %v1766, %v1828
    %v1830 = vmul.f32 %v1819, %v1829
    %v1831 = vmul.f32 %v1824, %v1829
    %v1834 = vrot.slane %v1830, 7
    %v1835 = vrot.slane %v1831, 7
    %v1838 = vadd.f32 %v1764, %v1834
    %v1839 = vadd.f32 %v1765, %v1835
    %1840 = vset.pattern.permute.xlu0 49
    %1841 = vperm.xlu0 %1840, %v1814
    %v1842 = vpop.permute.xlu0 %1841
    %1844 = vset.pattern.permute.xlu0 49
    %1845 = vperm.xlu0 %1844, %v1815
    %v1846 = vpop.permute.xlu0 %1845
    %v1848 = vlaneseq
    %v1849 = vshrl.u32 %v1848, 7
    %v1850 = vsub.s32 1, %v1849
    %v1851 = vrot.slane %v1766, %v1850
    %v1852 = vmul.f32 %v1842, %v1851
    %v1853 = vmul.f32 %v1846, %v1851
    %v1856 = vrot.slane %v1852, 7
    %v1857 = vrot.slane %v1853, 7
    %v1860 = vadd.f32 %v1838, %v1856
    %v1861 = vadd.f32 %v1839, %v1857
    %1862 = vset.pattern.permute.xlu0 50
    %1863 = vperm.xlu0 %1862, %v1814
    %v1864 = vpop.permute.xlu0 %1863
    %1866 = vset.pattern.permute.xlu0 50
    %1867 = vperm.xlu0 %1866, %v1815
    %v1868 = vpop.permute.xlu0 %1867
    %v1870 = vlaneseq
    %v1871 = vshrl.u32 %v1870, 7
    %v1872 = vsub.s32 2, %v1871
    %v1873 = vrot.slane %v1766, %v1872
    %v1874 = vmul.f32 %v1864, %v1873
    %v1875 = vmul.f32 %v1868, %v1873
    %v1878 = vrot.slane %v1874, 7
    %v1879 = vrot.slane %v1875, 7
    %v1882 = vadd.f32 %v1860, %v1878
    %v1883 = vadd.f32 %v1861, %v1879
    %1884 = vset.pattern.permute.xlu0 51
    %1885 = vperm.xlu0 %1884, %v1814
    %v1886 = vpop.permute.xlu0 %1885
    %1888 = vset.pattern.permute.xlu0 51
    %1889 = vperm.xlu0 %1888, %v1815
    %v1890 = vpop.permute.xlu0 %1889
    %v1892 = vlaneseq
    %v1893 = vshrl.u32 %v1892, 7
    %v1894 = vsub.s32 3, %v1893
    %v1895 = vrot.slane %v1766, %v1894
    %v1896 = vmul.f32 %v1886, %v1895
    %v1897 = vmul.f32 %v1890, %v1895
    %v1900 = vrot.slane %v1896, 7
    %v1901 = vrot.slane %v1897, 7
    %v1904 = vadd.f32 %v1882, %v1900
    %v1905 = vadd.f32 %v1883, %v1901
    %1906 = vset.pattern.permute.xlu0 52
    %1907 = vperm.xlu0 %1906, %v1814
    %v1908 = vpop.permute.xlu0 %1907
    %1910 = vset.pattern.permute.xlu0 52
    %1911 = vperm.xlu0 %1910, %v1815
    %v1912 = vpop.permute.xlu0 %1911
    %v1914 = vlaneseq
    %v1915 = vshrl.u32 %v1914, 7
    %v1916 = vsub.s32 4, %v1915
    %v1917 = vrot.slane %v1766, %v1916
    %v1918 = vmul.f32 %v1908, %v1917
    %v1919 = vmul.f32 %v1912, %v1917
    %v1922 = vrot.slane %v1918, 7
    %v1923 = vrot.slane %v1919, 7
    %v1926 = vadd.f32 %v1904, %v1922
    %v1927 = vadd.f32 %v1905, %v1923
    %1928 = vset.pattern.permute.xlu0 53
    %1929 = vperm.xlu0 %1928, %v1814
    %v1930 = vpop.permute.xlu0 %1929
    %1932 = vset.pattern.permute.xlu0 53
    %1933 = vperm.xlu0 %1932, %v1815
    %v1934 = vpop.permute.xlu0 %1933
    %v1936 = vlaneseq
    %v1937 = vshrl.u32 %v1936, 7
    %v1938 = vsub.s32 5, %v1937
    %v1939 = vrot.slane %v1766, %v1938
    %v1940 = vmul.f32 %v1930, %v1939
    %v1941 = vmul.f32 %v1934, %v1939
    %v1944 = vrot.slane %v1940, 7
    %v1945 = vrot.slane %v1941, 7
    %v1948 = vadd.f32 %v1926, %v1944
    %v1949 = vadd.f32 %v1927, %v1945
    %1950 = vset.pattern.permute.xlu0 54
    %1951 = vperm.xlu0 %1950, %v1814
    %v1952 = vpop.permute.xlu0 %1951
    %1954 = vset.pattern.permute.xlu0 54
    %1955 = vperm.xlu0 %1954, %v1815
    %v1956 = vpop.permute.xlu0 %1955
    %v1958 = vlaneseq
    %v1959 = vshrl.u32 %v1958, 7
    %v1960 = vsub.s32 6, %v1959
    %v1961 = vrot.slane %v1766, %v1960
    %v1962 = vmul.f32 %v1952, %v1961
    %v1963 = vmul.f32 %v1956, %v1961
    %v1966 = vrot.slane %v1962, 7
    %v1967 = vrot.slane %v1963, 7
    %v1970 = vadd.f32 %v1948, %v1966
    %v1971 = vadd.f32 %v1949, %v1967
    %1972 = vset.pattern.permute.xlu0 55
    %1973 = vperm.xlu0 %1972, %v1814
    %v1974 = vpop.permute.xlu0 %1973
    %1976 = vset.pattern.permute.xlu0 55
    %1977 = vperm.xlu0 %1976, %v1815
    %v1978 = vpop.permute.xlu0 %1977
    %v1980 = vlaneseq
    %v1981 = vshrl.u32 %v1980, 7
    %v1982 = vsub.s32 7, %v1981
    %v1983 = vrot.slane %v1766, %v1982
    %v1984 = vmul.f32 %v1974, %v1983
    %v1985 = vmul.f32 %v1978, %v1983
    %v1988 = vrot.slane %v1984, 7
    %v1989 = vrot.slane %v1985, 7
    %v1992 = vadd.f32 %v1970, %v1988
    %v1993 = vadd.f32 %v1971, %v1989
    %1994 = vset.pattern.permute.xlu0 56
    %1995 = vperm.xlu0 %1994, %v1814
    %v1996 = vpop.permute.xlu0 %1995
    %1998 = vset.pattern.permute.xlu0 56
    %1999 = vperm.xlu0 %1998, %v1815
    %v2000 = vpop.permute.xlu0 %1999
    %v2002 = vlaneseq
    %v2003 = vshrl.u32 %v2002, 7
    %v2004 = vsub.s32 0, %v2003
    %v2005 = vrot.slane %v1767, %v2004
    %v2006 = vmul.f32 %v1996, %v2005
    %v2007 = vmul.f32 %v2000, %v2005
    %v2010 = vrot.slane %v2006, 7
    %v2011 = vrot.slane %v2007, 7
    %v2014 = vadd.f32 %v1992, %v2010
    %v2015 = vadd.f32 %v1993, %v2011
    %2016 = vset.pattern.permute.xlu0 57
    %2017 = vperm.xlu0 %2016, %v1814
    %v2018 = vpop.permute.xlu0 %2017
    %2020 = vset.pattern.permute.xlu0 57
    %2021 = vperm.xlu0 %2020, %v1815
    %v2022 = vpop.permute.xlu0 %2021
    %v2024 = vlaneseq
    %v2025 = vshrl.u32 %v2024, 7
    %v2026 = vsub.s32 1, %v2025
    %v2027 = vrot.slane %v1767, %v2026
    %v2028 = vmul.f32 %v2018, %v2027
    %v2029 = vmul.f32 %v2022, %v2027
    %v2032 = vrot.slane %v2028, 7
    %v2033 = vrot.slane %v2029, 7
    %v2036 = vadd.f32 %v2014, %v2032
    %v2037 = vadd.f32 %v2015, %v2033
    %2038 = vset.pattern.permute.xlu0 58
    %2039 = vperm.xlu0 %2038, %v1814
    %v2040 = vpop.permute.xlu0 %2039
    %2042 = vset.pattern.permute.xlu0 58
    %2043 = vperm.xlu0 %2042, %v1815
    %v2044 = vpop.permute.xlu0 %2043
    %v2046 = vlaneseq
    %v2047 = vshrl.u32 %v2046, 7
    %v2048 = vsub.s32 2, %v2047
    %v2049 = vrot.slane %v1767, %v2048
    %v2050 = vmul.f32 %v2040, %v2049
    %v2051 = vmul.f32 %v2044, %v2049
    %v2054 = vrot.slane %v2050, 7
    %v2055 = vrot.slane %v2051, 7
    %v2058 = vadd.f32 %v2036, %v2054
    %v2059 = vadd.f32 %v2037, %v2055
    %2060 = vset.pattern.permute.xlu0 59
    %2061 = vperm.xlu0 %2060, %v1814
    %v2062 = vpop.permute.xlu0 %2061
    %2064 = vset.pattern.permute.xlu0 59
    %2065 = vperm.xlu0 %2064, %v1815
    %v2066 = vpop.permute.xlu0 %2065
    %v2068 = vlaneseq
    %v2069 = vshrl.u32 %v2068, 7
    %v2070 = vsub.s32 3, %v2069
    %v2071 = vrot.slane %v1767, %v2070
    %v2072 = vmul.f32 %v2062, %v2071
    %v2073 = vmul.f32 %v2066, %v2071
    %v2076 = vrot.slane %v2072, 7
    %v2077 = vrot.slane %v2073, 7
    %v2080 = vadd.f32 %v2058, %v2076
    %v2081 = vadd.f32 %v2059, %v2077
    %2082 = vset.pattern.permute.xlu0 60
    %2083 = vperm.xlu0 %2082, %v1814
    %v2084 = vpop.permute.xlu0 %2083
    %2086 = vset.pattern.permute.xlu0 60
    %2087 = vperm.xlu0 %2086, %v1815
    %v2088 = vpop.permute.xlu0 %2087
    %v2090 = vlaneseq
    %v2091 = vshrl.u32 %v2090, 7
    %v2092 = vsub.s32 4, %v2091
    %v2093 = vrot.slane %v1767, %v2092
    %v2094 = vmul.f32 %v2084, %v2093
    %v2095 = vmul.f32 %v2088, %v2093
    %v2098 = vrot.slane %v2094, 7
    %v2099 = vrot.slane %v2095, 7
    %v2102 = vadd.f32 %v2080, %v2098
    %v2103 = vadd.f32 %v2081, %v2099
    %2104 = vset.pattern.permute.xlu0 61
    %2105 = vperm.xlu0 %2104, %v1814
    %v2106 = vpop.permute.xlu0 %2105
    %2108 = vset.pattern.permute.xlu0 61
    %2109 = vperm.xlu0 %2108, %v1815
    %v2110 = vpop.permute.xlu0 %2109
    %v2112 = vlaneseq
    %v2113 = vshrl.u32 %v2112, 7
    %v2114 = vsub.s32 5, %v2113
    %v2115 = vrot.slane %v1767, %v2114
    %v2116 = vmul.f32 %v2106, %v2115
    %v2117 = vmul.f32 %v2110, %v2115
    %v2120 = vrot.slane %v2116, 7
    %v2121 = vrot.slane %v2117, 7
    %v2124 = vadd.f32 %v2102, %v2120
    %v2125 = vadd.f32 %v2103, %v2121
    %2126 = vset.pattern.permute.xlu0 62
    %2127 = vperm.xlu0 %2126, %v1814
    %v2128 = vpop.permute.xlu0 %2127
    %2130 = vset.pattern.permute.xlu0 62
    %2131 = vperm.xlu0 %2130, %v1815
    %v2132 = vpop.permute.xlu0 %2131
    %v2134 = vlaneseq
    %v2135 = vshrl.u32 %v2134, 7
    %v2136 = vsub.s32 6, %v2135
    %v2137 = vrot.slane %v1767, %v2136
    %v2138 = vmul.f32 %v2128, %v2137
    %v2139 = vmul.f32 %v2132, %v2137
    %v2142 = vrot.slane %v2138, 7
    %v2143 = vrot.slane %v2139, 7
    %v2146 = vadd.f32 %v2124, %v2142
    %v2147 = vadd.f32 %v2125, %v2143
    %2148 = vset.pattern.permute.xlu0 63
    %2149 = vperm.xlu0 %2148, %v1814
    %v2150 = vpop.permute.xlu0 %2149
    %2152 = vset.pattern.permute.xlu0 63
    %2153 = vperm.xlu0 %2152, %v1815
    %v2154 = vpop.permute.xlu0 %2153
    %v2156 = vlaneseq
    %v2157 = vshrl.u32 %v2156, 7
    %v2158 = vsub.s32 7, %v2157
    %v2159 = vrot.slane %v1767, %v2158
    %v2160 = vmul.f32 %v2150, %v2159
    %v2161 = vmul.f32 %v2154, %v2159
    %v2164 = vrot.slane %v2160, 7
    %v2165 = vrot.slane %v2161, 7
    %v2168 = vadd.f32 %v2146, %v2164
    %v2169 = vadd.f32 %v2147, %v2165
    %v2170 = vxor.u32 %v2168, 2147483648
    %v2171 = vxor.u32 %v2169, 2147483648
    %v2172 = vmul.f32 %v2170, 1.442695
    %v2173 = vpow.pop %v2172
    %v2174 = vmul.f32 %v2171, 1.442695
    %v2175 = vpow.pop %v2174
    %v2176 = vadd.f32 %v2173, 1.0
    %v2177 = vadd.f32 %v2175, 1.0
    %v2178 = vrcp.pop %v2176
    %v2179 = vmul.f32 1.0, %v2178
    %v2180 = vrcp.pop %v2177
    %v2181 = vmul.f32 1.0, %v2180
    %v2182 = vtanh.pop %v2168
    %v2183 = vtanh.pop %v2169
    %v2186 = vrot.slane %v1802, 7
    %v2187 = vrot.slane %v1803, 7
    %v2190 = vmul.f32 %v2179, %v2186
    %v2191 = vmul.f32 %v2181, %v2187
    %2194 = vrot.lane.b32.xlu0 %v2182, 96
    %v2195 = vpop.permute.xlu0 %2194
    %2196 = vrot.lane.b32.xlu0 %v2183, 96
    %v2197 = vpop.permute.xlu0 %2196
    %v2200 = vmul.f32 %v2179, %v2195
    %v2201 = vmul.f32 %v2181, %v2197
    %2204 = vrot.lane.b32.xlu0 %v2200, 16
    %v2205 = vpop.permute.xlu0 %2204
    %2206 = vrot.lane.b32.xlu0 %v2201, 16
    %v2207 = vpop.permute.xlu0 %2206
    %v2210 = vadd.f32 %v2190, %v2205
    %v2211 = vadd.f32 %v2191, %v2207
    %v2212 = vtanh.pop %v2210
    %v2213 = vtanh.pop %v2211
    %2216 = vrot.lane.b32.xlu0 %v2212, 32
    %v2217 = vpop.permute.xlu0 %2216
    %2218 = vrot.lane.b32.xlu0 %v2213, 32
    %v2219 = vpop.permute.xlu0 %2218
    %v2222 = vmul.f32 %v2179, %v2217
    %v2223 = vmul.f32 %v2181, %v2219
    %2225 = vset.pattern.permute.xlu0 48
    %2226 = vperm.xlu0 %2225, %v2222
    %v2227 = vpop.permute.xlu0 %2226
    %2230 = vset.pattern.permute.xlu0 48
    %2231 = vperm.xlu0 %2230, %v2223
    %v2232 = vpop.permute.xlu0 %2231
    %v2234 = vmul.f32 %v2227, %v1829
    %v2235 = vmul.f32 %v2232, %v1829
    %v2238 = vrot.slane %v2234, 7
    %v2239 = vrot.slane %v2235, 7
    %v2242 = vadd.f32 %v1764, %v2238
    %v2243 = vadd.f32 %v1765, %v2239
    %2244 = vset.pattern.permute.xlu0 49
    %2245 = vperm.xlu0 %2244, %v2222
    %v2246 = vpop.permute.xlu0 %2245
    %2248 = vset.pattern.permute.xlu0 49
    %2249 = vperm.xlu0 %2248, %v2223
    %v2250 = vpop.permute.xlu0 %2249
    %v2252 = vmul.f32 %v2246, %v1851
    %v2253 = vmul.f32 %v2250, %v1851
    %v2256 = vrot.slane %v2252, 7
    %v2257 = vrot.slane %v2253, 7
    %v2260 = vadd.f32 %v2242, %v2256
    %v2261 = vadd.f32 %v2243, %v2257
    %2262 = vset.pattern.permute.xlu0 50
    %2263 = vperm.xlu0 %2262, %v2222
    %v2264 = vpop.permute.xlu0 %2263
    %2266 = vset.pattern.permute.xlu0 50
    %2267 = vperm.xlu0 %2266, %v2223
    %v2268 = vpop.permute.xlu0 %2267
    %v2270 = vmul.f32 %v2264, %v1873
    %v2271 = vmul.f32 %v2268, %v1873
    %v2274 = vrot.slane %v2270, 7
    %v2275 = vrot.slane %v2271, 7
    %v2278 = vadd.f32 %v2260, %v2274
    %v2279 = vadd.f32 %v2261, %v2275
    %2280 = vset.pattern.permute.xlu0 51
    %2281 = vperm.xlu0 %2280, %v2222
    %v2282 = vpop.permute.xlu0 %2281
    %2284 = vset.pattern.permute.xlu0 51
    %2285 = vperm.xlu0 %2284, %v2223
    %v2286 = vpop.permute.xlu0 %2285
    %v2288 = vmul.f32 %v2282, %v1895
    %v2289 = vmul.f32 %v2286, %v1895
    %v2292 = vrot.slane %v2288, 7
    %v2293 = vrot.slane %v2289, 7
    %v2296 = vadd.f32 %v2278, %v2292
    %v2297 = vadd.f32 %v2279, %v2293
    %2298 = vset.pattern.permute.xlu0 52
    %2299 = vperm.xlu0 %2298, %v2222
    %v2300 = vpop.permute.xlu0 %2299
    %2302 = vset.pattern.permute.xlu0 52
    %2303 = vperm.xlu0 %2302, %v2223
    %v2304 = vpop.permute.xlu0 %2303
    %v2306 = vmul.f32 %v2300, %v1917
    %v2307 = vmul.f32 %v2304, %v1917
    %v2310 = vrot.slane %v2306, 7
    %v2311 = vrot.slane %v2307, 7
    %v2314 = vadd.f32 %v2296, %v2310
    %v2315 = vadd.f32 %v2297, %v2311
    %2316 = vset.pattern.permute.xlu0 53
    %2317 = vperm.xlu0 %2316, %v2222
    %v2318 = vpop.permute.xlu0 %2317
    %2320 = vset.pattern.permute.xlu0 53
    %2321 = vperm.xlu0 %2320, %v2223
    %v2322 = vpop.permute.xlu0 %2321
    %v2324 = vmul.f32 %v2318, %v1939
    %v2325 = vmul.f32 %v2322, %v1939
    %v2328 = vrot.slane %v2324, 7
    %v2329 = vrot.slane %v2325, 7
    %v2332 = vadd.f32 %v2314, %v2328
    %v2333 = vadd.f32 %v2315, %v2329
    %2334 = vset.pattern.permute.xlu0 54
    %2335 = vperm.xlu0 %2334, %v2222
    %v2336 = vpop.permute.xlu0 %2335
    %2338 = vset.pattern.permute.xlu0 54
    %2339 = vperm.xlu0 %2338, %v2223
    %v2340 = vpop.permute.xlu0 %2339
    %v2342 = vmul.f32 %v2336, %v1961
    %v2343 = vmul.f32 %v2340, %v1961
    %v2346 = vrot.slane %v2342, 7
    %v2347 = vrot.slane %v2343, 7
    %v2350 = vadd.f32 %v2332, %v2346
    %v2351 = vadd.f32 %v2333, %v2347
    %2352 = vset.pattern.permute.xlu0 55
    %2353 = vperm.xlu0 %2352, %v2222
    %v2354 = vpop.permute.xlu0 %2353
    %2356 = vset.pattern.permute.xlu0 55
    %2357 = vperm.xlu0 %2356, %v2223
    %v2358 = vpop.permute.xlu0 %2357
    %v2360 = vmul.f32 %v2354, %v1983
    %v2361 = vmul.f32 %v2358, %v1983
    %v2364 = vrot.slane %v2360, 7
    %v2365 = vrot.slane %v2361, 7
    %v2368 = vadd.f32 %v2350, %v2364
    %v2369 = vadd.f32 %v2351, %v2365
    %2370 = vset.pattern.permute.xlu0 56
    %2371 = vperm.xlu0 %2370, %v2222
    %v2372 = vpop.permute.xlu0 %2371
    %2374 = vset.pattern.permute.xlu0 56
    %2375 = vperm.xlu0 %2374, %v2223
    %v2376 = vpop.permute.xlu0 %2375
    %v2378 = vmul.f32 %v2372, %v2005
    %v2379 = vmul.f32 %v2376, %v2005
    %v2382 = vrot.slane %v2378, 7
    %v2383 = vrot.slane %v2379, 7
    %v2386 = vadd.f32 %v2368, %v2382
    %v2387 = vadd.f32 %v2369, %v2383
    %2388 = vset.pattern.permute.xlu0 57
    %2389 = vperm.xlu0 %2388, %v2222
    %v2390 = vpop.permute.xlu0 %2389
    %2392 = vset.pattern.permute.xlu0 57
    %2393 = vperm.xlu0 %2392, %v2223
    %v2394 = vpop.permute.xlu0 %2393
    %v2396 = vmul.f32 %v2390, %v2027
    %v2397 = vmul.f32 %v2394, %v2027
    %v2400 = vrot.slane %v2396, 7
    %v2401 = vrot.slane %v2397, 7
    %v2404 = vadd.f32 %v2386, %v2400
    %v2405 = vadd.f32 %v2387, %v2401
    %2406 = vset.pattern.permute.xlu0 58
    %2407 = vperm.xlu0 %2406, %v2222
    %v2408 = vpop.permute.xlu0 %2407
    %2410 = vset.pattern.permute.xlu0 58
    %2411 = vperm.xlu0 %2410, %v2223
    %v2412 = vpop.permute.xlu0 %2411
    %v2414 = vmul.f32 %v2408, %v2049
    %v2415 = vmul.f32 %v2412, %v2049
    %v2418 = vrot.slane %v2414, 7
    %v2419 = vrot.slane %v2415, 7
    %v2422 = vadd.f32 %v2404, %v2418
    %v2423 = vadd.f32 %v2405, %v2419
    %2424 = vset.pattern.permute.xlu0 59
    %2425 = vperm.xlu0 %2424, %v2222
    %v2426 = vpop.permute.xlu0 %2425
    %2428 = vset.pattern.permute.xlu0 59
    %2429 = vperm.xlu0 %2428, %v2223
    %v2430 = vpop.permute.xlu0 %2429
    %v2432 = vmul.f32 %v2426, %v2071
    %v2433 = vmul.f32 %v2430, %v2071
    %v2436 = vrot.slane %v2432, 7
    %v2437 = vrot.slane %v2433, 7
    %v2440 = vadd.f32 %v2422, %v2436
    %v2441 = vadd.f32 %v2423, %v2437
    %2442 = vset.pattern.permute.xlu0 60
    %2443 = vperm.xlu0 %2442, %v2222
    %v2444 = vpop.permute.xlu0 %2443
    %2446 = vset.pattern.permute.xlu0 60
    %2447 = vperm.xlu0 %2446, %v2223
    %v2448 = vpop.permute.xlu0 %2447
    %v2450 = vmul.f32 %v2444, %v2093
    %v2451 = vmul.f32 %v2448, %v2093
    %v2454 = vrot.slane %v2450, 7
    %v2455 = vrot.slane %v2451, 7
    %v2458 = vadd.f32 %v2440, %v2454
    %v2459 = vadd.f32 %v2441, %v2455
    %2460 = vset.pattern.permute.xlu0 61
    %2461 = vperm.xlu0 %2460, %v2222
    %v2462 = vpop.permute.xlu0 %2461
    %2464 = vset.pattern.permute.xlu0 61
    %2465 = vperm.xlu0 %2464, %v2223
    %v2466 = vpop.permute.xlu0 %2465
    %v2468 = vmul.f32 %v2462, %v2115
    %v2469 = vmul.f32 %v2466, %v2115
    %v2472 = vrot.slane %v2468, 7
    %v2473 = vrot.slane %v2469, 7
    %v2476 = vadd.f32 %v2458, %v2472
    %v2477 = vadd.f32 %v2459, %v2473
    %2478 = vset.pattern.permute.xlu0 62
    %2479 = vperm.xlu0 %2478, %v2222
    %v2480 = vpop.permute.xlu0 %2479
    %2482 = vset.pattern.permute.xlu0 62
    %2483 = vperm.xlu0 %2482, %v2223
    %v2484 = vpop.permute.xlu0 %2483
    %v2486 = vmul.f32 %v2480, %v2137
    %v2487 = vmul.f32 %v2484, %v2137
    %v2490 = vrot.slane %v2486, 7
    %v2491 = vrot.slane %v2487, 7
    %v2494 = vadd.f32 %v2476, %v2490
    %v2495 = vadd.f32 %v2477, %v2491
    %2496 = vset.pattern.permute.xlu0 63
    %2497 = vperm.xlu0 %2496, %v2222
    %v2498 = vpop.permute.xlu0 %2497
    %2500 = vset.pattern.permute.xlu0 63
    %2501 = vperm.xlu0 %2500, %v2223
    %v2502 = vpop.permute.xlu0 %2501
    %v2504 = vmul.f32 %v2498, %v2159
    %v2505 = vmul.f32 %v2502, %v2159
    %v2508 = vrot.slane %v2504, 7
    %v2509 = vrot.slane %v2505, 7
    %v2512 = vadd.f32 %v2494, %v2508
    %v2513 = vadd.f32 %v2495, %v2509
    %v2514 = vxor.u32 %v2512, 2147483648
    %v2515 = vxor.u32 %v2513, 2147483648
    %v2516 = vmul.f32 %v2514, 1.442695
    %v2517 = vpow.pop %v2516
    %v2518 = vmul.f32 %v2515, 1.442695
    %v2519 = vpow.pop %v2518
    %v2520 = vadd.f32 %v2517, 1.0
    %v2521 = vadd.f32 %v2519, 1.0
    %v2522 = vrcp.pop %v2520
    %v2523 = vmul.f32 1.0, %v2522
    %v2524 = vrcp.pop %v2521
    %v2525 = vmul.f32 1.0, %v2524
    %v2526 = vtanh.pop %v2512
    %v2527 = vtanh.pop %v2513
    %v2530 = vrot.slane %v2210, 7
    %v2531 = vrot.slane %v2211, 7
    %v2534 = vmul.f32 %v2523, %v2530
    %v2535 = vmul.f32 %v2525, %v2531
    %2538 = vrot.lane.b32.xlu0 %v2526, 96
    %v2539 = vpop.permute.xlu0 %2538
    %2540 = vrot.lane.b32.xlu0 %v2527, 96
    %v2541 = vpop.permute.xlu0 %2540
    %v2544 = vmul.f32 %v2523, %v2539
    %v2545 = vmul.f32 %v2525, %v2541
    %2548 = vrot.lane.b32.xlu0 %v2544, 16
    %v2549 = vpop.permute.xlu0 %2548
    %2550 = vrot.lane.b32.xlu0 %v2545, 16
    %v2551 = vpop.permute.xlu0 %2550
    %v2554 = vadd.f32 %v2534, %v2549
    %v2555 = vadd.f32 %v2535, %v2551
    %v2556 = vtanh.pop %v2554
    %v2557 = vtanh.pop %v2555
    %2560 = vrot.lane.b32.xlu0 %v2556, 32
    %v2561 = vpop.permute.xlu0 %2560
    %2562 = vrot.lane.b32.xlu0 %v2557, 32
    %v2563 = vpop.permute.xlu0 %2562
    %v2566 = vmul.f32 %v2523, %v2561
    %v2567 = vmul.f32 %v2525, %v2563
    %2569 = vset.pattern.permute.xlu0 48
    %2570 = vperm.xlu0 %2569, %v2566
    %v2571 = vpop.permute.xlu0 %2570
    %2574 = vset.pattern.permute.xlu0 48
    %2575 = vperm.xlu0 %2574, %v2567
    %v2576 = vpop.permute.xlu0 %2575
    %v2578 = vmul.f32 %v2571, %v1829
    %v2579 = vmul.f32 %v2576, %v1829
    %v2582 = vrot.slane %v2578, 7
    %v2583 = vrot.slane %v2579, 7
    %v2586 = vadd.f32 %v1764, %v2582
    %v2587 = vadd.f32 %v1765, %v2583
    %2588 = vset.pattern.permute.xlu0 49
    %2589 = vperm.xlu0 %2588, %v2566
    %v2590 = vpop.permute.xlu0 %2589
    %2592 = vset.pattern.permute.xlu0 49
    %2593 = vperm.xlu0 %2592, %v2567
    %v2594 = vpop.permute.xlu0 %2593
    %v2596 = vmul.f32 %v2590, %v1851
    %v2597 = vmul.f32 %v2594, %v1851
    %v2600 = vrot.slane %v2596, 7
    %v2601 = vrot.slane %v2597, 7
    %v2604 = vadd.f32 %v2586, %v2600
    %v2605 = vadd.f32 %v2587, %v2601
    %2606 = vset.pattern.permute.xlu0 50
    %2607 = vperm.xlu0 %2606, %v2566
    %v2608 = vpop.permute.xlu0 %2607
    %2610 = vset.pattern.permute.xlu0 50
    %2611 = vperm.xlu0 %2610, %v2567
    %v2612 = vpop.permute.xlu0 %2611
    %v2614 = vmul.f32 %v2608, %v1873
    %v2615 = vmul.f32 %v2612, %v1873
    %v2618 = vrot.slane %v2614, 7
    %v2619 = vrot.slane %v2615, 7
    %v2622 = vadd.f32 %v2604, %v2618
    %v2623 = vadd.f32 %v2605, %v2619
    %2624 = vset.pattern.permute.xlu0 51
    %2625 = vperm.xlu0 %2624, %v2566
    %v2626 = vpop.permute.xlu0 %2625
    %2628 = vset.pattern.permute.xlu0 51
    %2629 = vperm.xlu0 %2628, %v2567
    %v2630 = vpop.permute.xlu0 %2629
    %v2632 = vmul.f32 %v2626, %v1895
    %v2633 = vmul.f32 %v2630, %v1895
    %v2636 = vrot.slane %v2632, 7
    %v2637 = vrot.slane %v2633, 7
    %v2640 = vadd.f32 %v2622, %v2636
    %v2641 = vadd.f32 %v2623, %v2637
    %2642 = vset.pattern.permute.xlu0 52
    %2643 = vperm.xlu0 %2642, %v2566
    %v2644 = vpop.permute.xlu0 %2643
    %2646 = vset.pattern.permute.xlu0 52
    %2647 = vperm.xlu0 %2646, %v2567
    %v2648 = vpop.permute.xlu0 %2647
    %v2650 = vmul.f32 %v2644, %v1917
    %v2651 = vmul.f32 %v2648, %v1917
    %v2654 = vrot.slane %v2650, 7
    %v2655 = vrot.slane %v2651, 7
    %v2658 = vadd.f32 %v2640, %v2654
    %v2659 = vadd.f32 %v2641, %v2655
    %2660 = vset.pattern.permute.xlu0 53
    %2661 = vperm.xlu0 %2660, %v2566
    %v2662 = vpop.permute.xlu0 %2661
    %2664 = vset.pattern.permute.xlu0 53
    %2665 = vperm.xlu0 %2664, %v2567
    %v2666 = vpop.permute.xlu0 %2665
    %v2668 = vmul.f32 %v2662, %v1939
    %v2669 = vmul.f32 %v2666, %v1939
    %v2672 = vrot.slane %v2668, 7
    %v2673 = vrot.slane %v2669, 7
    %v2676 = vadd.f32 %v2658, %v2672
    %v2677 = vadd.f32 %v2659, %v2673
    %2678 = vset.pattern.permute.xlu0 54
    %2679 = vperm.xlu0 %2678, %v2566
    %v2680 = vpop.permute.xlu0 %2679
    %2682 = vset.pattern.permute.xlu0 54
    %2683 = vperm.xlu0 %2682, %v2567
    %v2684 = vpop.permute.xlu0 %2683
    %v2686 = vmul.f32 %v2680, %v1961
    %v2687 = vmul.f32 %v2684, %v1961
    %v2690 = vrot.slane %v2686, 7
    %v2691 = vrot.slane %v2687, 7
    %v2694 = vadd.f32 %v2676, %v2690
    %v2695 = vadd.f32 %v2677, %v2691
    %2696 = vset.pattern.permute.xlu0 55
    %2697 = vperm.xlu0 %2696, %v2566
    %v2698 = vpop.permute.xlu0 %2697
    %2700 = vset.pattern.permute.xlu0 55
    %2701 = vperm.xlu0 %2700, %v2567
    %v2702 = vpop.permute.xlu0 %2701
    %v2704 = vmul.f32 %v2698, %v1983
    %v2705 = vmul.f32 %v2702, %v1983
    %v2708 = vrot.slane %v2704, 7
    %v2709 = vrot.slane %v2705, 7
    %v2712 = vadd.f32 %v2694, %v2708
    %v2713 = vadd.f32 %v2695, %v2709
    %2714 = vset.pattern.permute.xlu0 56
    %2715 = vperm.xlu0 %2714, %v2566
    %v2716 = vpop.permute.xlu0 %2715
    %2718 = vset.pattern.permute.xlu0 56
    %2719 = vperm.xlu0 %2718, %v2567
    %v2720 = vpop.permute.xlu0 %2719
    %v2722 = vmul.f32 %v2716, %v2005
    %v2723 = vmul.f32 %v2720, %v2005
    %v2726 = vrot.slane %v2722, 7
    %v2727 = vrot.slane %v2723, 7
    %v2730 = vadd.f32 %v2712, %v2726
    %v2731 = vadd.f32 %v2713, %v2727
    %2732 = vset.pattern.permute.xlu0 57
    %2733 = vperm.xlu0 %2732, %v2566
    %v2734 = vpop.permute.xlu0 %2733
    %2736 = vset.pattern.permute.xlu0 57
    %2737 = vperm.xlu0 %2736, %v2567
    %v2738 = vpop.permute.xlu0 %2737
    %v2740 = vmul.f32 %v2734, %v2027
    %v2741 = vmul.f32 %v2738, %v2027
    %v2744 = vrot.slane %v2740, 7
    %v2745 = vrot.slane %v2741, 7
    %v2748 = vadd.f32 %v2730, %v2744
    %v2749 = vadd.f32 %v2731, %v2745
    %2750 = vset.pattern.permute.xlu0 58
    %2751 = vperm.xlu0 %2750, %v2566
    %v2752 = vpop.permute.xlu0 %2751
    %2754 = vset.pattern.permute.xlu0 58
    %2755 = vperm.xlu0 %2754, %v2567
    %v2756 = vpop.permute.xlu0 %2755
    %v2758 = vmul.f32 %v2752, %v2049
    %v2759 = vmul.f32 %v2756, %v2049
    %v2762 = vrot.slane %v2758, 7
    %v2763 = vrot.slane %v2759, 7
    %v2766 = vadd.f32 %v2748, %v2762
    %v2767 = vadd.f32 %v2749, %v2763
    %2768 = vset.pattern.permute.xlu0 59
    %2769 = vperm.xlu0 %2768, %v2566
    %v2770 = vpop.permute.xlu0 %2769
    %2772 = vset.pattern.permute.xlu0 59
    %2773 = vperm.xlu0 %2772, %v2567
    %v2774 = vpop.permute.xlu0 %2773
    %v2776 = vmul.f32 %v2770, %v2071
    %v2777 = vmul.f32 %v2774, %v2071
    %v2780 = vrot.slane %v2776, 7
    %v2781 = vrot.slane %v2777, 7
    %v2784 = vadd.f32 %v2766, %v2780
    %v2785 = vadd.f32 %v2767, %v2781
    %2786 = vset.pattern.permute.xlu0 60
    %2787 = vperm.xlu0 %2786, %v2566
    %v2788 = vpop.permute.xlu0 %2787
    %2790 = vset.pattern.permute.xlu0 60
    %2791 = vperm.xlu0 %2790, %v2567
    %v2792 = vpop.permute.xlu0 %2791
    %v2794 = vmul.f32 %v2788, %v2093
    %v2795 = vmul.f32 %v2792, %v2093
    %v2798 = vrot.slane %v2794, 7
    %v2799 = vrot.slane %v2795, 7
    %v2802 = vadd.f32 %v2784, %v2798
    %v2803 = vadd.f32 %v2785, %v2799
    %2804 = vset.pattern.permute.xlu0 61
    %2805 = vperm.xlu0 %2804, %v2566
    %v2806 = vpop.permute.xlu0 %2805
    %2808 = vset.pattern.permute.xlu0 61
    %2809 = vperm.xlu0 %2808, %v2567
    %v2810 = vpop.permute.xlu0 %2809
    %v2812 = vmul.f32 %v2806, %v2115
    %v2813 = vmul.f32 %v2810, %v2115
    %v2816 = vrot.slane %v2812, 7
    %v2817 = vrot.slane %v2813, 7
    %v2820 = vadd.f32 %v2802, %v2816
    %v2821 = vadd.f32 %v2803, %v2817
    %2822 = vset.pattern.permute.xlu0 62
    %2823 = vperm.xlu0 %2822, %v2566
    %v2824 = vpop.permute.xlu0 %2823
    %2826 = vset.pattern.permute.xlu0 62
    %2827 = vperm.xlu0 %2826, %v2567
    %v2828 = vpop.permute.xlu0 %2827
    %v2830 = vmul.f32 %v2824, %v2137
    %v2831 = vmul.f32 %v2828, %v2137
    %v2834 = vrot.slane %v2830, 7
    %v2835 = vrot.slane %v2831, 7
    %v2838 = vadd.f32 %v2820, %v2834
    %v2839 = vadd.f32 %v2821, %v2835
    %2840 = vset.pattern.permute.xlu0 63
    %2841 = vperm.xlu0 %2840, %v2566
    %v2842 = vpop.permute.xlu0 %2841
    %2844 = vset.pattern.permute.xlu0 63
    %2845 = vperm.xlu0 %2844, %v2567
    %v2846 = vpop.permute.xlu0 %2845
    %v2848 = vmul.f32 %v2842, %v2159
    %v2849 = vmul.f32 %v2846, %v2159
    %v2852 = vrot.slane %v2848, 7
    %v2853 = vrot.slane %v2849, 7
    %v2856 = vadd.f32 %v2838, %v2852
    %v2857 = vadd.f32 %v2839, %v2853
    %v2858 = vxor.u32 %v2856, 2147483648
    %v2859 = vxor.u32 %v2857, 2147483648
    %v2860 = vmul.f32 %v2858, 1.442695
    %v2861 = vpow.pop %v2860
    %v2862 = vmul.f32 %v2859, 1.442695
    %v2863 = vpow.pop %v2862
    %v2864 = vadd.f32 %v2861, 1.0
    %v2865 = vadd.f32 %v2863, 1.0
    %v2866 = vrcp.pop %v2864
    %v2867 = vmul.f32 1.0, %v2866
    %v2868 = vrcp.pop %v2865
    %v2869 = vmul.f32 1.0, %v2868
    %v2870 = vtanh.pop %v2856
    %v2871 = vtanh.pop %v2857
    %v2874 = vrot.slane %v2554, 7
    %v2875 = vrot.slane %v2555, 7
    %v2878 = vmul.f32 %v2867, %v2874
    %v2879 = vmul.f32 %v2869, %v2875
    %2882 = vrot.lane.b32.xlu0 %v2870, 96
    %v2883 = vpop.permute.xlu0 %2882
    %2884 = vrot.lane.b32.xlu0 %v2871, 96
    %v2885 = vpop.permute.xlu0 %2884
    %v2888 = vmul.f32 %v2867, %v2883
    %v2889 = vmul.f32 %v2869, %v2885
    %2892 = vrot.lane.b32.xlu0 %v2888, 16
    %v2893 = vpop.permute.xlu0 %2892
    %2894 = vrot.lane.b32.xlu0 %v2889, 16
    %v2895 = vpop.permute.xlu0 %2894
    %v2898 = vadd.f32 %v2878, %v2893
    %v2899 = vadd.f32 %v2879, %v2895
    %v2900 = vtanh.pop %v2898
    %v2901 = vtanh.pop %v2899
    %2904 = vrot.lane.b32.xlu0 %v2900, 32
    %v2905 = vpop.permute.xlu0 %2904
    %2906 = vrot.lane.b32.xlu0 %v2901, 32
    %v2907 = vpop.permute.xlu0 %2906
    %v2910 = vmul.f32 %v2867, %v2905
    %v2911 = vmul.f32 %v2869, %v2907
    %2913 = vset.pattern.permute.xlu0 48
    %2914 = vperm.xlu0 %2913, %v2910
    %v2915 = vpop.permute.xlu0 %2914
    %2918 = vset.pattern.permute.xlu0 48
    %2919 = vperm.xlu0 %2918, %v2911
    %v2920 = vpop.permute.xlu0 %2919
    %v2922 = vmul.f32 %v2915, %v1829
    %v2923 = vmul.f32 %v2920, %v1829
    %v2926 = vrot.slane %v2922, 7
    %v2927 = vrot.slane %v2923, 7
    %v2930 = vadd.f32 %v1764, %v2926
    %v2931 = vadd.f32 %v1765, %v2927
    %2932 = vset.pattern.permute.xlu0 49
    %2933 = vperm.xlu0 %2932, %v2910
    %v2934 = vpop.permute.xlu0 %2933
    %2936 = vset.pattern.permute.xlu0 49
    %2937 = vperm.xlu0 %2936, %v2911
    %v2938 = vpop.permute.xlu0 %2937
    %v2940 = vmul.f32 %v2934, %v1851
    %v2941 = vmul.f32 %v2938, %v1851
    %v2944 = vrot.slane %v2940, 7
    %v2945 = vrot.slane %v2941, 7
    %v2948 = vadd.f32 %v2930, %v2944
    %v2949 = vadd.f32 %v2931, %v2945
    %2950 = vset.pattern.permute.xlu0 50
    %2951 = vperm.xlu0 %2950, %v2910
    %v2952 = vpop.permute.xlu0 %2951
    %2954 = vset.pattern.permute.xlu0 50
    %2955 = vperm.xlu0 %2954, %v2911
    %v2956 = vpop.permute.xlu0 %2955
    %v2958 = vmul.f32 %v2952, %v1873
    %v2959 = vmul.f32 %v2956, %v1873
    %v2962 = vrot.slane %v2958, 7
    %v2963 = vrot.slane %v2959, 7
    %v2966 = vadd.f32 %v2948, %v2962
    %v2967 = vadd.f32 %v2949, %v2963
    %2968 = vset.pattern.permute.xlu0 51
    %2969 = vperm.xlu0 %2968, %v2910
    %v2970 = vpop.permute.xlu0 %2969
    %2972 = vset.pattern.permute.xlu0 51
    %2973 = vperm.xlu0 %2972, %v2911
    %v2974 = vpop.permute.xlu0 %2973
    %v2976 = vmul.f32 %v2970, %v1895
    %v2977 = vmul.f32 %v2974, %v1895
    %v2980 = vrot.slane %v2976, 7
    %v2981 = vrot.slane %v2977, 7
    %v2984 = vadd.f32 %v2966, %v2980
    %v2985 = vadd.f32 %v2967, %v2981
    %2986 = vset.pattern.permute.xlu0 52
    %2987 = vperm.xlu0 %2986, %v2910
    %v2988 = vpop.permute.xlu0 %2987
    %2990 = vset.pattern.permute.xlu0 52
    %2991 = vperm.xlu0 %2990, %v2911
    %v2992 = vpop.permute.xlu0 %2991
    %v2994 = vmul.f32 %v2988, %v1917
    %v2995 = vmul.f32 %v2992, %v1917
    %v2998 = vrot.slane %v2994, 7
    %v2999 = vrot.slane %v2995, 7
    %v3002 = vadd.f32 %v2984, %v2998
    %v3003 = vadd.f32 %v2985, %v2999
    %3004 = vset.pattern.permute.xlu0 53
    %3005 = vperm.xlu0 %3004, %v2910
    %v3006 = vpop.permute.xlu0 %3005
    %3008 = vset.pattern.permute.xlu0 53
    %3009 = vperm.xlu0 %3008, %v2911
    %v3010 = vpop.permute.xlu0 %3009
    %v3012 = vmul.f32 %v3006, %v1939
    %v3013 = vmul.f32 %v3010, %v1939
    %v3016 = vrot.slane %v3012, 7
    %v3017 = vrot.slane %v3013, 7
    %v3020 = vadd.f32 %v3002, %v3016
    %v3021 = vadd.f32 %v3003, %v3017
    %3022 = vset.pattern.permute.xlu0 54
    %3023 = vperm.xlu0 %3022, %v2910
    %v3024 = vpop.permute.xlu0 %3023
    %3026 = vset.pattern.permute.xlu0 54
    %3027 = vperm.xlu0 %3026, %v2911
    %v3028 = vpop.permute.xlu0 %3027
    %v3030 = vmul.f32 %v3024, %v1961
    %v3031 = vmul.f32 %v3028, %v1961
    %v3034 = vrot.slane %v3030, 7
    %v3035 = vrot.slane %v3031, 7
    %v3038 = vadd.f32 %v3020, %v3034
    %v3039 = vadd.f32 %v3021, %v3035
    %3040 = vset.pattern.permute.xlu0 55
    %3041 = vperm.xlu0 %3040, %v2910
    %v3042 = vpop.permute.xlu0 %3041
    %3044 = vset.pattern.permute.xlu0 55
    %3045 = vperm.xlu0 %3044, %v2911
    %v3046 = vpop.permute.xlu0 %3045
    %v3048 = vmul.f32 %v3042, %v1983
    %v3049 = vmul.f32 %v3046, %v1983
    %v3052 = vrot.slane %v3048, 7
    %v3053 = vrot.slane %v3049, 7
    %v3056 = vadd.f32 %v3038, %v3052
    %v3057 = vadd.f32 %v3039, %v3053
    %3058 = vset.pattern.permute.xlu0 56
    %3059 = vperm.xlu0 %3058, %v2910
    %v3060 = vpop.permute.xlu0 %3059
    %3062 = vset.pattern.permute.xlu0 56
    %3063 = vperm.xlu0 %3062, %v2911
    %v3064 = vpop.permute.xlu0 %3063
    %v3066 = vmul.f32 %v3060, %v2005
    %v3067 = vmul.f32 %v3064, %v2005
    %v3070 = vrot.slane %v3066, 7
    %v3071 = vrot.slane %v3067, 7
    %v3074 = vadd.f32 %v3056, %v3070
    %v3075 = vadd.f32 %v3057, %v3071
    %3076 = vset.pattern.permute.xlu0 57
    %3077 = vperm.xlu0 %3076, %v2910
    %v3078 = vpop.permute.xlu0 %3077
    %3080 = vset.pattern.permute.xlu0 57
    %3081 = vperm.xlu0 %3080, %v2911
    %v3082 = vpop.permute.xlu0 %3081
    %v3084 = vmul.f32 %v3078, %v2027
    %v3085 = vmul.f32 %v3082, %v2027
    %v3088 = vrot.slane %v3084, 7
    %v3089 = vrot.slane %v3085, 7
    %v3092 = vadd.f32 %v3074, %v3088
    %v3093 = vadd.f32 %v3075, %v3089
    %3094 = vset.pattern.permute.xlu0 58
    %3095 = vperm.xlu0 %3094, %v2910
    %v3096 = vpop.permute.xlu0 %3095
    %3098 = vset.pattern.permute.xlu0 58
    %3099 = vperm.xlu0 %3098, %v2911
    %v3100 = vpop.permute.xlu0 %3099
    %v3102 = vmul.f32 %v3096, %v2049
    %v3103 = vmul.f32 %v3100, %v2049
    %v3106 = vrot.slane %v3102, 7
    %v3107 = vrot.slane %v3103, 7
    %v3110 = vadd.f32 %v3092, %v3106
    %v3111 = vadd.f32 %v3093, %v3107
    %3112 = vset.pattern.permute.xlu0 59
    %3113 = vperm.xlu0 %3112, %v2910
    %v3114 = vpop.permute.xlu0 %3113
    %3116 = vset.pattern.permute.xlu0 59
    %3117 = vperm.xlu0 %3116, %v2911
    %v3118 = vpop.permute.xlu0 %3117
    %v3120 = vmul.f32 %v3114, %v2071
    %v3121 = vmul.f32 %v3118, %v2071
    %v3124 = vrot.slane %v3120, 7
    %v3125 = vrot.slane %v3121, 7
    %v3128 = vadd.f32 %v3110, %v3124
    %v3129 = vadd.f32 %v3111, %v3125
    %3130 = vset.pattern.permute.xlu0 60
    %3131 = vperm.xlu0 %3130, %v2910
    %v3132 = vpop.permute.xlu0 %3131
    %3134 = vset.pattern.permute.xlu0 60
    %3135 = vperm.xlu0 %3134, %v2911
    %v3136 = vpop.permute.xlu0 %3135
    %v3138 = vmul.f32 %v3132, %v2093
    %v3139 = vmul.f32 %v3136, %v2093
    %v3142 = vrot.slane %v3138, 7
    %v3143 = vrot.slane %v3139, 7
    %v3146 = vadd.f32 %v3128, %v3142
    %v3147 = vadd.f32 %v3129, %v3143
    %3148 = vset.pattern.permute.xlu0 61
    %3149 = vperm.xlu0 %3148, %v2910
    %v3150 = vpop.permute.xlu0 %3149
    %3152 = vset.pattern.permute.xlu0 61
    %3153 = vperm.xlu0 %3152, %v2911
    %v3154 = vpop.permute.xlu0 %3153
    %v3156 = vmul.f32 %v3150, %v2115
    %v3157 = vmul.f32 %v3154, %v2115
    %v3160 = vrot.slane %v3156, 7
    %v3161 = vrot.slane %v3157, 7
    %v3164 = vadd.f32 %v3146, %v3160
    %v3165 = vadd.f32 %v3147, %v3161
    %3166 = vset.pattern.permute.xlu0 62
    %3167 = vperm.xlu0 %3166, %v2910
    %v3168 = vpop.permute.xlu0 %3167
    %3170 = vset.pattern.permute.xlu0 62
    %3171 = vperm.xlu0 %3170, %v2911
    %v3172 = vpop.permute.xlu0 %3171
    %v3174 = vmul.f32 %v3168, %v2137
    %v3175 = vmul.f32 %v3172, %v2137
    %v3178 = vrot.slane %v3174, 7
    %v3179 = vrot.slane %v3175, 7
    %v3182 = vadd.f32 %v3164, %v3178
    %v3183 = vadd.f32 %v3165, %v3179
    %3184 = vset.pattern.permute.xlu0 63
    %3185 = vperm.xlu0 %3184, %v2910
    %v3186 = vpop.permute.xlu0 %3185
    %3188 = vset.pattern.permute.xlu0 63
    %3189 = vperm.xlu0 %3188, %v2911
    %v3190 = vpop.permute.xlu0 %3189
    %v3192 = vmul.f32 %v3186, %v2159
    %v3193 = vmul.f32 %v3190, %v2159
    %v3196 = vrot.slane %v3192, 7
    %v3197 = vrot.slane %v3193, 7
    %v3200 = vadd.f32 %v3182, %v3196
    %v3201 = vadd.f32 %v3183, %v3197
    %v3202 = vxor.u32 %v3200, 2147483648
    %v3203 = vxor.u32 %v3201, 2147483648
    %v3204 = vmul.f32 %v3202, 1.442695
    %v3205 = vpow.pop %v3204
    %v3206 = vmul.f32 %v3203, 1.442695
    %v3207 = vpow.pop %v3206
    %v3208 = vadd.f32 %v3205, 1.0
    %v3209 = vadd.f32 %v3207, 1.0
    %v3210 = vrcp.pop %v3208
    %v3211 = vmul.f32 1.0, %v3210
    %v3212 = vrcp.pop %v3209
    %v3213 = vmul.f32 1.0, %v3212
    %v3214 = vtanh.pop %v3200
    %v3215 = vtanh.pop %v3201
    %v3218 = vrot.slane %v2898, 7
    %v3219 = vrot.slane %v2899, 7
    %v3222 = vmul.f32 %v3211, %v3218
    %v3223 = vmul.f32 %v3213, %v3219
    %3226 = vrot.lane.b32.xlu0 %v3214, 96
    %v3227 = vpop.permute.xlu0 %3226
    %3228 = vrot.lane.b32.xlu0 %v3215, 96
    %v3229 = vpop.permute.xlu0 %3228
    %v3232 = vmul.f32 %v3211, %v3227
    %v3233 = vmul.f32 %v3213, %v3229
    %3236 = vrot.lane.b32.xlu0 %v3232, 16
    %v3237 = vpop.permute.xlu0 %3236
    %3238 = vrot.lane.b32.xlu0 %v3233, 16
    %v3239 = vpop.permute.xlu0 %3238
    %v3242 = vadd.f32 %v3222, %v3237
    %v3243 = vadd.f32 %v3223, %v3239
    %v3244 = vtanh.pop %v3242
    %v3245 = vtanh.pop %v3243
    %3248 = vrot.lane.b32.xlu0 %v3244, 32
    %v3249 = vpop.permute.xlu0 %3248
    %3250 = vrot.lane.b32.xlu0 %v3245, 32
    %v3251 = vpop.permute.xlu0 %3250
    %v3254 = vmul.f32 %v3211, %v3249
    %v3255 = vmul.f32 %v3213, %v3251
    %3257 = vset.pattern.permute.xlu0 48
    %3258 = vperm.xlu0 %3257, %v3254
    %v3259 = vpop.permute.xlu0 %3258
    %3262 = vset.pattern.permute.xlu0 48
    %3263 = vperm.xlu0 %3262, %v3255
    %v3264 = vpop.permute.xlu0 %3263
    %v3266 = vmul.f32 %v3259, %v1829
    %v3267 = vmul.f32 %v3264, %v1829
    %v3270 = vrot.slane %v3266, 7
    %v3271 = vrot.slane %v3267, 7
    %v3274 = vadd.f32 %v1764, %v3270
    %v3275 = vadd.f32 %v1765, %v3271
    %3276 = vset.pattern.permute.xlu0 49
    %3277 = vperm.xlu0 %3276, %v3254
    %v3278 = vpop.permute.xlu0 %3277
    %3280 = vset.pattern.permute.xlu0 49
    %3281 = vperm.xlu0 %3280, %v3255
    %v3282 = vpop.permute.xlu0 %3281
    %v3284 = vmul.f32 %v3278, %v1851
    %v3285 = vmul.f32 %v3282, %v1851
    %v3288 = vrot.slane %v3284, 7
    %v3289 = vrot.slane %v3285, 7
    %v3292 = vadd.f32 %v3274, %v3288
    %v3293 = vadd.f32 %v3275, %v3289
    %3294 = vset.pattern.permute.xlu0 50
    %3295 = vperm.xlu0 %3294, %v3254
    %v3296 = vpop.permute.xlu0 %3295
    %3298 = vset.pattern.permute.xlu0 50
    %3299 = vperm.xlu0 %3298, %v3255
    %v3300 = vpop.permute.xlu0 %3299
    %v3302 = vmul.f32 %v3296, %v1873
    %v3303 = vmul.f32 %v3300, %v1873
    %v3306 = vrot.slane %v3302, 7
    %v3307 = vrot.slane %v3303, 7
    %v3310 = vadd.f32 %v3292, %v3306
    %v3311 = vadd.f32 %v3293, %v3307
    %3312 = vset.pattern.permute.xlu0 51
    %3313 = vperm.xlu0 %3312, %v3254
    %v3314 = vpop.permute.xlu0 %3313
    %3316 = vset.pattern.permute.xlu0 51
    %3317 = vperm.xlu0 %3316, %v3255
    %v3318 = vpop.permute.xlu0 %3317
    %v3320 = vmul.f32 %v3314, %v1895
    %v3321 = vmul.f32 %v3318, %v1895
    %v3324 = vrot.slane %v3320, 7
    %v3325 = vrot.slane %v3321, 7
    %v3328 = vadd.f32 %v3310, %v3324
    %v3329 = vadd.f32 %v3311, %v3325
    %3330 = vset.pattern.permute.xlu0 52
    %3331 = vperm.xlu0 %3330, %v3254
    %v3332 = vpop.permute.xlu0 %3331
    %3334 = vset.pattern.permute.xlu0 52
    %3335 = vperm.xlu0 %3334, %v3255
    %v3336 = vpop.permute.xlu0 %3335
    %v3338 = vmul.f32 %v3332, %v1917
    %v3339 = vmul.f32 %v3336, %v1917
    %v3342 = vrot.slane %v3338, 7
    %v3343 = vrot.slane %v3339, 7
    %v3346 = vadd.f32 %v3328, %v3342
    %v3347 = vadd.f32 %v3329, %v3343
    %3348 = vset.pattern.permute.xlu0 53
    %3349 = vperm.xlu0 %3348, %v3254
    %v3350 = vpop.permute.xlu0 %3349
    %3352 = vset.pattern.permute.xlu0 53
    %3353 = vperm.xlu0 %3352, %v3255
    %v3354 = vpop.permute.xlu0 %3353
    %v3356 = vmul.f32 %v3350, %v1939
    %v3357 = vmul.f32 %v3354, %v1939
    %v3360 = vrot.slane %v3356, 7
    %v3361 = vrot.slane %v3357, 7
    %v3364 = vadd.f32 %v3346, %v3360
    %v3365 = vadd.f32 %v3347, %v3361
    %3366 = vset.pattern.permute.xlu0 54
    %3367 = vperm.xlu0 %3366, %v3254
    %v3368 = vpop.permute.xlu0 %3367
    %3370 = vset.pattern.permute.xlu0 54
    %3371 = vperm.xlu0 %3370, %v3255
    %v3372 = vpop.permute.xlu0 %3371
    %v3374 = vmul.f32 %v3368, %v1961
    %v3375 = vmul.f32 %v3372, %v1961
    %v3378 = vrot.slane %v3374, 7
    %v3379 = vrot.slane %v3375, 7
    %v3382 = vadd.f32 %v3364, %v3378
    %v3383 = vadd.f32 %v3365, %v3379
    %3384 = vset.pattern.permute.xlu0 55
    %3385 = vperm.xlu0 %3384, %v3254
    %v3386 = vpop.permute.xlu0 %3385
    %3388 = vset.pattern.permute.xlu0 55
    %3389 = vperm.xlu0 %3388, %v3255
    %v3390 = vpop.permute.xlu0 %3389
    %v3392 = vmul.f32 %v3386, %v1983
    %v3393 = vmul.f32 %v3390, %v1983
    %v3396 = vrot.slane %v3392, 7
    %v3397 = vrot.slane %v3393, 7
    %v3400 = vadd.f32 %v3382, %v3396
    %v3401 = vadd.f32 %v3383, %v3397
    %3402 = vset.pattern.permute.xlu0 56
    %3403 = vperm.xlu0 %3402, %v3254
    %v3404 = vpop.permute.xlu0 %3403
    %3406 = vset.pattern.permute.xlu0 56
    %3407 = vperm.xlu0 %3406, %v3255
    %v3408 = vpop.permute.xlu0 %3407
    %v3410 = vmul.f32 %v3404, %v2005
    %v3411 = vmul.f32 %v3408, %v2005
    %v3414 = vrot.slane %v3410, 7
    %v3415 = vrot.slane %v3411, 7
    %v3418 = vadd.f32 %v3400, %v3414
    %v3419 = vadd.f32 %v3401, %v3415
    %3420 = vset.pattern.permute.xlu0 57
    %3421 = vperm.xlu0 %3420, %v3254
    %v3422 = vpop.permute.xlu0 %3421
    %3424 = vset.pattern.permute.xlu0 57
    %3425 = vperm.xlu0 %3424, %v3255
    %v3426 = vpop.permute.xlu0 %3425
    %v3428 = vmul.f32 %v3422, %v2027
    %v3429 = vmul.f32 %v3426, %v2027
    %v3432 = vrot.slane %v3428, 7
    %v3433 = vrot.slane %v3429, 7
    %v3436 = vadd.f32 %v3418, %v3432
    %v3437 = vadd.f32 %v3419, %v3433
    %3438 = vset.pattern.permute.xlu0 58
    %3439 = vperm.xlu0 %3438, %v3254
    %v3440 = vpop.permute.xlu0 %3439
    %3442 = vset.pattern.permute.xlu0 58
    %3443 = vperm.xlu0 %3442, %v3255
    %v3444 = vpop.permute.xlu0 %3443
    %v3446 = vmul.f32 %v3440, %v2049
    %v3447 = vmul.f32 %v3444, %v2049
    %v3450 = vrot.slane %v3446, 7
    %v3451 = vrot.slane %v3447, 7
    %v3454 = vadd.f32 %v3436, %v3450
    %v3455 = vadd.f32 %v3437, %v3451
    %3456 = vset.pattern.permute.xlu0 59
    %3457 = vperm.xlu0 %3456, %v3254
    %v3458 = vpop.permute.xlu0 %3457
    %3460 = vset.pattern.permute.xlu0 59
    %3461 = vperm.xlu0 %3460, %v3255
    %v3462 = vpop.permute.xlu0 %3461
    %v3464 = vmul.f32 %v3458, %v2071
    %v3465 = vmul.f32 %v3462, %v2071
    %v3468 = vrot.slane %v3464, 7
    %v3469 = vrot.slane %v3465, 7
    %v3472 = vadd.f32 %v3454, %v3468
    %v3473 = vadd.f32 %v3455, %v3469
    %3474 = vset.pattern.permute.xlu0 60
    %3475 = vperm.xlu0 %3474, %v3254
    %v3476 = vpop.permute.xlu0 %3475
    %3478 = vset.pattern.permute.xlu0 60
    %3479 = vperm.xlu0 %3478, %v3255
    %v3480 = vpop.permute.xlu0 %3479
    %v3482 = vmul.f32 %v3476, %v2093
    %v3483 = vmul.f32 %v3480, %v2093
    %v3486 = vrot.slane %v3482, 7
    %v3487 = vrot.slane %v3483, 7
    %v3490 = vadd.f32 %v3472, %v3486
    %v3491 = vadd.f32 %v3473, %v3487
    %3492 = vset.pattern.permute.xlu0 61
    %3493 = vperm.xlu0 %3492, %v3254
    %v3494 = vpop.permute.xlu0 %3493
    %3496 = vset.pattern.permute.xlu0 61
    %3497 = vperm.xlu0 %3496, %v3255
    %v3498 = vpop.permute.xlu0 %3497
    %v3500 = vmul.f32 %v3494, %v2115
    %v3501 = vmul.f32 %v3498, %v2115
    %v3504 = vrot.slane %v3500, 7
    %v3505 = vrot.slane %v3501, 7
    %v3508 = vadd.f32 %v3490, %v3504
    %v3509 = vadd.f32 %v3491, %v3505
    %3510 = vset.pattern.permute.xlu0 62
    %3511 = vperm.xlu0 %3510, %v3254
    %v3512 = vpop.permute.xlu0 %3511
    %3514 = vset.pattern.permute.xlu0 62
    %3515 = vperm.xlu0 %3514, %v3255
    %v3516 = vpop.permute.xlu0 %3515
    %v3518 = vmul.f32 %v3512, %v2137
    %v3519 = vmul.f32 %v3516, %v2137
    %v3522 = vrot.slane %v3518, 7
    %v3523 = vrot.slane %v3519, 7
    %v3526 = vadd.f32 %v3508, %v3522
    %v3527 = vadd.f32 %v3509, %v3523
    %3528 = vset.pattern.permute.xlu0 63
    %3529 = vperm.xlu0 %3528, %v3254
    %v3530 = vpop.permute.xlu0 %3529
    %3532 = vset.pattern.permute.xlu0 63
    %3533 = vperm.xlu0 %3532, %v3255
    %v3534 = vpop.permute.xlu0 %3533
    %v3536 = vmul.f32 %v3530, %v2159
    %v3537 = vmul.f32 %v3534, %v2159
    %v3540 = vrot.slane %v3536, 7
    %v3541 = vrot.slane %v3537, 7
    %v3544 = vadd.f32 %v3526, %v3540
    %v3545 = vadd.f32 %v3527, %v3541
    %v3546 = vxor.u32 %v3544, 2147483648
    %v3547 = vxor.u32 %v3545, 2147483648
    %v3548 = vmul.f32 %v3546, 1.442695
    %v3549 = vpow.pop %v3548
    %v3550 = vmul.f32 %v3547, 1.442695
    %v3551 = vpow.pop %v3550
    %v3552 = vadd.f32 %v3549, 1.0
    %v3553 = vadd.f32 %v3551, 1.0
    %v3554 = vrcp.pop %v3552
    %v3555 = vmul.f32 1.0, %v3554
    %v3556 = vrcp.pop %v3553
    %v3557 = vmul.f32 1.0, %v3556
    %v3558 = vtanh.pop %v3544
    %v3559 = vtanh.pop %v3545
    %v3562 = vrot.slane %v3242, 7
    %v3563 = vrot.slane %v3243, 7
    %v3566 = vmul.f32 %v3555, %v3562
    %v3567 = vmul.f32 %v3557, %v3563
    %3570 = vrot.lane.b32.xlu0 %v3558, 96
    %v3571 = vpop.permute.xlu0 %3570
    %3572 = vrot.lane.b32.xlu0 %v3559, 96
    %v3573 = vpop.permute.xlu0 %3572
    %v3576 = vmul.f32 %v3555, %v3571
    %v3577 = vmul.f32 %v3557, %v3573
    %3580 = vrot.lane.b32.xlu0 %v3576, 16
    %v3581 = vpop.permute.xlu0 %3580
    %3582 = vrot.lane.b32.xlu0 %v3577, 16
    %v3583 = vpop.permute.xlu0 %3582
    %v3586 = vadd.f32 %v3566, %v3581
    %v3587 = vadd.f32 %v3567, %v3583
    %v3588 = vtanh.pop %v3586
    %v3589 = vtanh.pop %v3587
    %3592 = vrot.lane.b32.xlu0 %v3588, 32
    %v3593 = vpop.permute.xlu0 %3592
    %3594 = vrot.lane.b32.xlu0 %v3589, 32
    %v3595 = vpop.permute.xlu0 %3594
    %v3598 = vmul.f32 %v3555, %v3593
    %v3599 = vmul.f32 %v3557, %v3595
    %3601 = vset.pattern.permute.xlu0 48
    %3602 = vperm.xlu0 %3601, %v3598
    %v3603 = vpop.permute.xlu0 %3602
    %3606 = vset.pattern.permute.xlu0 48
    %3607 = vperm.xlu0 %3606, %v3599
    %v3608 = vpop.permute.xlu0 %3607
    %v3610 = vmul.f32 %v3603, %v1829
    %v3611 = vmul.f32 %v3608, %v1829
    %v3614 = vrot.slane %v3610, 7
    %v3615 = vrot.slane %v3611, 7
    %v3618 = vadd.f32 %v1764, %v3614
    %v3619 = vadd.f32 %v1765, %v3615
    %3620 = vset.pattern.permute.xlu0 49
    %3621 = vperm.xlu0 %3620, %v3598
    %v3622 = vpop.permute.xlu0 %3621
    %3624 = vset.pattern.permute.xlu0 49
    %3625 = vperm.xlu0 %3624, %v3599
    %v3626 = vpop.permute.xlu0 %3625
    %v3628 = vmul.f32 %v3622, %v1851
    %v3629 = vmul.f32 %v3626, %v1851
    %v3632 = vrot.slane %v3628, 7
    %v3633 = vrot.slane %v3629, 7
    %v3636 = vadd.f32 %v3618, %v3632
    %v3637 = vadd.f32 %v3619, %v3633
    %3638 = vset.pattern.permute.xlu0 50
    %3639 = vperm.xlu0 %3638, %v3598
    %v3640 = vpop.permute.xlu0 %3639
    %3642 = vset.pattern.permute.xlu0 50
    %3643 = vperm.xlu0 %3642, %v3599
    %v3644 = vpop.permute.xlu0 %3643
    %v3646 = vmul.f32 %v3640, %v1873
    %v3647 = vmul.f32 %v3644, %v1873
    %v3650 = vrot.slane %v3646, 7
    %v3651 = vrot.slane %v3647, 7
    %v3654 = vadd.f32 %v3636, %v3650
    %v3655 = vadd.f32 %v3637, %v3651
    %3656 = vset.pattern.permute.xlu0 51
    %3657 = vperm.xlu0 %3656, %v3598
    %v3658 = vpop.permute.xlu0 %3657
    %3660 = vset.pattern.permute.xlu0 51
    %3661 = vperm.xlu0 %3660, %v3599
    %v3662 = vpop.permute.xlu0 %3661
    %v3664 = vmul.f32 %v3658, %v1895
    %v3665 = vmul.f32 %v3662, %v1895
    %v3668 = vrot.slane %v3664, 7
    %v3669 = vrot.slane %v3665, 7
    %v3672 = vadd.f32 %v3654, %v3668
    %v3673 = vadd.f32 %v3655, %v3669
    %3674 = vset.pattern.permute.xlu0 52
    %3675 = vperm.xlu0 %3674, %v3598
    %v3676 = vpop.permute.xlu0 %3675
    %3678 = vset.pattern.permute.xlu0 52
    %3679 = vperm.xlu0 %3678, %v3599
    %v3680 = vpop.permute.xlu0 %3679
    %v3682 = vmul.f32 %v3676, %v1917
    %v3683 = vmul.f32 %v3680, %v1917
    %v3686 = vrot.slane %v3682, 7
    %v3687 = vrot.slane %v3683, 7
    %v3690 = vadd.f32 %v3672, %v3686
    %v3691 = vadd.f32 %v3673, %v3687
    %3692 = vset.pattern.permute.xlu0 53
    %3693 = vperm.xlu0 %3692, %v3598
    %v3694 = vpop.permute.xlu0 %3693
    %3696 = vset.pattern.permute.xlu0 53
    %3697 = vperm.xlu0 %3696, %v3599
    %v3698 = vpop.permute.xlu0 %3697
    %v3700 = vmul.f32 %v3694, %v1939
    %v3701 = vmul.f32 %v3698, %v1939
    %v3704 = vrot.slane %v3700, 7
    %v3705 = vrot.slane %v3701, 7
    %v3708 = vadd.f32 %v3690, %v3704
    %v3709 = vadd.f32 %v3691, %v3705
    %3710 = vset.pattern.permute.xlu0 54
    %3711 = vperm.xlu0 %3710, %v3598
    %v3712 = vpop.permute.xlu0 %3711
    %3714 = vset.pattern.permute.xlu0 54
    %3715 = vperm.xlu0 %3714, %v3599
    %v3716 = vpop.permute.xlu0 %3715
    %v3718 = vmul.f32 %v3712, %v1961
    %v3719 = vmul.f32 %v3716, %v1961
    %v3722 = vrot.slane %v3718, 7
    %v3723 = vrot.slane %v3719, 7
    %v3726 = vadd.f32 %v3708, %v3722
    %v3727 = vadd.f32 %v3709, %v3723
    %3728 = vset.pattern.permute.xlu0 55
    %3729 = vperm.xlu0 %3728, %v3598
    %v3730 = vpop.permute.xlu0 %3729
    %3732 = vset.pattern.permute.xlu0 55
    %3733 = vperm.xlu0 %3732, %v3599
    %v3734 = vpop.permute.xlu0 %3733
    %v3736 = vmul.f32 %v3730, %v1983
    %v3737 = vmul.f32 %v3734, %v1983
    %v3740 = vrot.slane %v3736, 7
    %v3741 = vrot.slane %v3737, 7
    %v3744 = vadd.f32 %v3726, %v3740
    %v3745 = vadd.f32 %v3727, %v3741
    %3746 = vset.pattern.permute.xlu0 56
    %3747 = vperm.xlu0 %3746, %v3598
    %v3748 = vpop.permute.xlu0 %3747
    %3750 = vset.pattern.permute.xlu0 56
    %3751 = vperm.xlu0 %3750, %v3599
    %v3752 = vpop.permute.xlu0 %3751
    %v3754 = vmul.f32 %v3748, %v2005
    %v3755 = vmul.f32 %v3752, %v2005
    %v3758 = vrot.slane %v3754, 7
    %v3759 = vrot.slane %v3755, 7
    %v3762 = vadd.f32 %v3744, %v3758
    %v3763 = vadd.f32 %v3745, %v3759
    %3764 = vset.pattern.permute.xlu0 57
    %3765 = vperm.xlu0 %3764, %v3598
    %v3766 = vpop.permute.xlu0 %3765
    %3768 = vset.pattern.permute.xlu0 57
    %3769 = vperm.xlu0 %3768, %v3599
    %v3770 = vpop.permute.xlu0 %3769
    %v3772 = vmul.f32 %v3766, %v2027
    %v3773 = vmul.f32 %v3770, %v2027
    %v3776 = vrot.slane %v3772, 7
    %v3777 = vrot.slane %v3773, 7
    %v3780 = vadd.f32 %v3762, %v3776
    %v3781 = vadd.f32 %v3763, %v3777
    %3782 = vset.pattern.permute.xlu0 58
    %3783 = vperm.xlu0 %3782, %v3598
    %v3784 = vpop.permute.xlu0 %3783
    %3786 = vset.pattern.permute.xlu0 58
    %3787 = vperm.xlu0 %3786, %v3599
    %v3788 = vpop.permute.xlu0 %3787
    %v3790 = vmul.f32 %v3784, %v2049
    %v3791 = vmul.f32 %v3788, %v2049
    %v3794 = vrot.slane %v3790, 7
    %v3795 = vrot.slane %v3791, 7
    %v3798 = vadd.f32 %v3780, %v3794
    %v3799 = vadd.f32 %v3781, %v3795
    %3800 = vset.pattern.permute.xlu0 59
    %3801 = vperm.xlu0 %3800, %v3598
    %v3802 = vpop.permute.xlu0 %3801
    %3804 = vset.pattern.permute.xlu0 59
    %3805 = vperm.xlu0 %3804, %v3599
    %v3806 = vpop.permute.xlu0 %3805
    %v3808 = vmul.f32 %v3802, %v2071
    %v3809 = vmul.f32 %v3806, %v2071
    %v3812 = vrot.slane %v3808, 7
    %v3813 = vrot.slane %v3809, 7
    %v3816 = vadd.f32 %v3798, %v3812
    %v3817 = vadd.f32 %v3799, %v3813
    %3818 = vset.pattern.permute.xlu0 60
    %3819 = vperm.xlu0 %3818, %v3598
    %v3820 = vpop.permute.xlu0 %3819
    %3822 = vset.pattern.permute.xlu0 60
    %3823 = vperm.xlu0 %3822, %v3599
    %v3824 = vpop.permute.xlu0 %3823
    %v3826 = vmul.f32 %v3820, %v2093
    %v3827 = vmul.f32 %v3824, %v2093
    %v3830 = vrot.slane %v3826, 7
    %v3831 = vrot.slane %v3827, 7
    %v3834 = vadd.f32 %v3816, %v3830
    %v3835 = vadd.f32 %v3817, %v3831
    %3836 = vset.pattern.permute.xlu0 61
    %3837 = vperm.xlu0 %3836, %v3598
    %v3838 = vpop.permute.xlu0 %3837
    %3840 = vset.pattern.permute.xlu0 61
    %3841 = vperm.xlu0 %3840, %v3599
    %v3842 = vpop.permute.xlu0 %3841
    %v3844 = vmul.f32 %v3838, %v2115
    %v3845 = vmul.f32 %v3842, %v2115
    %v3848 = vrot.slane %v3844, 7
    %v3849 = vrot.slane %v3845, 7
    %v3852 = vadd.f32 %v3834, %v3848
    %v3853 = vadd.f32 %v3835, %v3849
    %3854 = vset.pattern.permute.xlu0 62
    %3855 = vperm.xlu0 %3854, %v3598
    %v3856 = vpop.permute.xlu0 %3855
    %3858 = vset.pattern.permute.xlu0 62
    %3859 = vperm.xlu0 %3858, %v3599
    %v3860 = vpop.permute.xlu0 %3859
    %v3862 = vmul.f32 %v3856, %v2137
    %v3863 = vmul.f32 %v3860, %v2137
    %v3866 = vrot.slane %v3862, 7
    %v3867 = vrot.slane %v3863, 7
    %v3870 = vadd.f32 %v3852, %v3866
    %v3871 = vadd.f32 %v3853, %v3867
    %3872 = vset.pattern.permute.xlu0 63
    %3873 = vperm.xlu0 %3872, %v3598
    %v3874 = vpop.permute.xlu0 %3873
    %3876 = vset.pattern.permute.xlu0 63
    %3877 = vperm.xlu0 %3876, %v3599
    %v3878 = vpop.permute.xlu0 %3877
    %v3880 = vmul.f32 %v3874, %v2159
    %v3881 = vmul.f32 %v3878, %v2159
    %v3884 = vrot.slane %v3880, 7
    %v3885 = vrot.slane %v3881, 7
    %v3888 = vadd.f32 %v3870, %v3884
    %v3889 = vadd.f32 %v3871, %v3885
    %v3890 = vxor.u32 %v3888, 2147483648
    %v3891 = vxor.u32 %v3889, 2147483648
    %v3892 = vmul.f32 %v3890, 1.442695
    %v3893 = vpow.pop %v3892
    %v3894 = vmul.f32 %v3891, 1.442695
    %v3895 = vpow.pop %v3894
    %v3896 = vadd.f32 %v3893, 1.0
    %v3897 = vadd.f32 %v3895, 1.0
    %v3898 = vrcp.pop %v3896
    %v3899 = vmul.f32 1.0, %v3898
    %v3900 = vrcp.pop %v3897
    %v3901 = vmul.f32 1.0, %v3900
    %v3902 = vtanh.pop %v3888
    %v3903 = vtanh.pop %v3889
    %v3906 = vrot.slane %v3586, 7
    %v3907 = vrot.slane %v3587, 7
    %v3910 = vmul.f32 %v3899, %v3906
    %v3911 = vmul.f32 %v3901, %v3907
    %3914 = vrot.lane.b32.xlu0 %v3902, 96
    %v3915 = vpop.permute.xlu0 %3914
    %3916 = vrot.lane.b32.xlu0 %v3903, 96
    %v3917 = vpop.permute.xlu0 %3916
    %v3920 = vmul.f32 %v3899, %v3915
    %v3921 = vmul.f32 %v3901, %v3917
    %3924 = vrot.lane.b32.xlu0 %v3920, 16
    %v3925 = vpop.permute.xlu0 %3924
    %3926 = vrot.lane.b32.xlu0 %v3921, 16
    %v3927 = vpop.permute.xlu0 %3926
    %v3930 = vadd.f32 %v3910, %v3925
    %v3931 = vadd.f32 %v3911, %v3927
    %v3932 = vtanh.pop %v3930
    %v3933 = vtanh.pop %v3931
    %3936 = vrot.lane.b32.xlu0 %v3932, 32
    %v3937 = vpop.permute.xlu0 %3936
    %3938 = vrot.lane.b32.xlu0 %v3933, 32
    %v3939 = vpop.permute.xlu0 %3938
    %v3942 = vmul.f32 %v3899, %v3937
    %v3943 = vmul.f32 %v3901, %v3939
    %3945 = vset.pattern.permute.xlu0 48
    %3946 = vperm.xlu0 %3945, %v3942
    %v3947 = vpop.permute.xlu0 %3946
    %3950 = vset.pattern.permute.xlu0 48
    %3951 = vperm.xlu0 %3950, %v3943
    %v3952 = vpop.permute.xlu0 %3951
    %v3954 = vmul.f32 %v3947, %v1829
    %v3955 = vmul.f32 %v3952, %v1829
    %v3958 = vrot.slane %v3954, 7
    %v3959 = vrot.slane %v3955, 7
    %v3962 = vadd.f32 %v1764, %v3958
    %v3963 = vadd.f32 %v1765, %v3959
    %3964 = vset.pattern.permute.xlu0 49
    %3965 = vperm.xlu0 %3964, %v3942
    %v3966 = vpop.permute.xlu0 %3965
    %3968 = vset.pattern.permute.xlu0 49
    %3969 = vperm.xlu0 %3968, %v3943
    %v3970 = vpop.permute.xlu0 %3969
    %v3972 = vmul.f32 %v3966, %v1851
    %v3973 = vmul.f32 %v3970, %v1851
    %v3976 = vrot.slane %v3972, 7
    %v3977 = vrot.slane %v3973, 7
    %v3980 = vadd.f32 %v3962, %v3976
    %v3981 = vadd.f32 %v3963, %v3977
    %3982 = vset.pattern.permute.xlu0 50
    %3983 = vperm.xlu0 %3982, %v3942
    %v3984 = vpop.permute.xlu0 %3983
    %3986 = vset.pattern.permute.xlu0 50
    %3987 = vperm.xlu0 %3986, %v3943
    %v3988 = vpop.permute.xlu0 %3987
    %v3990 = vmul.f32 %v3984, %v1873
    %v3991 = vmul.f32 %v3988, %v1873
    %v3994 = vrot.slane %v3990, 7
    %v3995 = vrot.slane %v3991, 7
    %v3998 = vadd.f32 %v3980, %v3994
    %v3999 = vadd.f32 %v3981, %v3995
    %4000 = vset.pattern.permute.xlu0 51
    %4001 = vperm.xlu0 %4000, %v3942
    %v4002 = vpop.permute.xlu0 %4001
    %4004 = vset.pattern.permute.xlu0 51
    %4005 = vperm.xlu0 %4004, %v3943
    %v4006 = vpop.permute.xlu0 %4005
    %v4008 = vmul.f32 %v4002, %v1895
    %v4009 = vmul.f32 %v4006, %v1895
    %v4012 = vrot.slane %v4008, 7
    %v4013 = vrot.slane %v4009, 7
    %v4016 = vadd.f32 %v3998, %v4012
    %v4017 = vadd.f32 %v3999, %v4013
    %4018 = vset.pattern.permute.xlu0 52
    %4019 = vperm.xlu0 %4018, %v3942
    %v4020 = vpop.permute.xlu0 %4019
    %4022 = vset.pattern.permute.xlu0 52
    %4023 = vperm.xlu0 %4022, %v3943
    %v4024 = vpop.permute.xlu0 %4023
    %v4026 = vmul.f32 %v4020, %v1917
    %v4027 = vmul.f32 %v4024, %v1917
    %v4030 = vrot.slane %v4026, 7
    %v4031 = vrot.slane %v4027, 7
    %v4034 = vadd.f32 %v4016, %v4030
    %v4035 = vadd.f32 %v4017, %v4031
    %4036 = vset.pattern.permute.xlu0 53
    %4037 = vperm.xlu0 %4036, %v3942
    %v4038 = vpop.permute.xlu0 %4037
    %4040 = vset.pattern.permute.xlu0 53
    %4041 = vperm.xlu0 %4040, %v3943
    %v4042 = vpop.permute.xlu0 %4041
    %v4044 = vmul.f32 %v4038, %v1939
    %v4045 = vmul.f32 %v4042, %v1939
    %v4048 = vrot.slane %v4044, 7
    %v4049 = vrot.slane %v4045, 7
    %v4052 = vadd.f32 %v4034, %v4048
    %v4053 = vadd.f32 %v4035, %v4049
    %4054 = vset.pattern.permute.xlu0 54
    %4055 = vperm.xlu0 %4054, %v3942
    %v4056 = vpop.permute.xlu0 %4055
    %4058 = vset.pattern.permute.xlu0 54
    %4059 = vperm.xlu0 %4058, %v3943
    %v4060 = vpop.permute.xlu0 %4059
    %v4062 = vmul.f32 %v4056, %v1961
    %v4063 = vmul.f32 %v4060, %v1961
    %v4066 = vrot.slane %v4062, 7
    %v4067 = vrot.slane %v4063, 7
    %v4070 = vadd.f32 %v4052, %v4066
    %v4071 = vadd.f32 %v4053, %v4067
    %4072 = vset.pattern.permute.xlu0 55
    %4073 = vperm.xlu0 %4072, %v3942
    %v4074 = vpop.permute.xlu0 %4073
    %4076 = vset.pattern.permute.xlu0 55
    %4077 = vperm.xlu0 %4076, %v3943
    %v4078 = vpop.permute.xlu0 %4077
    %v4080 = vmul.f32 %v4074, %v1983
    %v4081 = vmul.f32 %v4078, %v1983
    %v4084 = vrot.slane %v4080, 7
    %v4085 = vrot.slane %v4081, 7
    %v4088 = vadd.f32 %v4070, %v4084
    %v4089 = vadd.f32 %v4071, %v4085
    %4090 = vset.pattern.permute.xlu0 56
    %4091 = vperm.xlu0 %4090, %v3942
    %v4092 = vpop.permute.xlu0 %4091
    %4094 = vset.pattern.permute.xlu0 56
    %4095 = vperm.xlu0 %4094, %v3943
    %v4096 = vpop.permute.xlu0 %4095
    %v4098 = vmul.f32 %v4092, %v2005
    %v4099 = vmul.f32 %v4096, %v2005
    %v4102 = vrot.slane %v4098, 7
    %v4103 = vrot.slane %v4099, 7
    %v4106 = vadd.f32 %v4088, %v4102
    %v4107 = vadd.f32 %v4089, %v4103
    %4108 = vset.pattern.permute.xlu0 57
    %4109 = vperm.xlu0 %4108, %v3942
    %v4110 = vpop.permute.xlu0 %4109
    %4112 = vset.pattern.permute.xlu0 57
    %4113 = vperm.xlu0 %4112, %v3943
    %v4114 = vpop.permute.xlu0 %4113
    %v4116 = vmul.f32 %v4110, %v2027
    %v4117 = vmul.f32 %v4114, %v2027
    %v4120 = vrot.slane %v4116, 7
    %v4121 = vrot.slane %v4117, 7
    %v4124 = vadd.f32 %v4106, %v4120
    %v4125 = vadd.f32 %v4107, %v4121
    %4126 = vset.pattern.permute.xlu0 58
    %4127 = vperm.xlu0 %4126, %v3942
    %v4128 = vpop.permute.xlu0 %4127
    %4130 = vset.pattern.permute.xlu0 58
    %4131 = vperm.xlu0 %4130, %v3943
    %v4132 = vpop.permute.xlu0 %4131
    %v4134 = vmul.f32 %v4128, %v2049
    %v4135 = vmul.f32 %v4132, %v2049
    %v4138 = vrot.slane %v4134, 7
    %v4139 = vrot.slane %v4135, 7
    %v4142 = vadd.f32 %v4124, %v4138
    %v4143 = vadd.f32 %v4125, %v4139
    %4144 = vset.pattern.permute.xlu0 59
    %4145 = vperm.xlu0 %4144, %v3942
    %v4146 = vpop.permute.xlu0 %4145
    %4148 = vset.pattern.permute.xlu0 59
    %4149 = vperm.xlu0 %4148, %v3943
    %v4150 = vpop.permute.xlu0 %4149
    %v4152 = vmul.f32 %v4146, %v2071
    %v4153 = vmul.f32 %v4150, %v2071
    %v4156 = vrot.slane %v4152, 7
    %v4157 = vrot.slane %v4153, 7
    %v4160 = vadd.f32 %v4142, %v4156
    %v4161 = vadd.f32 %v4143, %v4157
    %4162 = vset.pattern.permute.xlu0 60
    %4163 = vperm.xlu0 %4162, %v3942
    %v4164 = vpop.permute.xlu0 %4163
    %4166 = vset.pattern.permute.xlu0 60
    %4167 = vperm.xlu0 %4166, %v3943
    %v4168 = vpop.permute.xlu0 %4167
    %v4170 = vmul.f32 %v4164, %v2093
    %v4171 = vmul.f32 %v4168, %v2093
    %v4174 = vrot.slane %v4170, 7
    %v4175 = vrot.slane %v4171, 7
    %v4178 = vadd.f32 %v4160, %v4174
    %v4179 = vadd.f32 %v4161, %v4175
    %4180 = vset.pattern.permute.xlu0 61
    %4181 = vperm.xlu0 %4180, %v3942
    %v4182 = vpop.permute.xlu0 %4181
    %4184 = vset.pattern.permute.xlu0 61
    %4185 = vperm.xlu0 %4184, %v3943
    %v4186 = vpop.permute.xlu0 %4185
    %v4188 = vmul.f32 %v4182, %v2115
    %v4189 = vmul.f32 %v4186, %v2115
    %v4192 = vrot.slane %v4188, 7
    %v4193 = vrot.slane %v4189, 7
    %v4196 = vadd.f32 %v4178, %v4192
    %v4197 = vadd.f32 %v4179, %v4193
    %4198 = vset.pattern.permute.xlu0 62
    %4199 = vperm.xlu0 %4198, %v3942
    %v4200 = vpop.permute.xlu0 %4199
    %4202 = vset.pattern.permute.xlu0 62
    %4203 = vperm.xlu0 %4202, %v3943
    %v4204 = vpop.permute.xlu0 %4203
    %v4206 = vmul.f32 %v4200, %v2137
    %v4207 = vmul.f32 %v4204, %v2137
    %v4210 = vrot.slane %v4206, 7
    %v4211 = vrot.slane %v4207, 7
    %v4214 = vadd.f32 %v4196, %v4210
    %v4215 = vadd.f32 %v4197, %v4211
    %4216 = vset.pattern.permute.xlu0 63
    %4217 = vperm.xlu0 %4216, %v3942
    %v4218 = vpop.permute.xlu0 %4217
    %4220 = vset.pattern.permute.xlu0 63
    %4221 = vperm.xlu0 %4220, %v3943
    %v4222 = vpop.permute.xlu0 %4221
    %v4224 = vmul.f32 %v4218, %v2159
    %v4225 = vmul.f32 %v4222, %v2159
    %v4228 = vrot.slane %v4224, 7
    %v4229 = vrot.slane %v4225, 7
    %v4232 = vadd.f32 %v4214, %v4228
    %v4233 = vadd.f32 %v4215, %v4229
    %v4234 = vxor.u32 %v4232, 2147483648
    %v4235 = vxor.u32 %v4233, 2147483648
    %v4236 = vmul.f32 %v4234, 1.442695
    %v4237 = vpow.pop %v4236
    %v4238 = vmul.f32 %v4235, 1.442695
    %v4239 = vpow.pop %v4238
    %v4240 = vadd.f32 %v4237, 1.0
    %v4241 = vadd.f32 %v4239, 1.0
    %v4242 = vrcp.pop %v4240
    %v4243 = vmul.f32 1.0, %v4242
    %v4244 = vrcp.pop %v4241
    %v4245 = vmul.f32 1.0, %v4244
    %v4246 = vtanh.pop %v4232
    %v4247 = vtanh.pop %v4233
    %v4250 = vrot.slane %v3930, 7
    %v4251 = vrot.slane %v3931, 7
    %v4254 = vmul.f32 %v4243, %v4250
    %v4255 = vmul.f32 %v4245, %v4251
    %4258 = vrot.lane.b32.xlu0 %v4246, 96
    %v4259 = vpop.permute.xlu0 %4258
    %4260 = vrot.lane.b32.xlu0 %v4247, 96
    %v4261 = vpop.permute.xlu0 %4260
    %v4264 = vmul.f32 %v4243, %v4259
    %v4265 = vmul.f32 %v4245, %v4261
    %4268 = vrot.lane.b32.xlu0 %v4264, 16
    %v4269 = vpop.permute.xlu0 %4268
    %4270 = vrot.lane.b32.xlu0 %v4265, 16
    %v4271 = vpop.permute.xlu0 %4270
    %v4274 = vadd.f32 %v4254, %v4269
    %v4275 = vadd.f32 %v4255, %v4271
    %v4276 = vtanh.pop %v4274
    %v4277 = vtanh.pop %v4275
    %4280 = vrot.lane.b32.xlu0 %v4276, 32
    %v4281 = vpop.permute.xlu0 %4280
    %4282 = vrot.lane.b32.xlu0 %v4277, 32
    %v4283 = vpop.permute.xlu0 %4282
    %v4286 = vmul.f32 %v4243, %v4281
    %v4287 = vmul.f32 %v4245, %v4283
    %v4288 = vtanh.pop %v1792
    %v4289 = vtanh.pop %v1793
    %4292 = vrot.lane.b32.xlu0 %v4288, 48
    %v4293 = vpop.permute.xlu0 %4292
    %4294 = vrot.lane.b32.xlu0 %v4289, 48
    %v4295 = vpop.permute.xlu0 %4294
    %v4298 = vmul.f32 %v1777, %v4293
    %v4299 = vmul.f32 %v1779, %v4295
    %v4302 = vrot.slane %v4287, 7
    %4303 = vrot.lane.b32.xlu0 %v4286, 80
    %v4304 = vpop.permute.xlu0 %4303
    %4305 = vrot.lane.b32.xlu0 %v4302, 80
    %v4306 = vpop.permute.xlu0 %4305
    %v4311 = vrot.slane %v4299, 7
    %4312 = vrot.lane.b32.xlu0 %v4298, 32
    %v4313 = vpop.permute.xlu0 %4312
    %4314 = vrot.lane.b32.xlu0 %v4311, 32
    %v4315 = vpop.permute.xlu0 %4314
    %v4318 = vsel %vm866, %v4304, %v4313
    %v4319 = vsel %vm866, %v4306, %v4315
    %v4320 = vld [vmem:[%s69] sm:$0xff]
    %v4321 = vld [vmem:[%s69 + $0x8] sm:$0xff]
    %v4322 = vld [vmem:[%s69 + $0x10] sm:$0xff]
    %v4323 = vld [vmem:[%s69 + $0x18] sm:$0xff]
    %v4324 = vld [vmem:[#allocation29] sm:$0x1]
    %v4326 = vlaneseq
    %v4327 = vshrl.u32 %v4326, 7
    %v4328 = vsub.s32 0, %v4327
    %v4329 = vrot.slane %v4324, %v4328
    %vm4333 = vcmask 1040384
    %v4334 = vrot.slane %v4318, 7
    %v4335 = vrot.slane %v4319, 7
    %v4336 = vsel %vm4333, %v4334, %v4335
    %v4337 = vsel %vm868, %v4336, 0
    %4339 = vmatprep.subr.mxu0 0.0
    %4340 = vmatpush1.msra.mxu0 %v4320
    %4341 = vmatprep.subr.mxu0 0.0
    %4342 = vmatpush1.msra.mxu0 %v4321
    %4343 = vmatprep.subr.mxu0 0.0
    %4344 = vmatpush1.msra.mxu0 %v4322
    %4345 = vmatprep.subr.mxu0 0.0
    %4346 = vmatpush1.msra.mxu0 %v4323
    %4347 = vmatprep.subr.mxu0 0.0
    %4348 = vmatpush1.msra.mxu0 0.0
    %4349 = vmatprep.subr.mxu0 0.0
    %4350 = vmatpush1.msra.mxu0 0.0
    %4351 = vmatprep.subr.mxu0 0.0
    %4352 = vmatpush1.msra.mxu0 0.0
    %4353 = vmatprep.subr.mxu0 0.0
    %4354 = vmatpush1.msra.mxu0 0.0
    %4355 = vmatprep.subr.mxu0 0.0
    %4356 = vmatpush1.msra.mxu0 0.0
    %4357 = vmatprep.subr.mxu0 0.0
    %4358 = vmatpush1.msra.mxu0 0.0
    %4359 = vmatprep.subr.mxu0 0.0
    %4360 = vmatpush1.msra.mxu0 0.0
    %4361 = vmatprep.subr.mxu0 0.0
    %4362 = vmatpush1.msra.mxu0 0.0
    %4363 = vmatprep.subr.mxu0 0.0
    %4364 = vmatpush1.msra.mxu0 0.0
    %4365 = vmatprep.subr.mxu0 0.0
    %4366 = vmatpush1.msra.mxu0 0.0
    %4367 = vmatprep.subr.mxu0 0.0
    %4368 = vmatpush1.msra.mxu0 0.0
    %4369 = vmatprep.subr.mxu0 0.0
    %4370 = vmatpush1.msra.mxu0 0.0
    %4371 = vmatprep.subr.mxu0 0.0
    %4372 = vmatpush1.msra.mxu0 0.0
    %4373 = vmatprep.subr.mxu0 0.0
    %4374 = vmatpush1.msra.mxu0 0.0
    %4375 = vmatprep.subr.mxu0 0.0
    %4376 = vmatpush1.msra.mxu0 0.0
    %4377 = vmatprep.subr.mxu0 0.0
    %4378 = vmatpush1.msra.mxu0 0.0
    %4379 = vmatprep.subr.mxu0 0.0
    %4380 = vmatpush1.msra.mxu0 0.0
    %4381 = vmatprep.subr.mxu0 0.0
    %4382 = vmatpush1.msra.mxu0 0.0
    %4383 = vmatprep.subr.mxu0 0.0
    %4384 = vmatpush1.msra.mxu0 0.0
    %4385 = vmatprep.subr.mxu0 0.0
    %4386 = vmatpush1.msra.mxu0 0.0
    %4387 = vmatprep.subr.mxu0 0.0
    %4388 = vmatpush1.msra.mxu0 0.0
    %4389 = vmatprep.subr.mxu0 0.0
    %4390 = vmatpush1.msra.mxu0 0.0
    %4391 = vmatprep.subr.mxu0 0.0
    %4392 = vmatpush1.msra.mxu0 0.0
    %4393 = vmatprep.subr.mxu0 0.0
    %4394 = vmatpush1.msra.mxu0 0.0
    %4395 = vmatprep.subr.mxu0 0.0
    %4396 = vmatpush1.msra.mxu0 0.0
    %4397 = vmatprep.subr.mxu0 0.0
    %4398 = vmatpush1.msra.mxu0 0.0
    %4399 = vmatprep.subr.mxu0 0.0
    %4400 = vmatpush1.msra.mxu0 0.0
    %4401 = vmatprep.subr.mxu0 0.0
    %4402 = vmatpush1.msra.mxu0 0.0
    %4403 = vmatprep.mubr.f32.mxu0 0.0
    %4404 = vmatmul.mubr.f32.gmra.mrb[0].mxu0 %v4337
    %v4405 = vpop.f32.mrb[0].mxu0
    %v4406 = vadd.f32 %v4329, %v4405
    %v4407 = vpop.f32.mrb[0].mxu0
    %4408 = vdwg.mxu0
    %vm4409 = vcmask 9216
    %4410 = vst.msk [vmem:[#allocation31] sm:$0x3] %vm4409, %v4406
    %v4411 = vsel %vm4409, %v4406, -inf
    %4412 = vmax.xlane.f32.xlu0 %v4411
    %v4413 = vpop.xlane.xlu0 %4412
    %v4414 = vsub.f32 %v4406, %v4413
    %v4415 = vmul.f32 %v4414, 1.442695
    %v4416 = vpow.pop %v4415
    %v4417 = vsel %vm4409, %v4416, 0.0
    %4418 = vadd.xlane.f32.xlu0 %v4417
    %v4419 = vpop.xlane.xlu0 %4418
    %v4420 = vlog2.pop %v4419
    %v4421 = vmul.f32 %v4420, 0.6931472
    %v4422 = vadd.f32 %v4413, %v4421
    %v4423 = vld [vmem:[%s9] sm:$0x3]
    %v4424 = vcvt.s32.f32 %v4423
    %v4425 = vsub.f32 1.0, %v4424
    %v4426 = vmul.f32 %v4406, %v4425
    %4428 = vrot.lane.b32.xlu0 %v4424, 1
    %v4429 = vpop.permute.xlu0 %4428
    %v4431 = vmul.f32 %v4406, %v4429
    %4433 = vrot.lane.b32.xlu0 %v4431, 127
    %v4434 = vpop.permute.xlu0 %4433
    %v4436 = vadd.f32 %v4426, %v4434
    %v4437 = vsub.f32 %v4422, %v4436
    %vm4438 = vcmask 1024
    %v4439 = vsel %vm4438, %v4437, 0.0
    %v4440 = vrot.slane %v4439, 4
    %v4441 = vadd.f32 %v4439, %v4440
    %v4442 = vrot.slane %v4441, 2
    %v4443 = vadd.f32 %v4441, %v4442
    %v4444 = vrot.slane %v4443, 1
    %v4445 = vadd.f32 %v4443, %v4444
    %v4446 = vmul.f32 %v4445, 0.5
    %vm4447 = vcmask 0
    %4448 = vst.msk [vmem:[#allocation32] sm:$0x1] %vm4447, %v4446
    // Predicated region
    $region218: #{humor_detection_forward.1} parent=1 // pred_check
      _
    $region219: #{humor_detection_forward.1} parent=1 // pred_check_branch
      %4450 = sbr.rel (0) target = $region221
    $region220: #{humor_detection_forward.1} parent=1 // pred_region
      %s4452 = ssub.s32 32, 32
      %4453 = vsyncadd [#allocation4], %s4452
      %s4455 = sshll.u32 [#allocation31], 4
      %s4456 = int_to_ptr.vmem [resolvable:$true] %s4455
      %4458 = dma.vmem_to_hbm [thread:$0]  %s4456, 32, %s73, [#allocation4]
    $region221: #{humor_detection_forward.1} parent=1 // pred_fallthru
      _
    // Predicated region
    $region222: #{humor_detection_forward.1} parent=1 // pred_check
      _
    $region223: #{humor_detection_forward.1} parent=1 // pred_check_branch
      %4460 = sbr.rel (0) target = $region225
    $region224: #{humor_detection_forward.1} parent=1 // pred_region
      %s4462 = ssub.s32 16, 16
      %4463 = vsyncadd [#allocation33], %s4462
      %s4465 = sshll.u32 [#allocation32], 4
      %s4466 = int_to_ptr.vmem [resolvable:$true] %s4465
      %4468 = dma.vmem_to_hbm [thread:$0]  %s4466, 16, %s75, [#allocation33]
    $region225: #{humor_detection_forward.1} parent=1 // pred_fallthru
      _
    // Predicated region
    $region226: #{humor_detection_forward.1} parent=1 // pred_check
      _
    $region227: #{humor_detection_forward.1} parent=1 // pred_check_branch
      %4470 = sbr.rel (0) target = $region229
    $region228: #{humor_detection_forward.1} parent=1 // pred_region
      %4471 = dma.done [#allocation4], 32
    $region229: #{humor_detection_forward.1} parent=1 // pred_fallthru
      _
    // Predicated region
    $region230: #{humor_detection_forward.1} parent=1 // pred_check
      _
    $region231: #{humor_detection_forward.1} parent=1 // pred_check_branch
      %4473 = sbr.rel (0) target = $region233
    $region232: #{humor_detection_forward.1} parent=1 // pred_region
      %4474 = dma.done [#allocation33], 16
    $region233: #{humor_detection_forward.1} parent=1 // pred_fallthru
      _
    %4475 = vsyncpa [#allocation3], 1
    %4476 = vsyncpa [#allocation6], 1
    %4477 = vsyncpa [#allocation9], 1
    %4478 = vsyncpa [#allocation12], 1
    %4479 = vsyncpa [#allocation15], 1
    %4480 = vsyncpa [#allocation18], 1
    %4481 = vsyncpa [#allocation21], 1
    %4482 = vsyncpa [#allocation24], 1
    %4483 = vsyncpa [#allocation27], 1
    %4484 = vsyncpa [#allocation30], 1
    %4485 = vsyncpa [#allocation4], 1
    %4486 = vsyncpa [#allocation33], 1

</llo_original>
